<compile_context>
chip_gen: v7x
topology: tpu7x:2x2x1
jax: 0.10.0
libtpu: 0.0.40
codegen_flags: <defaults>
</compile_context>

<pallas_src>
import jax
import jax.numpy as jnp
from jax.experimental import pallas as pl
from jax.experimental.pallas import tpu as pltpu

# FashionCNN architecture constants (fixed by the PyTorch module).
C1, C2 = 32, 64
FC1_IN = 7 * 7 * 64
FC1_OUT = 1000
N_CLASSES = 10
TK_FC = 256            # contraction tile for the fused fc kernel
LANES_POOL = 512       # lane width for the lane-dense pool kernel


def _round_up(x, m):
    return (x + m - 1) // m * m


# ---------------------------------------------------------------------------
# Pallas kernels
# ---------------------------------------------------------------------------
def _conv_mm_kernel(a_ref, w_ref, b_ref, o_ref):
    """ReLU(a @ W + b). Single (full) K block -> no accumulator, no pl.when."""
    acc = jnp.dot(a_ref[...], w_ref[...], preferred_element_type=jnp.float32)
    o_ref[...] = jnp.maximum(acc + b_ref[...], 0.0)


def _fused_fc_kernel(a_ref, w1_ref, b1_ref, w2_ref, b2_ref, o_ref, acc_ref):
    """Fused fc1 + fc2.  grid = (M tiles [parallel], K1 tiles [arbitrary])."""
    k = pl.program_id(1)

    @pl.when(k == 0)
    def _():
        acc_ref[...] = jnp.zeros_like(acc_ref)

    acc_ref[...] += jnp.dot(a_ref[...], w1_ref[...],
                            preferred_element_type=jnp.float32)

    @pl.when(k == pl.num_programs(1) - 1)
    def _():
        # fc1 bias (no activation); Dropout2d is identity at inference; fc2
        # runs straight from the VMEM-resident intermediate.
        h = (acc_ref[...] + b1_ref[...]).astype(w2_ref.dtype)
        o_ref[...] = (jnp.dot(h, w2_ref[...], preferred_element_type=jnp.float32)
                      + b2_ref[...])


def _max4_kernel(a_ref, b_ref, c_ref, d_ref, o_ref):
    """Elementwise max of 4 arrays == 2x2 max-pool (operands pre-strided in JAX)."""
    o_ref[...] = jnp.maximum(jnp.maximum(a_ref[...], b_ref[...]),
                             jnp.maximum(c_ref[...], d_ref[...]))


# ---------------------------------------------------------------------------
# Wrappers around pallas_call
# ---------------------------------------------------------------------------
def conv_matmul(a, w_pad, b_pad, n_out, *, tm=256):
    """out = ReLU(a @ W + b).  W pre-padded (Kp, Np) bf16, b (1, Np) f32."""
    m, k = a.shape
    kp, np_ = w_pad.shape
    tm = min(tm, _round_up(m, 8))
    mp = _round_up(m, tm)
    ap = jnp.pad(a, ((0, mp - m), (0, kp - k))).astype(jnp.bfloat16)
    out = pl.pallas_call(
        _conv_mm_kernel,
        out_shape=jax.ShapeDtypeStruct((mp, np_), jnp.float32),
        grid_spec=pltpu.PrefetchScalarGridSpec(
            num_scalar_prefetch=0,
            grid=(mp // tm,),
            in_specs=[
                pl.BlockSpec((tm, kp), lambda i: (i, 0)),
                pl.BlockSpec((kp, np_), lambda i: (0, 0)),
                pl.BlockSpec((1, np_), lambda i: (0, 0)),
            ],
            out_specs=pl.BlockSpec((tm, np_), lambda i: (i, 0)),
        ),
        compiler_params=pltpu.CompilerParams(
            dimension_semantics=("parallel",)),
    )(ap, w_pad, b_pad)
    return out[:m, :n_out]


def fused_fc(flat, w1_pad, b1_pad, w2_pad, b2_pad, *, tm=256, tk=TK_FC):
    """(flat @ W1 + b1) @ W2 + b2 in one Pallas kernel (fc1+fc2 fused)."""
    m, k = flat.shape
    kp, n1p = w1_pad.shape
    n2p = w2_pad.shape[1]
    tm = min(tm, _round_up(m, 8))
    mp = _round_up(m, tm)
    ap = jnp.pad(flat, ((0, mp - m), (0, kp - k))).astype(jnp.bfloat16)
    out = pl.pallas_call(
        _fused_fc_kernel,
        out_shape=jax.ShapeDtypeStruct((mp, n2p), jnp.float32),
        grid_spec=pltpu.PrefetchScalarGridSpec(
            num_scalar_prefetch=0,
            grid=(mp // tm, kp // tk),
            in_specs=[
                pl.BlockSpec((tm, tk), lambda i, kk: (i, kk)),
                pl.BlockSpec((tk, n1p), lambda i, kk: (kk, 0)),
                pl.BlockSpec((1, n1p), lambda i, kk: (0, 0)),
                pl.BlockSpec((n1p, n2p), lambda i, kk: (0, 0)),
                pl.BlockSpec((1, n2p), lambda i, kk: (0, 0)),
            ],
            out_specs=pl.BlockSpec((tm, n2p), lambda i, kk: (i, 0)),
            scratch_shapes=[pltpu.VMEM((tm, n1p), jnp.float32)],
        ),
        compiler_params=pltpu.CompilerParams(
            dimension_semantics=("parallel", "arbitrary")),
    )(ap, w1_pad, b1_pad, w2_pad, b2_pad)
    return out[:m, :]


def maxpool2x2(x, *, lanes=LANES_POOL, max_rows=256):
    """2x2/stride-2 max pool on NHWC input via a lane-dense Pallas max-of-4 kernel."""
    b, h, w, c = x.shape
    ho, wo = h // 2, w // 2
    parts = (x[:, 0::2, 0::2, :], x[:, 0::2, 1::2, :],
             x[:, 1::2, 0::2, :], x[:, 1::2, 1::2, :])
    n = b * ho * wo * c
    rows = -(-n // lanes)
    tile_rows = min(max_rows, _round_up(rows, 8))
    rows_pad = _round_up(rows, tile_rows)
    pad = rows_pad * lanes - n
    parts2d = [jnp.pad(p.reshape(-1), (0, pad)).reshape(rows_pad, lanes)
               for p in parts]
    spec = pl.BlockSpec((tile_rows, lanes), lambda i: (i, 0))
    out = pl.pallas_call(
        _max4_kernel,
        out_shape=jax.ShapeDtypeStruct((rows_pad, lanes), x.dtype),
        grid_spec=pltpu.PrefetchScalarGridSpec(
            num_scalar_prefetch=0,
            grid=(rows_pad // tile_rows,),
            in_specs=[spec] * 4,
            out_specs=spec,
        ),
        compiler_params=pltpu.CompilerParams(
            dimension_semantics=("parallel",)),
    )(*parts2d)
    return out.reshape(-1)[:n].reshape(b, ho, wo, c)


# ---------------------------------------------------------------------------
# Glue: im2col, parameter init / repack, forward
# ---------------------------------------------------------------------------
def im2col(x, ksize, pad):
    """x: (B, H, W, C) NHWC -> (B*H*W, ksize*ksize*C), patch order (kh, kw, c)."""
    b, h, w, c = x.shape
    xp = jnp.pad(x, ((0, 0), (pad, pad), (pad, pad), (0, 0)))
    cols = []
    for kh in range(ksize):
        for kw in range(ksize):
            cols.append(xp[:, kh:kh + h, kw:kw + w, :])
    patches = jnp.stack(cols, axis=3)            # (B, H, W, k*k, C)
    return patches.reshape(b * h * w, ksize * ksize * c)


def init_params(key):
    """Deterministic synthetic parameters with PyTorch-convention shapes."""
    ks = jax.random.split(key, 8)
    s = 0.05
    return {
        "w1": s * jax.random.normal(ks[0], (C1, 1, 5, 5), jnp.float32),
        "b1": s * jax.random.normal(ks[1], (C1,), jnp.float32),
        "w2": s * jax.random.normal(ks[2], (C2, C1, 3, 3), jnp.float32),
        "b2": s * jax.random.normal(ks[3], (C2,), jnp.float32),
        "wfc1": s * jax.random.normal(ks[4], (FC1_OUT, FC1_IN), jnp.float32),
        "bfc1": s * jax.random.normal(ks[5], (FC1_OUT,), jnp.float32),
        "wfc2": s * jax.random.normal(ks[6], (N_CLASSES, FC1_OUT), jnp.float32),
        "bfc2": s * jax.random.normal(ks[7], (N_CLASSES,), jnp.float32),
    }


def prepare_params(params):
    """One-time repack: pre-transpose, pad and bf16-cast weights to kernel layout.

    Done OUTSIDE the jitted forward so no per-forward .T / pad copy of the
    large fc1 weight is materialized (perf feedback)."""
    def conv_w(w):
        cout, cin, kh, kw = w.shape
        w2 = jnp.transpose(w, (2, 3, 1, 0)).reshape(kh * kw * cin, cout)
        kp = _round_up(w2.shape[0], 32)     # no K padding to 128; 32 for bf16 packing
        np_ = _round_up(cout, 128)          # lane-dense output columns
        return jnp.pad(w2, ((0, kp - w2.shape[0]), (0, np_ - cout))).astype(jnp.bfloat16)

    def bias(b_, n):
        return jnp.pad(b_.astype(jnp.float32), (0, n - b_.shape[0])).reshape(1, n)

    k1p = _round_up(FC1_IN, TK_FC)
    n1p = _round_up(FC1_OUT, 128)
    n2p = _round_up(N_CLASSES, 128)
    wfc1 = jnp.pad(params["wfc1"].T,
                   ((0, k1p - FC1_IN), (0, n1p - FC1_OUT))).astype(jnp.bfloat16)
    wfc2 = jnp.pad(params["wfc2"].T,
                   ((0, n1p - FC1_OUT), (0, n2p - N_CLASSES))).astype(jnp.bfloat16)
    return {
        "w1": conv_w(params["w1"]), "b1": bias(params["b1"], 128),
        "w2": conv_w(params["w2"]), "b2": bias(params["b2"], 128),
        "wfc1": wfc1, "bfc1": bias(params["bfc1"], n1p),
        "wfc2": wfc2, "bfc2": bias(params["bfc2"], n2p),
    }


def fashion_cnn_forward(x_nchw, prep):
    # Input NCHW (PyTorch); compute in NHWC; flatten back in (C,H,W) order.
    x = jnp.transpose(x_nchw.astype(jnp.float32), (0, 2, 3, 1))   # (B, 28, 28, 1)
    b = x.shape[0]

    # layer1: Conv2d(1,32,5,pad=2) + ReLU + MaxPool2d(2)
    a1 = im2col(x, 5, 2)                                          # (B*28*28, 25)
    h1 = conv_matmul(a1, prep["w1"], prep["b1"], C1).reshape(b, 28, 28, C1)
    h1 = maxpool2x2(h1)                                           # (B, 14, 14, 32)

    # layer2: Conv2d(32,64,3,pad=1) + ReLU + MaxPool2d(2)
    a2 = im2col(h1, 3, 1)                                         # (B*14*14, 288)
    h2 = conv_matmul(a2, prep["w2"], prep["b2"], C2).reshape(b, 14, 14, C2)
    h2 = maxpool2x2(h2)                                           # (B, 7, 7, 64)

    # flatten exactly like PyTorch's out.view(B, -1) on NCHW: order = (C, H, W)
    flat = jnp.transpose(h2, (0, 3, 1, 2)).reshape(b, FC1_IN)

    # fc1 -> Dropout2d(0.25) (identity at inference) -> fc2, fused in one kernel.
    # TODO(synk): training-mode Dropout2d (random channel zeroing) not implemented.
    logits = fused_fc(flat, prep["wfc1"], prep["bfc1"], prep["wfc2"], prep["bfc2"])
    return logits[:, :N_CLASSES]


def reference_forward(x_nchw, params):
    """Pure-JAX reference with matching numerics (bf16 matmul inputs, f32 accum)."""
    x = jnp.transpose(x_nchw.astype(jnp.float32), (0, 2, 3, 1))

    def conv(h, w, bias, pad):
        wj = jnp.transpose(w, (2, 3, 1, 0)).astype(jnp.bfloat16)   # HWIO
        y = jax.lax.conv_general_dilated(
            h.astype(jnp.bfloat16), wj, (1, 1), [(pad, pad), (pad, pad)],
            dimension_numbers=("NHWC", "HWIO", "NHWC"),
            preferred_element_type=jnp.float32)
        return y + bias

    h = jnp.maximum(conv(x, params["w1"], params["b1"], 2), 0.0)
    h = jax.lax.reduce_window(h, -jnp.inf, jax.lax.max, (1, 2, 2, 1), (1, 2, 2, 1), "VALID")
    h = jnp.maximum(conv(h, params["w2"], params["b2"], 1), 0.0)
    h = jax.lax.reduce_window(h, -jnp.inf, jax.lax.max, (1, 2, 2, 1), (1, 2, 2, 1), "VALID")
    flat = jnp.transpose(h, (0, 3, 1, 2)).reshape(h.shape[0], -1)
    o = jnp.dot(flat.astype(jnp.bfloat16), params["wfc1"].T.astype(jnp.bfloat16),
                preferred_element_type=jnp.float32) + params["bfc1"]
    o = jnp.dot(o.astype(jnp.bfloat16), params["wfc2"].T.astype(jnp.bfloat16),
                preferred_element_type=jnp.float32) + params["bfc2"]
    return o


if __name__ == "__main__":
    key = jax.random.PRNGKey(0)
    kx, kp = jax.random.split(key)
    # FashionMNIST-shaped input: batch=2, channels=1, 28x28 (required by fc1 = 7*7*64)
    x = jax.random.normal(kx, (2, 1, 28, 28), jnp.float32)
    params = init_params(kp)
    prep = prepare_params(params)          # one-time weight repack (outside jit)

    out = jax.jit(fashion_cnn_forward)(x, prep)
    out = jax.block_until_ready(out)
    assert out.shape == (2, 10), out.shape

    ref = jax.block_until_ready(reference_forward(x, params))
    max_err = float(jnp.max(jnp.abs(out - ref)))
    assert max_err < 1e-2, f"mismatch vs reference: {max_err}"

    print("KERNEL_OK")
</pallas_src>

<mosaic_0001>
module attributes {stable_mosaic.version = 11 : i64} {
  func.func @_conv_mm_kernel(%arg0: i32, %arg1: memref<256x32xbf16, #tpu.memory_space<vmem>>, %arg2: memref<32x128xbf16, #tpu.memory_space<vmem>>, %arg3: memref<1x128xf32, #tpu.memory_space<vmem>>, %arg4: memref<256x128xf32, #tpu.memory_space<vmem>>) attributes {dimension_semantics = [#tpu.dimension_semantics<parallel>], iteration_bounds = array<i64: 7>, scalar_prefetch = 0 : i64, scratch_operands = 0 : i64, tpu.core_type = #tpu.core_type<tc>, window_params = [{transform_indices = @transform_0, window_bounds = array<i64: 256, 32>}, {pipeline_mode = #tpu.pipeline_mode<synchronous>, transform_indices = @transform_1, window_bounds = array<i64: 32, 128>}, {pipeline_mode = #tpu.pipeline_mode<synchronous>, transform_indices = @transform_2, window_bounds = array<i64: 1, 128>}, {transform_indices = @transform_3, window_bounds = array<i64: 256, 128>}]} {
    %c0 = arith.constant 0 : index
    %c0_0 = arith.constant 0 : index
    %0 = vector.load %arg1[%c0, %c0_0] : memref<256x32xbf16, #tpu.memory_space<vmem>>, vector<256x32xbf16>
    %c0_1 = arith.constant 0 : index
    %c0_2 = arith.constant 0 : index
    %1 = vector.load %arg2[%c0_1, %c0_2] : memref<32x128xbf16, #tpu.memory_space<vmem>>, vector<32x128xbf16>
    %cst = arith.constant dense<0.000000e+00> : vector<256x128xf32>
    %2 = tpu.matmul %0, %1, %cst {dimension_numbers = #tpu.dot_dimension_numbers<[1], [0], [0], [1], [0, 0, 1, 1], [], []>} : vector<256x32xbf16>, vector<32x128xbf16>, vector<256x128xf32> -> vector<256x128xf32>
    %c0_3 = arith.constant 0 : index
    %c0_4 = arith.constant 0 : index
    %3 = vector.load %arg3[%c0_3, %c0_4] : memref<1x128xf32, #tpu.memory_space<vmem>>, vector<1x128xf32>
    %4 = vector.broadcast %3 : vector<1x128xf32> to vector<256x128xf32>
    %5 = arith.addf %2, %4 : vector<256x128xf32>
    %cst_5 = arith.constant 0.000000e+00 : f32
    %6 = vector.broadcast %cst_5 : f32 to vector<256x128xf32>
    %7 = arith.maximumf %5, %6 : vector<256x128xf32>
    %c0_6 = arith.constant 0 : index
    %c0_7 = arith.constant 0 : index
    %8 = vector.load %arg4[%c0_6, %c0_7] : memref<256x128xf32, #tpu.memory_space<vmem>>, vector<256x128xf32>
    tpu.vector_store %arg4[%c0_6, %c0_7], %7 {strides = array<i32>} : memref<256x128xf32, #tpu.memory_space<vmem>>, vector<256x128xf32>,
    return
  }
  func.func @transform_0(%arg0: i32) -> (i32, i32) {
    %c0_i32 = arith.constant 0 : i32
    %c0_i32_0 = arith.constant 0 : i32
    return %arg0, %c0_i32 : i32, i32
  }
  func.func @transform_1(%arg0: i32) -> (i32, i32) {
    %c0_i32 = arith.constant 0 : i32
    %c0_i32_0 = arith.constant 0 : i32
    %c0_i32_1 = arith.constant 0 : i32
    return %c0_i32, %c0_i32_0 : i32, i32
  }
  func.func @transform_2(%arg0: i32) -> (i32, i32) {
    %c0_i32 = arith.constant 0 : i32
    %c0_i32_0 = arith.constant 0 : i32
    %c0_i32_1 = arith.constant 0 : i32
    return %c0_i32, %c0_i32_0 : i32, i32
  }
  func.func @transform_3(%arg0: i32) -> (i32, i32) {
    %c0_i32 = arith.constant 0 : i32
    %c0_i32_0 = arith.constant 0 : i32
    return %arg0, %c0_i32 : i32, i32
  }
}

module attributes {stable_mosaic.version = 11 : i64} {
  func.func @_max4_kernel(%arg0: i32, %arg1: memref<32x512xf32, #tpu.memory_space<vmem>>, %arg2: memref<32x512xf32, #tpu.memory_space<vmem>>, %arg3: memref<32x512xf32, #tpu.memory_space<vmem>>, %arg4: memref<32x512xf32, #tpu.memory_space<vmem>>, %arg5: memref<32x512xf32, #tpu.memory_space<vmem>>) attributes {dimension_semantics = [#tpu.dimension_semantics<parallel>], iteration_bounds = array<i64: 1>, scalar_prefetch = 0 : i64, scratch_operands = 0 : i64, tpu.core_type = #tpu.core_type<tc>, window_params = [{transform_indices = @transform_0, window_bounds = array<i64: 32, 512>}, {transform_indices = @transform_1, window_bounds = array<i64: 32, 512>}, {transform_indices = @transform_2, window_bounds = array<i64: 32, 512>}, {transform_indices = @transform_3, window_bounds = array<i64: 32, 512>}, {transform_indices = @transform_4, window_bounds = array<i64: 32, 512>}]} {
    %c0 = arith.constant 0 : index
    %c0_0 = arith.constant 0 : index
    %0 = vector.load %arg1[%c0, %c0_0] : memref<32x512xf32, #tpu.memory_space<vmem>>, vector<32x512xf32>
    %c0_1 = arith.constant 0 : index
    %c0_2 = arith.constant 0 : index
    %1 = vector.load %arg2[%c0_1, %c0_2] : memref<32x512xf32, #tpu.memory_space<vmem>>, vector<32x512xf32>
    %2 = arith.maximumf %0, %1 : vector<32x512xf32>
    %c0_3 = arith.constant 0 : index
    %c0_4 = arith.constant 0 : index
    %3 = vector.load %arg3[%c0_3, %c0_4] : memref<32x512xf32, #tpu.memory_space<vmem>>, vector<32x512xf32>
    %c0_5 = arith.constant 0 : index
    %c0_6 = arith.constant 0 : index
    %4 = vector.load %arg4[%c0_5, %c0_6] : memref<32x512xf32, #tpu.memory_space<vmem>>, vector<32x512xf32>
    %5 = arith.maximumf %3, %4 : vector<32x512xf32>
    %6 = arith.maximumf %2, %5 : vector<32x512xf32>
    %c0_7 = arith.constant 0 : index
    %c0_8 = arith.constant 0 : index
    %7 = vector.load %arg5[%c0_7, %c0_8] : memref<32x512xf32, #tpu.memory_space<vmem>>, vector<32x512xf32>
    tpu.vector_store %arg5[%c0_7, %c0_8], %6 {strides = array<i32>} : memref<32x512xf32, #tpu.memory_space<vmem>>, vector<32x512xf32>,
    return
  }
  func.func @transform_0(%arg0: i32) -> (i32, i32) {
    %c0_i32 = arith.constant 0 : i32
    %c0_i32_0 = arith.constant 0 : i32
    return %arg0, %c0_i32 : i32, i32
  }
  func.func @transform_1(%arg0: i32) -> (i32, i32) {
    %c0_i32 = arith.constant 0 : i32
    %c0_i32_0 = arith.constant 0 : i32
    return %arg0, %c0_i32 : i32, i32
  }
  func.func @transform_2(%arg0: i32) -> (i32, i32) {
    %c0_i32 = arith.constant 0 : i32
    %c0_i32_0 = arith.constant 0 : i32
    return %arg0, %c0_i32 : i32, i32
  }
  func.func @transform_3(%arg0: i32) -> (i32, i32) {
    %c0_i32 = arith.constant 0 : i32
    %c0_i32_0 = arith.constant 0 : i32
    return %arg0, %c0_i32 : i32, i32
  }
  func.func @transform_4(%arg0: i32) -> (i32, i32) {
    %c0_i32 = arith.constant 0 : i32
    %c0_i32_0 = arith.constant 0 : i32
    return %arg0, %c0_i32 : i32, i32
  }
}

module attributes {stable_mosaic.version = 11 : i64} {
  func.func @_conv_mm_kernel(%arg0: i32, %arg1: memref<256x288xbf16, #tpu.memory_space<vmem>>, %arg2: memref<288x128xbf16, #tpu.memory_space<vmem>>, %arg3: memref<1x128xf32, #tpu.memory_space<vmem>>, %arg4: memref<256x128xf32, #tpu.memory_space<vmem>>) attributes {dimension_semantics = [#tpu.dimension_semantics<parallel>], iteration_bounds = array<i64: 2>, scalar_prefetch = 0 : i64, scratch_operands = 0 : i64, tpu.core_type = #tpu.core_type<tc>, window_params = [{transform_indices = @transform_0, window_bounds = array<i64: 256, 288>}, {pipeline_mode = #tpu.pipeline_mode<synchronous>, transform_indices = @transform_1, window_bounds = array<i64: 288, 128>}, {pipeline_mode = #tpu.pipeline_mode<synchronous>, transform_indices = @transform_2, window_bounds = array<i64: 1, 128>}, {transform_indices = @transform_3, window_bounds = array<i64: 256, 128>}]} {
    %c0 = arith.constant 0 : index
    %c0_0 = arith.constant 0 : index
    %0 = vector.load %arg1[%c0, %c0_0] : memref<256x288xbf16, #tpu.memory_space<vmem>>, vector<256x288xbf16>
    %c0_1 = arith.constant 0 : index
    %c0_2 = arith.constant 0 : index
    %1 = vector.load %arg2[%c0_1, %c0_2] : memref<288x128xbf16, #tpu.memory_space<vmem>>, vector<288x128xbf16>
    %cst = arith.constant dense<0.000000e+00> : vector<256x128xf32>
    %2 = tpu.matmul %0, %1, %cst {dimension_numbers = #tpu.dot_dimension_numbers<[1], [0], [0], [1], [0, 0, 1, 1], [], []>} : vector<256x288xbf16>, vector<288x128xbf16>, vector<256x128xf32> -> vector<256x128xf32>
    %c0_3 = arith.constant 0 : index
    %c0_4 = arith.constant 0 : index
    %3 = vector.load %arg3[%c0_3, %c0_4] : memref<1x128xf32, #tpu.memory_space<vmem>>, vector<1x128xf32>
    %4 = vector.broadcast %3 : vector<1x128xf32> to vector<256x128xf32>
    %5 = arith.addf %2, %4 : vector<256x128xf32>
    %cst_5 = arith.constant 0.000000e+00 : f32
    %6 = vector.broadcast %cst_5 : f32 to vector<256x128xf32>
    %7 = arith.maximumf %5, %6 : vector<256x128xf32>
    %c0_6 = arith.constant 0 : index
    %c0_7 = arith.constant 0 : index
    %8 = vector.load %arg4[%c0_6, %c0_7] : memref<256x128xf32, #tpu.memory_space<vmem>>, vector<256x128xf32>
    tpu.vector_store %arg4[%c0_6, %c0_7], %7 {strides = array<i32>} : memref<256x128xf32, #tpu.memory_space<vmem>>, vector<256x128xf32>,
    return
  }
  func.func @transform_0(%arg0: i32) -> (i32, i32) {
    %c0_i32 = arith.constant 0 : i32
    %c0_i32_0 = arith.constant 0 : i32
    return %arg0, %c0_i32 : i32, i32
  }
  func.func @transform_1(%arg0: i32) -> (i32, i32) {
    %c0_i32 = arith.constant 0 : i32
    %c0_i32_0 = arith.constant 0 : i32
    %c0_i32_1 = arith.constant 0 : i32
    return %c0_i32, %c0_i32_0 : i32, i32
  }
  func.func @transform_2(%arg0: i32) -> (i32, i32) {
    %c0_i32 = arith.constant 0 : i32
    %c0_i32_0 = arith.constant 0 : i32
    %c0_i32_1 = arith.constant 0 : i32
    return %c0_i32, %c0_i32_0 : i32, i32
  }
  func.func @transform_3(%arg0: i32) -> (i32, i32) {
    %c0_i32 = arith.constant 0 : i32
    %c0_i32_0 = arith.constant 0 : i32
    return %arg0, %c0_i32 : i32, i32
  }
}

module attributes {stable_mosaic.version = 11 : i64} {
  func.func @_max4_kernel(%arg0: i32, %arg1: memref<16x512xf32, #tpu.memory_space<vmem>>, %arg2: memref<16x512xf32, #tpu.memory_space<vmem>>, %arg3: memref<16x512xf32, #tpu.memory_space<vmem>>, %arg4: memref<16x512xf32, #tpu.memory_space<vmem>>, %arg5: memref<16x512xf32, #tpu.memory_space<vmem>>) attributes {dimension_semantics = [#tpu.dimension_semantics<parallel>], iteration_bounds = array<i64: 1>, scalar_prefetch = 0 : i64, scratch_operands = 0 : i64, tpu.core_type = #tpu.core_type<tc>, window_params = [{transform_indices = @transform_0, window_bounds = array<i64: 16, 512>}, {transform_indices = @transform_1, window_bounds = array<i64: 16, 512>}, {transform_indices = @transform_2, window_bounds = array<i64: 16, 512>}, {transform_indices = @transform_3, window_bounds = array<i64: 16, 512>}, {transform_indices = @transform_4, window_bounds = array<i64: 16, 512>}]} {
    %c0 = arith.constant 0 : index
    %c0_0 = arith.constant 0 : index
    %0 = vector.load %arg1[%c0, %c0_0] : memref<16x512xf32, #tpu.memory_space<vmem>>, vector<16x512xf32>
    %c0_1 = arith.constant 0 : index
    %c0_2 = arith.constant 0 : index
    %1 = vector.load %arg2[%c0_1, %c0_2] : memref<16x512xf32, #tpu.memory_space<vmem>>, vector<16x512xf32>
    %2 = arith.maximumf %0, %1 : vector<16x512xf32>
    %c0_3 = arith.constant 0 : index
    %c0_4 = arith.constant 0 : index
    %3 = vector.load %arg3[%c0_3, %c0_4] : memref<16x512xf32, #tpu.memory_space<vmem>>, vector<16x512xf32>
    %c0_5 = arith.constant 0 : index
    %c0_6 = arith.constant 0 : index
    %4 = vector.load %arg4[%c0_5, %c0_6] : memref<16x512xf32, #tpu.memory_space<vmem>>, vector<16x512xf32>
    %5 = arith.maximumf %3, %4 : vector<16x512xf32>
    %6 = arith.maximumf %2, %5 : vector<16x512xf32>
    %c0_7 = arith.constant 0 : index
    %c0_8 = arith.constant 0 : index
    %7 = vector.load %arg5[%c0_7, %c0_8] : memref<16x512xf32, #tpu.memory_space<vmem>>, vector<16x512xf32>
    tpu.vector_store %arg5[%c0_7, %c0_8], %6 {strides = array<i32>} : memref<16x512xf32, #tpu.memory_space<vmem>>, vector<16x512xf32>,
    return
  }
  func.func @transform_0(%arg0: i32) -> (i32, i32) {
    %c0_i32 = arith.constant 0 : i32
    %c0_i32_0 = arith.constant 0 : i32
    return %arg0, %c0_i32 : i32, i32
  }
  func.func @transform_1(%arg0: i32) -> (i32, i32) {
    %c0_i32 = arith.constant 0 : i32
    %c0_i32_0 = arith.constant 0 : i32
    return %arg0, %c0_i32 : i32, i32
  }
  func.func @transform_2(%arg0: i32) -> (i32, i32) {
    %c0_i32 = arith.constant 0 : i32
    %c0_i32_0 = arith.constant 0 : i32
    return %arg0, %c0_i32 : i32, i32
  }
  func.func @transform_3(%arg0: i32) -> (i32, i32) {
    %c0_i32 = arith.constant 0 : i32
    %c0_i32_0 = arith.constant 0 : i32
    return %arg0, %c0_i32 : i32, i32
  }
  func.func @transform_4(%arg0: i32) -> (i32, i32) {
    %c0_i32 = arith.constant 0 : i32
    %c0_i32_0 = arith.constant 0 : i32
    return %arg0, %c0_i32 : i32, i32
  }
}

module attributes {stable_mosaic.version = 11 : i64} {
  func.func @_fused_fc_kernel(%arg0: i32, %arg1: i32, %arg2: memref<8x256xbf16, #tpu.memory_space<vmem>>, %arg3: memref<256x1024xbf16, #tpu.memory_space<vmem>>, %arg4: memref<1x1024xf32, #tpu.memory_space<vmem>>, %arg5: memref<1024x128xbf16, #tpu.memory_space<vmem>>, %arg6: memref<1x128xf32, #tpu.memory_space<vmem>>, %arg7: memref<8x128xf32, #tpu.memory_space<vmem>>, %arg8: memref<8x1024xf32, #tpu.memory_space<vmem>>) attributes {dimension_semantics = [#tpu.dimension_semantics<parallel>, #tpu.dimension_semantics<arbitrary>], iteration_bounds = array<i64: 1, 13>, scalar_prefetch = 0 : i64, scratch_operands = 1 : i64, tpu.core_type = #tpu.core_type<tc>, window_params = [{transform_indices = @transform_0, window_bounds = array<i64: 8, 256>}, {transform_indices = @transform_1, window_bounds = array<i64: 256, 1024>}, {pipeline_mode = #tpu.pipeline_mode<synchronous>, transform_indices = @transform_2, window_bounds = array<i64: 1, 1024>}, {pipeline_mode = #tpu.pipeline_mode<synchronous>, transform_indices = @transform_3, window_bounds = array<i64: 1024, 128>}, {pipeline_mode = #tpu.pipeline_mode<synchronous>, transform_indices = @transform_4, window_bounds = array<i64: 1, 128>}, {transform_indices = @transform_5, window_bounds = array<i64: 8, 128>}]} {
    %c0_i32 = arith.constant 0 : i32
    %0 = arith.cmpi eq, %arg1, %c0_i32 : i32
    %1 = arith.extui %0 : i1 to i32
    %c0_i32_0 = arith.constant 0 : i32
    %2 = arith.cmpi ne, %1, %c0_i32_0 : i32
    scf.if %2 {
      %cst_9 = arith.constant 0.000000e+00 : f32
      %12 = vector.broadcast %cst_9 : f32 to vector<8x1024xf32>
      %c0_10 = arith.constant 0 : index
      %c0_11 = arith.constant 0 : index
      %13 = vector.load %arg8[%c0_10, %c0_11] : memref<8x1024xf32, #tpu.memory_space<vmem>>, vector<8x1024xf32>
      tpu.vector_store %arg8[%c0_10, %c0_11], %12 {strides = array<i32>} : memref<8x1024xf32, #tpu.memory_space<vmem>>, vector<8x1024xf32>,
    } else {
    }
    %c0 = arith.constant 0 : index
    %c0_1 = arith.constant 0 : index
    %3 = vector.load %arg8[%c0, %c0_1] : memref<8x1024xf32, #tpu.memory_space<vmem>>, vector<8x1024xf32>
    %c0_2 = arith.constant 0 : index
    %c0_3 = arith.constant 0 : index
    %4 = vector.load %arg2[%c0_2, %c0_3] : memref<8x256xbf16, #tpu.memory_space<vmem>>, vector<8x256xbf16>
    %c0_4 = arith.constant 0 : index
    %c0_5 = arith.constant 0 : index
    %5 = vector.load %arg3[%c0_4, %c0_5] : memref<256x1024xbf16, #tpu.memory_space<vmem>>, vector<256x1024xbf16>
    %cst = arith.constant dense<0.000000e+00> : vector<8x1024xf32>
    %6 = tpu.matmul %4, %5, %cst {dimension_numbers = #tpu.dot_dimension_numbers<[1], [0], [0], [1], [0, 0, 1, 1], [], []>} : vector<8x256xbf16>, vector<256x1024xbf16>, vector<8x1024xf32> -> vector<8x1024xf32>
    %7 = arith.addf %3, %6 : vector<8x1024xf32>
    %c0_6 = arith.constant 0 : index
    %c0_7 = arith.constant 0 : index
    %8 = vector.load %arg8[%c0_6, %c0_7] : memref<8x1024xf32, #tpu.memory_space<vmem>>, vector<8x1024xf32>
    tpu.vector_store %arg8[%c0_6, %c0_7], %7 {strides = array<i32>} : memref<8x1024xf32, #tpu.memory_space<vmem>>, vector<8x1024xf32>,
    %c12_i32 = arith.constant 12 : i32
    %9 = arith.cmpi eq, %arg1, %c12_i32 : i32
    %10 = arith.extui %9 : i1 to i32
    %c0_i32_8 = arith.constant 0 : i32
    %11 = arith.cmpi ne, %10, %c0_i32_8 : i32
    scf.if %11 {
      %c0_9 = arith.constant 0 : index
      %c0_10 = arith.constant 0 : index
      %12 = vector.load %arg8[%c0_9, %c0_10] : memref<8x1024xf32, #tpu.memory_space<vmem>>, vector<8x1024xf32>
      %c0_11 = arith.constant 0 : index
      %c0_12 = arith.constant 0 : index
      %13 = vector.load %arg4[%c0_11, %c0_12] : memref<1x1024xf32, #tpu.memory_space<vmem>>, vector<1x1024xf32>
      %14 = vector.broadcast %13 : vector<1x1024xf32> to vector<8x1024xf32>
      %15 = arith.addf %12, %14 : vector<8x1024xf32>
      %16 = arith.truncf %15 : vector<8x1024xf32> to vector<8x1024xbf16>
      %c0_13 = arith.constant 0 : index
      %c0_14 = arith.constant 0 : index
      %17 = vector.load %arg5[%c0_13, %c0_14] : memref<1024x128xbf16, #tpu.memory_space<vmem>>, vector<1024x128xbf16>
      %cst_15 = arith.constant dense<0.000000e+00> : vector<8x128xf32>
      %18 = tpu.matmul %16, %17, %cst_15 {dimension_numbers = #tpu.dot_dimension_numbers<[1], [0], [0], [1], [0, 0, 1, 1], [], []>} : vector<8x1024xbf16>, vector<1024x128xbf16>, vector<8x128xf32> -> vector<8x128xf32>
      %c0_16 = arith.constant 0 : index
      %c0_17 = arith.constant 0 : index
      %19 = vector.load %arg6[%c0_16, %c0_17] : memref<1x128xf32, #tpu.memory_space<vmem>>, vector<1x128xf32>
      %20 = vector.broadcast %19 : vector<1x128xf32> to vector<8x128xf32>
      %21 = arith.addf %18, %20 : vector<8x128xf32>
      %c0_18 = arith.constant 0 : index
      %c0_19 = arith.constant 0 : index
      %22 = vector.load %arg7[%c0_18, %c0_19] : memref<8x128xf32, #tpu.memory_space<vmem>>, vector<8x128xf32>
      tpu.vector_store %arg7[%c0_18, %c0_19], %21 {strides = array<i32>} : memref<8x128xf32, #tpu.memory_space<vmem>>, vector<8x128xf32>,
    } else {
    }
    return
  }
  func.func @transform_0(%arg0: i32, %arg1: i32) -> (i32, i32) {
    %c0_i32 = arith.constant 0 : i32
    return %arg0, %arg1 : i32, i32
  }
  func.func @transform_1(%arg0: i32, %arg1: i32) -> (i32, i32) {
    %c0_i32 = arith.constant 0 : i32
    %c0_i32_0 = arith.constant 0 : i32
    return %arg1, %c0_i32 : i32, i32
  }
  func.func @transform_2(%arg0: i32, %arg1: i32) -> (i32, i32) {
    %c0_i32 = arith.constant 0 : i32
    %c0_i32_0 = arith.constant 0 : i32
    %c0_i32_1 = arith.constant 0 : i32
    return %c0_i32, %c0_i32_0 : i32, i32
  }
  func.func @transform_3(%arg0: i32, %arg1: i32) -> (i32, i32) {
    %c0_i32 = arith.constant 0 : i32
    %c0_i32_0 = arith.constant 0 : i32
    %c0_i32_1 = arith.constant 0 : i32
    return %c0_i32, %c0_i32_0 : i32, i32
  }
  func.func @transform_4(%arg0: i32, %arg1: i32) -> (i32, i32) {
    %c0_i32 = arith.constant 0 : i32
    %c0_i32_0 = arith.constant 0 : i32
    %c0_i32_1 = arith.constant 0 : i32
    return %c0_i32, %c0_i32_0 : i32, i32
  }
  func.func @transform_5(%arg0: i32, %arg1: i32) -> (i32, i32) {
    %c0_i32 = arith.constant 0 : i32
    %c0_i32_0 = arith.constant 0 : i32
    return %arg0, %c0_i32 : i32, i32
  }
}

</mosaic_0001>

<llo_original>
// kernel: fashion_cnn_forward.5
$region0: #{fashion_cnn_forward.5}
  #allocation0 [shape = 'u32[]', space=smem, size = 0x4, offset = 0x4, fixed_abs, tag = 'smem constant byte address 0x4 - core index']
  #allocation1 [shape = 'u32[144,128]{1,0:T(1,128)}', space=vmem, size = 0x12000, scoped, tag = 'internal scratch']
  %s0 = inlined_call_operand.vmem [shape: bf16[1792,32], index: 0, kind: input, shape index: {}]
  %s1 = inlined_call_operand.hbm [shape: bf16[32,128], index: 1, kind: input, shape index: {}]
  %s2 = inlined_call_operand.hbm [shape: f32[1,128], index: 2, kind: input, shape index: {}]
  %s3 = inlined_call_operand.vmem [shape: f32[1792,128], index: 3, kind: output, shape index: {}]
  %s4 = sld [smem:[#allocation0]]
  $region53: #{fashion_cnn_forward.5} parent=0
    _
  %s6 = ssub.s32 1, %s4
  %s7 = scalar_select 0, %s6, %s4
  $region1: #{fashion_cnn_forward.5} parent=0
    #allocation2 [shape = 'u8[8192]{0}', space=vmem, size = 0x2000, scoped, tag = 'input window, operand 1, single buffered']
    #allocation3 [shape = 's32[2]{0}', space=sflag, size = 0x8, scoped, tag = 'scoped memory for fashion_cnn_forward.5']
    #allocation4 [shape = 'u8[512]{0}', space=vmem, size = 0x400, scoped, tag = 'input window, operand 2, single buffered']
    #allocation5 [shape = 's32[1]{0}', space=sflag, size = 0x4, scoped, tag = 'scoped memory for fashion_cnn_forward.5']
    %8 = vsyncpa [#allocation3], 0
    %9 = vsyncpa [#allocation5], 0
    loop: start=0, step=1, limit=9
    $region2: #{fashion_cnn_forward.5} parent=1 // loop_pre_header
      _
    $region3: #{fashion_cnn_forward.5} parent=1 // loop_header
      %s11 = sphi 0, %s15
      %p12 = scmp.ge.s32.totalorder %s11, 9
      %s21 = sphi 0, %s23
      %s24 = sphi 0, %s21
      %s25 = sphi 0, %s24
      %s41 = sphi 0, %s25
      %s45 = sphi 0, %s45
      %s47 = sphi 0, %s45
      %s48 = sphi 0, %s47
      %s62 = sphi 0, %s48
      %s66 = sphi 0, %s66
      %s68 = sphi 0, %s66
      %s69 = sphi 0, %s68
      %s83 = sphi 0, %s69
      %s89 = sphi 0, %s91
      %s92 = sphi 0, %s89
      %s93 = sphi 0, %s92
      %s109 = sphi 0, %s93
    $region4: #{fashion_cnn_forward.5} parent=1 // loop_header_branch
      %14 = sbr.rel (%p12) target = $region8
    $region5: #{fashion_cnn_forward.5} parent=1 // loop_body
      %s16 = ssub.s32 %s11, 1
      %s17 = ssub.s32 %s11, 2
      %s18 = sadd.s32 %s11, 1
      %s19 = ssub.s32 %s11, %s18
      %p20 = scmp.eq.s32.totalorder %s19, 0
      %s22 = sadd.s32 %s21, 1
      %s23 = scalar_select %p20, %s21, %s22
      %p26 = pneg %p20
      %p27 = scmp.eq.s32.totalorder %s11, 6
      %p28 = por %p26, %p27
      %p29 = scmp.ne.s32.totalorder %s21, %s24
      %p30 = scmp.eq.s32.totalorder %s11, 0
      %p31 = por %p29, %p30
      %p32 = scmp.ne.s32.totalorder %s21, %s24
      %p33 = scmp.eq.s32.totalorder %s16, 6
      %p34 = por %p32, %p33
      %p35 = scmp.ne.s32.totalorder %s24, %s25
      %p36 = scmp.eq.s32.totalorder %s16, 0
      %p37 = por %p35, %p36
      %p38 = scmp.ne.s32.totalorder %s24, %s25
      %p39 = scmp.eq.s32.totalorder %s17, 6
      %p40 = por %p38, %p39
      %p42 = scmp.ne.s32.totalorder %s25, %s41
      %p43 = scmp.eq.s32.totalorder %s17, 0
      %p44 = por %p42, %p43
      %s46 = sadd.s32 %s45, 1
      %p49 = scmp.eq.s32.totalorder %s11, 6
      %p50 = scmp.ne.s32.totalorder %s45, %s47
      %p51 = scmp.eq.s32.totalorder %s11, 0
      %p52 = por %p50, %p51
      %p53 = scmp.ne.s32.totalorder %s45, %s47
      %p54 = scmp.eq.s32.totalorder %s16, 6
      %p55 = por %p53, %p54
      %p56 = scmp.ne.s32.totalorder %s47, %s48
      %p57 = scmp.eq.s32.totalorder %s16, 0
      %p58 = por %p56, %p57
      %p59 = scmp.ne.s32.totalorder %s47, %s48
      %p60 = scmp.eq.s32.totalorder %s17, 6
      %p61 = por %p59, %p60
      %p63 = scmp.ne.s32.totalorder %s48, %s62
      %p64 = scmp.eq.s32.totalorder %s17, 0
      %p65 = por %p63, %p64
      %s67 = sadd.s32 %s66, 1
      %p70 = scmp.eq.s32.totalorder %s11, 6
      %p71 = scmp.ne.s32.totalorder %s66, %s68
      %p72 = scmp.eq.s32.totalorder %s11, 0
      %p73 = por %p71, %p72
      %p74 = scmp.ne.s32.totalorder %s66, %s68
      %p75 = scmp.eq.s32.totalorder %s16, 6
      %p76 = por %p74, %p75
      %p77 = scmp.ne.s32.totalorder %s68, %s69
      %p78 = scmp.eq.s32.totalorder %s16, 0
      %p79 = por %p77, %p78
      %p80 = scmp.ne.s32.totalorder %s68, %s69
      %p81 = scmp.eq.s32.totalorder %s17, 6
      %p82 = por %p80, %p81
      %p84 = scmp.ne.s32.totalorder %s69, %s83
      %p85 = scmp.eq.s32.totalorder %s17, 0
      %p86 = por %p84, %p85
      %s87 = ssub.s32 %s11, %s18
      %p88 = scmp.eq.s32.totalorder %s87, 0
      %s90 = sadd.s32 %s89, 1
      %s91 = scalar_select %p88, %s89, %s90
      %p94 = pneg %p88
      %p95 = scmp.eq.s32.totalorder %s11, 6
      %p96 = por %p94, %p95
      %p97 = scmp.ne.s32.totalorder %s89, %s92
      %p98 = scmp.eq.s32.totalorder %s11, 0
      %p99 = por %p97, %p98
      %p100 = scmp.ne.s32.totalorder %s89, %s92
      %p101 = scmp.eq.s32.totalorder %s16, 6
      %p102 = por %p100, %p101
      %p103 = scmp.ne.s32.totalorder %s92, %s93
      %p104 = scmp.eq.s32.totalorder %s16, 0
      %p105 = por %p103, %p104
      %p106 = scmp.ne.s32.totalorder %s92, %s93
      %p107 = scmp.eq.s32.totalorder %s17, 6
      %p108 = por %p106, %p107
      %p110 = scmp.ne.s32.totalorder %s93, %s109
      %p111 = scmp.eq.s32.totalorder %s17, 0
      %p112 = por %p110, %p111
      %p113 = scmp.le.s32.totalorder 1, %s11
      %p114 = scmp.lt.s32.totalorder %s11, 8
      %p115 = pnand %p113, %p114
      %p116 = pneg %p115
      // Predicated region
      $region9: #{fashion_cnn_forward.5} parent=5 // pred_check
        _
      $region10: #{fashion_cnn_forward.5} parent=5 // pred_check_branch
        %118 = sbr.rel (%p115) target = $region12
      $region11: #{fashion_cnn_forward.5} parent=5 // pred_region
        %s119 = ssub.s32 %s11, 1
        // Predicated region
        $region13: #{fashion_cnn_forward.5} parent=11 // pred_check
          %p120 = pneg %p58
        $region14: #{fashion_cnn_forward.5} parent=11 // pred_check_branch
          %122 = sbr.rel (%p120) target = $region16
        $region15: #{fashion_cnn_forward.5} parent=11 // pred_region
          %s124 = ssub.s32 256, 256
          %125 = vsyncadd [#allocation3], %s124
          %s126 = sshll.u32 [#allocation2], 4
          %s127 = int_to_ptr.vmem [resolvable:$true] %s126
          %132 = dma.hbm_to_vmem [thread:$0]  %s1, 256, %s127, [#allocation3], 64, 64, 4
        $region16: #{fashion_cnn_forward.5} parent=11 // pred_fallthru
          _
        // Predicated region
        $region17: #{fashion_cnn_forward.5} parent=11 // pred_check
          %p133 = pneg %p79
        $region18: #{fashion_cnn_forward.5} parent=11 // pred_check_branch
          %135 = sbr.rel (%p133) target = $region20
        $region19: #{fashion_cnn_forward.5} parent=11 // pred_region
          %s137 = ssub.s32 16, 16
          %138 = vsyncadd [#allocation5], %s137
          %s140 = sshll.u32 [#allocation4], 4
          %s141 = int_to_ptr.vmem [resolvable:$true] %s140
          %143 = dma.hbm_to_vmem [thread:$0]  %s2, 16, %s141, [#allocation5]
        $region20: #{fashion_cnn_forward.5} parent=11 // pred_fallthru
          _
      $region12: #{fashion_cnn_forward.5} parent=5 // pred_fallthru
        _
      %p144 = scmp.lt.s32.totalorder %s11, 7
      // Predicated region
      $region21: #{fashion_cnn_forward.5} parent=5 // pred_check
        %p145 = pneg %p144
      $region22: #{fashion_cnn_forward.5} parent=5 // pred_check_branch
        %147 = sbr.rel (%p145) target = $region24
      $region23: #{fashion_cnn_forward.5} parent=5 // pred_region
        // Predicated region
        $region25: #{fashion_cnn_forward.5} parent=23 // pred_check
          %p148 = pneg %p31
        $region26: #{fashion_cnn_forward.5} parent=23 // pred_check_branch
          %150 = sbr.rel (%p148) target = $region28
        $region27: #{fashion_cnn_forward.5} parent=23 // pred_region
          %s151 = smul.u32 32, %s11
          %p152 = scmp.lt.s32.totalorder %s151, 223
          %s153 = scalar_select %p152, %s151, 223
          %s154 = smul.addr %s153, 4
          %s155 = scalar_lea.vmem %s0, %s154
          %s156 = smul.u32 32, %s11
        $region28: #{fashion_cnn_forward.5} parent=23 // pred_fallthru
          _
      $region24: #{fashion_cnn_forward.5} parent=5 // pred_fallthru
        _
      %p157 = scmp.le.s32.totalorder 1, %s11
      %p158 = scmp.lt.s32.totalorder %s11, 8
      %p159 = pnand %p157, %p158
      %p160 = pneg %p159
      // Predicated region
      $region29: #{fashion_cnn_forward.5} parent=5 // pred_check
        _
      $region30: #{fashion_cnn_forward.5} parent=5 // pred_check_branch
        %162 = sbr.rel (%p159) target = $region32
      $region31: #{fashion_cnn_forward.5} parent=5 // pred_region
        %s163 = ssub.s32 %s11, 1
        // Predicated region
        $region33: #{fashion_cnn_forward.5} parent=31 // pred_check
          %p164 = pneg %p58
        $region34: #{fashion_cnn_forward.5} parent=31 // pred_check_branch
          %166 = sbr.rel (%p164) target = $region36
        $region35: #{fashion_cnn_forward.5} parent=31 // pred_region
          %167 = dma.done [#allocation3], 256
        $region36: #{fashion_cnn_forward.5} parent=31 // pred_fallthru
          _
        // Predicated region
        $region37: #{fashion_cnn_forward.5} parent=31 // pred_check
          %p168 = pneg %p79
        $region38: #{fashion_cnn_forward.5} parent=31 // pred_check_branch
          %170 = sbr.rel (%p168) target = $region40
        $region39: #{fashion_cnn_forward.5} parent=31 // pred_region
          %171 = dma.done [#allocation5], 16
        $region40: #{fashion_cnn_forward.5} parent=31 // pred_fallthru
          _
        %s172 = smul.u32 32, %s16
        %p173 = scmp.lt.s32.totalorder %s172, 223
        %s174 = scalar_select %p173, %s172, 223
        %s175 = smul.addr %s174, 4
        %s176 = scalar_lea.vmem %s0, %s175
        %p177 = pneg %p37
        %p178 = pneg %p34
        %p179 = pneg %p58
        %p180 = pneg %p55
        %p181 = pneg %p79
        %p182 = pneg %p76
        %p183 = pneg %p105
        %p184 = pneg %p102
        %s185 = smul.u32 32, %s16
        %p186 = scmp.lt.s32.totalorder %s185, 223
        %s187 = scalar_select %p186, %s185, 223
        %s188 = smul.addr %s187, 8
        %s189 = scalar_lea.vmem %s3, %s188
        %s190 = smul.u32 32, %s16
        %p191 = scmp.lt.s32.totalorder %s190, 223
        %s192 = scalar_select %p191, %s190, 223
        %s193 = smul.addr %s192, 4
        %s194 = scalar_lea.vmem %s0, %s193
        %s195 = smul.u32 32, %s16
        %s196 = smul.u32 32, %s16
        %p197 = scmp.lt.s32.totalorder %s196, 223
        %s198 = scalar_select %p197, %s196, 223
        %s199 = smul.addr %s198, 8
        %s200 = scalar_lea.vmem %s3, %s199
        %s201 = smul.u32 32, %s16
        %v203 = vld [vmem:[%s194] sm:$0xf]
        %v204 = vld [vmem:[%s194 + $0x4] sm:$0xf]
        %v205 = vld [vmem:[%s194 + $0x8] sm:$0xf]
        %v206 = vld [vmem:[%s194 + $0xc] sm:$0xf]
        %v207 = vld [vmem:[%s194 + $0x10] sm:$0xf]
        %v208 = vld [vmem:[%s194 + $0x14] sm:$0xf]
        %v209 = vld [vmem:[%s194 + $0x18] sm:$0xf]
        %v210 = vld [vmem:[%s194 + $0x1c] sm:$0xf]
        %v211 = vld [vmem:[%s194 + $0x20] sm:$0xf]
        %v212 = vld [vmem:[%s194 + $0x24] sm:$0xf]
        %v213 = vld [vmem:[%s194 + $0x28] sm:$0xf]
        %v214 = vld [vmem:[%s194 + $0x2c] sm:$0xf]
        %v215 = vld [vmem:[%s194 + $0x30] sm:$0xf]
        %v216 = vld [vmem:[%s194 + $0x34] sm:$0xf]
        %v217 = vld [vmem:[%s194 + $0x38] sm:$0xf]
        %v218 = vld [vmem:[%s194 + $0x3c] sm:$0xf]
        %v219 = vld [vmem:[%s194 + $0x40] sm:$0xf]
        %v220 = vld [vmem:[%s194 + $0x44] sm:$0xf]
        %v221 = vld [vmem:[%s194 + $0x48] sm:$0xf]
        %v222 = vld [vmem:[%s194 + $0x4c] sm:$0xf]
        %v223 = vld [vmem:[%s194 + $0x50] sm:$0xf]
        %v224 = vld [vmem:[%s194 + $0x54] sm:$0xf]
        %v225 = vld [vmem:[%s194 + $0x58] sm:$0xf]
        %v226 = vld [vmem:[%s194 + $0x5c] sm:$0xf]
        %v227 = vld [vmem:[%s194 + $0x60] sm:$0xf]
        %v228 = vld [vmem:[%s194 + $0x64] sm:$0xf]
        %v229 = vld [vmem:[%s194 + $0x68] sm:$0xf]
        %v230 = vld [vmem:[%s194 + $0x6c] sm:$0xf]
        %v231 = vld [vmem:[%s194 + $0x70] sm:$0xf]
        %v232 = vld [vmem:[%s194 + $0x74] sm:$0xf]
        %v233 = vld [vmem:[%s194 + $0x78] sm:$0xf]
        %v234 = vld [vmem:[%s194 + $0x7c] sm:$0xf]
        %v235 = vld [vmem:[#allocation2] sm:$0xf]
        %v236 = vld [vmem:[#allocation2 + $0x4] sm:$0xf]
        %v237 = vld [vmem:[#allocation2 + $0x8] sm:$0xf]
        %v238 = vld [vmem:[#allocation2 + $0xc] sm:$0xf]
        %v239 = vld [vmem:[#allocation4] sm:$0x1]
        %v241 = vlaneseq
        %v242 = vshrl.u32 %v241, 7
        %v243 = vsub.s32 0, %v242
        %v244 = vrot.slane %v239, %v243
        %v278 = vunpack.c.l.b16 %v203
        %v279 = vunpack.c.l.b16 %v204
        %v280 = vunpack.c.l.b16 %v205
        %v281 = vunpack.c.l.b16 %v206
        %v282 = vunpack.c.l.b16 %v207
        %v283 = vunpack.c.l.b16 %v208
        %v284 = vunpack.c.l.b16 %v209
        %v285 = vunpack.c.l.b16 %v210
        %v286 = vunpack.c.l.b16 %v211
        %v287 = vunpack.c.l.b16 %v212
        %v288 = vunpack.c.l.b16 %v213
        %v289 = vunpack.c.l.b16 %v214
        %v290 = vunpack.c.l.b16 %v215
        %v291 = vunpack.c.l.b16 %v216
        %v292 = vunpack.c.l.b16 %v217
        %v293 = vunpack.c.l.b16 %v218
        %v294 = vunpack.c.l.b16 %v219
        %v295 = vunpack.c.l.b16 %v220
        %v296 = vunpack.c.l.b16 %v221
        %v297 = vunpack.c.l.b16 %v222
        %v298 = vunpack.c.l.b16 %v223
        %v299 = vunpack.c.l.b16 %v224
        %v300 = vunpack.c.l.b16 %v225
        %v301 = vunpack.c.l.b16 %v226
        %v302 = vunpack.c.l.b16 %v227
        %v303 = vunpack.c.l.b16 %v228
        %v304 = vunpack.c.l.b16 %v229
        %v305 = vunpack.c.l.b16 %v230
        %v306 = vunpack.c.l.b16 %v231
        %v307 = vunpack.c.l.b16 %v232
        %v308 = vunpack.c.l.b16 %v233
        %v309 = vunpack.c.l.b16 %v234
        %v310 = vpack.c.b16 %v279, %v278
        %v311 = vpack.c.b16 %v281, %v280
        %v312 = vpack.c.b16 %v283, %v282
        %v313 = vpack.c.b16 %v285, %v284
        %v314 = vpack.c.b16 %v287, %v286
        %v315 = vpack.c.b16 %v289, %v288
        %v316 = vpack.c.b16 %v291, %v290
        %v317 = vpack.c.b16 %v293, %v292
        %v318 = vpack.c.b16 %v295, %v294
        %v319 = vpack.c.b16 %v297, %v296
        %v320 = vpack.c.b16 %v299, %v298
        %v321 = vpack.c.b16 %v301, %v300
        %v322 = vpack.c.b16 %v303, %v302
        %v323 = vpack.c.b16 %v305, %v304
        %v324 = vpack.c.b16 %v307, %v306
        %v325 = vpack.c.b16 %v309, %v308
        %v330 = vunpack.c.l.b16 %v235
        %v331 = vunpack.c.l.b16 %v236
        %v332 = vunpack.c.l.b16 %v237
        %v333 = vunpack.c.l.b16 %v238
        %v334 = vpack.c.b16 %v331, %v330
        %v335 = vpack.c.b16 %v333, %v332
        %vm338 = vcmask 261120
        %v340 = vsel %vm338, %v310, 0
        %v343 = vsel %vm338, %v311, 0
        %v346 = vsel %vm338, %v312, 0
        %v349 = vsel %vm338, %v313, 0
        %v352 = vsel %vm338, %v314, 0
        %v355 = vsel %vm338, %v315, 0
        %v358 = vsel %vm338, %v316, 0
        %v361 = vsel %vm338, %v317, 0
        %v364 = vsel %vm338, %v318, 0
        %v367 = vsel %vm338, %v319, 0
        %v370 = vsel %vm338, %v320, 0
        %v373 = vsel %vm338, %v321, 0
        %v376 = vsel %vm338, %v322, 0
        %v379 = vsel %vm338, %v323, 0
        %v382 = vsel %vm338, %v324, 0
        %v385 = vsel %vm338, %v325, 0
        %387 = vmatprep.subr.bf16.mxu0 0
        %388 = vmatpush1.bf16.msra.mxu0 %v334
        %389 = vmatprep.subr.bf16.mxu0 0
        %390 = vmatpush1.bf16.msra.mxu0 %v335
        %391 = vmatprep.subr.bf16.mxu0 0
        %392 = vmatpush1.bf16.msra.mxu0 0
        %393 = vmatprep.subr.bf16.mxu0 0
        %394 = vmatpush1.bf16.msra.mxu0 0
        %395 = vmatprep.subr.bf16.mxu0 0
        %396 = vmatpush1.bf16.msra.mxu0 0
        %397 = vmatprep.subr.bf16.mxu0 0
        %398 = vmatpush1.bf16.msra.mxu0 0
        %399 = vmatprep.subr.bf16.mxu0 0
        %400 = vmatpush1.bf16.msra.mxu0 0
        %401 = vmatprep.subr.bf16.mxu0 0
        %402 = vmatpush1.bf16.msra.mxu0 0
        %403 = vmatprep.subr.bf16.mxu0 0
        %404 = vmatpush1.bf16.msra.mxu0 0
        %405 = vmatprep.subr.bf16.mxu0 0
        %406 = vmatpush1.bf16.msra.mxu0 0
        %407 = vmatprep.subr.bf16.mxu0 0
        %408 = vmatpush1.bf16.msra.mxu0 0
        %409 = vmatprep.subr.bf16.mxu0 0
        %410 = vmatpush1.bf16.msra.mxu0 0
        %411 = vmatprep.subr.bf16.mxu0 0
        %412 = vmatpush1.bf16.msra.mxu0 0
        %413 = vmatprep.subr.bf16.mxu0 0
        %414 = vmatpush1.bf16.msra.mxu0 0
        %415 = vmatprep.subr.bf16.mxu0 0
        %416 = vmatpush1.bf16.msra.mxu0 0
        %417 = vmatprep.subr.bf16.mxu0 0
        %418 = vmatpush1.bf16.msra.mxu0 0
        %419 = vmatprep.mubr.bf16.mxu0 0
        %420 = vmatmul.mubr.bf16.gmra.mrb[0].mxu0 %v340
        %v421 = vpop.f32.mrb[0].mxu0
        %v422 = vadd.f32 %v244, %v421
        %v423 = vpop.f32.mrb[0].mxu0
        %v424 = vpop.f32.mrb[0].mxu0
        %v425 = vadd.f32 %v244, %v424
        %v426 = vpop.f32.mrb[0].mxu0
        %427 = vmatprep.mubr.bf16.mxu0 0
        %428 = vmatmul.mubr.bf16.gmra.mrb[0].mxu0 %v343
        %v429 = vpop.f32.mrb[0].mxu0
        %v430 = vadd.f32 %v244, %v429
        %v431 = vpop.f32.mrb[0].mxu0
        %v432 = vpop.f32.mrb[0].mxu0
        %v433 = vadd.f32 %v244, %v432
        %v434 = vpop.f32.mrb[0].mxu0
        %435 = vmatprep.mubr.bf16.mxu0 0
        %436 = vmatmul.mubr.bf16.gmra.mrb[0].mxu0 %v346
        %v437 = vpop.f32.mrb[0].mxu0
        %v438 = vadd.f32 %v244, %v437
        %v439 = vpop.f32.mrb[0].mxu0
        %v440 = vpop.f32.mrb[0].mxu0
        %v441 = vadd.f32 %v244, %v440
        %v442 = vpop.f32.mrb[0].mxu0
        %443 = vmatprep.mubr.bf16.mxu0 0
        %444 = vmatmul.mubr.bf16.gmra.mrb[0].mxu0 %v349
        %v445 = vpop.f32.mrb[0].mxu0
        %v446 = vadd.f32 %v244, %v445
        %v447 = vpop.f32.mrb[0].mxu0
        %v448 = vpop.f32.mrb[0].mxu0
        %v449 = vadd.f32 %v244, %v448
        %v450 = vpop.f32.mrb[0].mxu0
        %451 = vmatprep.mubr.bf16.mxu0 0
        %452 = vmatmul.mubr.bf16.gmra.mrb[0].mxu0 %v352
        %v453 = vpop.f32.mrb[0].mxu0
        %v454 = vadd.f32 %v244, %v453
        %v455 = vpop.f32.mrb[0].mxu0
        %v456 = vpop.f32.mrb[0].mxu0
        %v457 = vadd.f32 %v244, %v456
        %v458 = vpop.f32.mrb[0].mxu0
        %459 = vmatprep.mubr.bf16.mxu0 0
        %460 = vmatmul.mubr.bf16.gmra.mrb[0].mxu0 %v355
        %v461 = vpop.f32.mrb[0].mxu0
        %v462 = vadd.f32 %v244, %v461
        %v463 = vpop.f32.mrb[0].mxu0
        %v464 = vpop.f32.mrb[0].mxu0
        %v465 = vadd.f32 %v244, %v464
        %v466 = vpop.f32.mrb[0].mxu0
        %467 = vmatprep.mubr.bf16.mxu0 0
        %468 = vmatmul.mubr.bf16.gmra.mrb[0].mxu0 %v358
        %v469 = vpop.f32.mrb[0].mxu0
        %v470 = vadd.f32 %v244, %v469
        %v471 = vpop.f32.mrb[0].mxu0
        %v472 = vpop.f32.mrb[0].mxu0
        %v473 = vadd.f32 %v244, %v472
        %v474 = vpop.f32.mrb[0].mxu0
        %475 = vmatprep.mubr.bf16.mxu0 0
        %476 = vmatmul.mubr.bf16.gmra.mrb[0].mxu0 %v361
        %v477 = vpop.f32.mrb[0].mxu0
        %v478 = vadd.f32 %v244, %v477
        %v479 = vpop.f32.mrb[0].mxu0
        %v480 = vpop.f32.mrb[0].mxu0
        %v481 = vadd.f32 %v244, %v480
        %v482 = vpop.f32.mrb[0].mxu0
        %483 = vmatprep.mubr.bf16.mxu0 0
        %484 = vmatmul.mubr.bf16.gmra.mrb[0].mxu0 %v364
        %v485 = vpop.f32.mrb[0].mxu0
        %v486 = vadd.f32 %v244, %v485
        %v487 = vpop.f32.mrb[0].mxu0
        %v488 = vpop.f32.mrb[0].mxu0
        %v489 = vadd.f32 %v244, %v488
        %v490 = vpop.f32.mrb[0].mxu0
        %491 = vmatprep.mubr.bf16.mxu0 0
        %492 = vmatmul.mubr.bf16.gmra.mrb[0].mxu0 %v367
        %v493 = vpop.f32.mrb[0].mxu0
        %v494 = vadd.f32 %v244, %v493
        %v495 = vpop.f32.mrb[0].mxu0
        %v496 = vpop.f32.mrb[0].mxu0
        %v497 = vadd.f32 %v244, %v496
        %v498 = vpop.f32.mrb[0].mxu0
        %499 = vmatprep.mubr.bf16.mxu0 0
        %500 = vmatmul.mubr.bf16.gmra.mrb[0].mxu0 %v370
        %v501 = vpop.f32.mrb[0].mxu0
        %v502 = vadd.f32 %v244, %v501
        %v503 = vpop.f32.mrb[0].mxu0
        %v504 = vpop.f32.mrb[0].mxu0
        %v505 = vadd.f32 %v244, %v504
        %v506 = vpop.f32.mrb[0].mxu0
        %507 = vmatprep.mubr.bf16.mxu0 0
        %508 = vmatmul.mubr.bf16.gmra.mrb[0].mxu0 %v373
        %v509 = vpop.f32.mrb[0].mxu0
        %v510 = vadd.f32 %v244, %v509
        %v511 = vpop.f32.mrb[0].mxu0
        %v512 = vpop.f32.mrb[0].mxu0
        %v513 = vadd.f32 %v244, %v512
        %v514 = vpop.f32.mrb[0].mxu0
        %515 = vmatprep.mubr.bf16.mxu0 0
        %516 = vmatmul.mubr.bf16.gmra.mrb[0].mxu0 %v376
        %v517 = vpop.f32.mrb[0].mxu0
        %v518 = vadd.f32 %v244, %v517
        %v519 = vpop.f32.mrb[0].mxu0
        %v520 = vpop.f32.mrb[0].mxu0
        %v521 = vadd.f32 %v244, %v520
        %v522 = vpop.f32.mrb[0].mxu0
        %523 = vmatprep.mubr.bf16.mxu0 0
        %524 = vmatmul.mubr.bf16.gmra.mrb[0].mxu0 %v379
        %v525 = vpop.f32.mrb[0].mxu0
        %v526 = vadd.f32 %v244, %v525
        %v527 = vpop.f32.mrb[0].mxu0
        %v528 = vpop.f32.mrb[0].mxu0
        %v529 = vadd.f32 %v244, %v528
        %v530 = vpop.f32.mrb[0].mxu0
        %531 = vmatprep.mubr.bf16.mxu0 0
        %532 = vmatmul.mubr.bf16.gmra.mrb[0].mxu0 %v382
        %v533 = vpop.f32.mrb[0].mxu0
        %v534 = vadd.f32 %v244, %v533
        %v535 = vpop.f32.mrb[0].mxu0
        %v536 = vpop.f32.mrb[0].mxu0
        %v537 = vadd.f32 %v244, %v536
        %v538 = vpop.f32.mrb[0].mxu0
        %539 = vmatprep.mubr.bf16.mxu0 0
        %540 = vmatmul.mubr.bf16.gmra.mrb[0].mxu0 %v385
        %v541 = vpop.f32.mrb[0].mxu0
        %v542 = vadd.f32 %v244, %v541
        %v543 = vpop.f32.mrb[0].mxu0
        %v544 = vpop.f32.mrb[0].mxu0
        %v545 = vadd.f32 %v244, %v544
        %v546 = vpop.f32.mrb[0].mxu0
        %547 = vdwg.mxu0
        %v548 = vmax.f32 %v422, 0.0
        %v549 = vmax.f32 %v425, 0.0
        %v550 = vmax.f32 %v430, 0.0
        %v551 = vmax.f32 %v433, 0.0
        %v552 = vmax.f32 %v438, 0.0
        %v553 = vmax.f32 %v441, 0.0
        %v554 = vmax.f32 %v446, 0.0
        %v555 = vmax.f32 %v449, 0.0
        %v556 = vmax.f32 %v454, 0.0
        %v557 = vmax.f32 %v457, 0.0
        %v558 = vmax.f32 %v462, 0.0
        %v559 = vmax.f32 %v465, 0.0
        %v560 = vmax.f32 %v470, 0.0
        %v561 = vmax.f32 %v473, 0.0
        %v562 = vmax.f32 %v478, 0.0
        %v563 = vmax.f32 %v481, 0.0
        %v564 = vmax.f32 %v486, 0.0
        %v565 = vmax.f32 %v489, 0.0
        %v566 = vmax.f32 %v494, 0.0
        %v567 = vmax.f32 %v497, 0.0
        %v568 = vmax.f32 %v502, 0.0
        %v569 = vmax.f32 %v505, 0.0
        %v570 = vmax.f32 %v510, 0.0
        %v571 = vmax.f32 %v513, 0.0
        %v572 = vmax.f32 %v518, 0.0
        %v573 = vmax.f32 %v521, 0.0
        %v574 = vmax.f32 %v526, 0.0
        %v575 = vmax.f32 %v529, 0.0
        %v576 = vmax.f32 %v534, 0.0
        %v577 = vmax.f32 %v537, 0.0
        %v578 = vmax.f32 %v542, 0.0
        %v579 = vmax.f32 %v545, 0.0
        %580 = vst [vmem:[%s200] sm:$0xff] %v548
        %581 = vst [vmem:[%s200 + $0x8] sm:$0xff] %v549
        %582 = vst [vmem:[%s200 + $0x10] sm:$0xff] %v550
        %583 = vst [vmem:[%s200 + $0x18] sm:$0xff] %v551
        %584 = vst [vmem:[%s200 + $0x20] sm:$0xff] %v552
        %585 = vst [vmem:[%s200 + $0x28] sm:$0xff] %v553
        %586 = vst [vmem:[%s200 + $0x30] sm:$0xff] %v554
        %587 = vst [vmem:[%s200 + $0x38] sm:$0xff] %v555
        %588 = vst [vmem:[%s200 + $0x40] sm:$0xff] %v556
        %589 = vst [vmem:[%s200 + $0x48] sm:$0xff] %v557
        %590 = vst [vmem:[%s200 + $0x50] sm:$0xff] %v558
        %591 = vst [vmem:[%s200 + $0x58] sm:$0xff] %v559
        %592 = vst [vmem:[%s200 + $0x60] sm:$0xff] %v560
        %593 = vst [vmem:[%s200 + $0x68] sm:$0xff] %v561
        %594 = vst [vmem:[%s200 + $0x70] sm:$0xff] %v562
        %595 = vst [vmem:[%s200 + $0x78] sm:$0xff] %v563
        %596 = vst [vmem:[%s200 + $0x80] sm:$0xff] %v564
        %597 = vst [vmem:[%s200 + $0x88] sm:$0xff] %v565
        %598 = vst [vmem:[%s200 + $0x90] sm:$0xff] %v566
        %599 = vst [vmem:[%s200 + $0x98] sm:$0xff] %v567
        %600 = vst [vmem:[%s200 + $0xa0] sm:$0xff] %v568
        %601 = vst [vmem:[%s200 + $0xa8] sm:$0xff] %v569
        %602 = vst [vmem:[%s200 + $0xb0] sm:$0xff] %v570
        %603 = vst [vmem:[%s200 + $0xb8] sm:$0xff] %v571
        %604 = vst [vmem:[%s200 + $0xc0] sm:$0xff] %v572
        %605 = vst [vmem:[%s200 + $0xc8] sm:$0xff] %v573
        %606 = vst [vmem:[%s200 + $0xd0] sm:$0xff] %v574
        %607 = vst [vmem:[%s200 + $0xd8] sm:$0xff] %v575
        %608 = vst [vmem:[%s200 + $0xe0] sm:$0xff] %v576
        %609 = vst [vmem:[%s200 + $0xe8] sm:$0xff] %v577
        %610 = vst [vmem:[%s200 + $0xf0] sm:$0xff] %v578
        %611 = vst [vmem:[%s200 + $0xf8] sm:$0xff] %v579
        %s612 = smul.u32 32, %s16
        %p613 = scmp.lt.s32.totalorder %s612, 223
        %s614 = scalar_select %p613, %s612, 223
        %s615 = smul.addr %s614, 8
        %s616 = scalar_lea.vmem %s3, %s615
        // Predicated region
        $region41: #{fashion_cnn_forward.5} parent=31 // pred_check
          %p617 = pneg %p102
        $region42: #{fashion_cnn_forward.5} parent=31 // pred_check_branch
          %619 = sbr.rel (%p617) target = $region44
        $region43: #{fashion_cnn_forward.5} parent=31 // pred_region
          %s620 = smul.u32 32, %s16
        $region44: #{fashion_cnn_forward.5} parent=31 // pred_fallthru
          _
      $region32: #{fashion_cnn_forward.5} parent=5 // pred_fallthru
        _
      %p621 = scmp.le.s32.totalorder 2, %s11
      // Predicated region
      $region45: #{fashion_cnn_forward.5} parent=5 // pred_check
        %p622 = pneg %p621
      $region46: #{fashion_cnn_forward.5} parent=5 // pred_check_branch
        %624 = sbr.rel (%p622) target = $region48
      $region47: #{fashion_cnn_forward.5} parent=5 // pred_region
        %s625 = ssub.s32 %s11, 2
        // Predicated region
        $region49: #{fashion_cnn_forward.5} parent=47 // pred_check
          %p626 = pneg %p108
        $region50: #{fashion_cnn_forward.5} parent=47 // pred_check_branch
          %628 = sbr.rel (%p626) target = $region52
        $region51: #{fashion_cnn_forward.5} parent=47 // pred_region
          %s629 = smul.u32 32, %s17
          %p630 = scmp.lt.s32.totalorder %s629, 223
          %s631 = scalar_select %p630, %s629, 223
          %s632 = smul.addr %s631, 8
          %s633 = scalar_lea.vmem %s3, %s632
        $region52: #{fashion_cnn_forward.5} parent=47 // pred_fallthru
          _
      $region48: #{fashion_cnn_forward.5} parent=5 // pred_fallthru
        _
    $region6: #{fashion_cnn_forward.5} parent=1 // loop_footer
      %s15 = sadd.s32 1, %s11
    $region7: #{fashion_cnn_forward.5} parent=1 // loop_footer_branch
      %10 = sbr.rel target = $region3
    $region8: #{fashion_cnn_forward.5} parent=1 // loop_exit
      _
    %634 = vsyncpa [#allocation3], 1
    %s635 = scalar_lea.sflag [#allocation3], 1
    %636 = vsyncpa %s635, 1
    %637 = vsyncpa [#allocation5], 1

// kernel: fashion_cnn_forward.6
$region0: #{fashion_cnn_forward.6}
  #allocation0 [shape = 'u32[]', space=smem, size = 0x4, offset = 0x4, fixed_abs, tag = 'smem constant byte address 0x4 - core index']
  #allocation1 [shape = 'u32[144,128]{1,0:T(1,128)}', space=vmem, size = 0x12000, scoped, tag = 'internal scratch']
  %s0 = inlined_call_operand.vmem [shape: f32[32,512], index: 0, kind: input, shape index: {}]
  %s1 = inlined_call_operand.vmem [shape: f32[32,512], index: 1, kind: input, shape index: {}]
  %s2 = inlined_call_operand.vmem [shape: f32[32,512], index: 2, kind: input, shape index: {}]
  %s3 = inlined_call_operand.vmem [shape: f32[32,512], index: 3, kind: input, shape index: {}]
  %s4 = inlined_call_operand.vmem [shape: f32[32,512], index: 4, kind: output, shape index: {}]
  %s5 = sld [smem:[#allocation0]]
  $region26: #{fashion_cnn_forward.6} parent=0
    _
  %s7 = ssub.s32 1, %s5
  %s8 = scalar_select 0, %s7, %s5
  // Predicated region
  $region2: #{fashion_cnn_forward.6} parent=0 // pred_check
    _
  $region3: #{fashion_cnn_forward.6} parent=0 // pred_check_branch
    %10 = sbr.rel (0) target = $region5
  $region4: #{fashion_cnn_forward.6} parent=0 // pred_region
    _
  $region5: #{fashion_cnn_forward.6} parent=0 // pred_fallthru
    _
  // Predicated region
  $region6: #{fashion_cnn_forward.6} parent=0 // pred_check
    _
  $region7: #{fashion_cnn_forward.6} parent=0 // pred_check_branch
    %12 = sbr.rel (0) target = $region9
  $region8: #{fashion_cnn_forward.6} parent=0 // pred_region
    _
  $region9: #{fashion_cnn_forward.6} parent=0 // pred_fallthru
    _
  // Predicated region
  $region10: #{fashion_cnn_forward.6} parent=0 // pred_check
    _
  $region11: #{fashion_cnn_forward.6} parent=0 // pred_check_branch
    %14 = sbr.rel (0) target = $region13
  $region12: #{fashion_cnn_forward.6} parent=0 // pred_region
    _
  $region13: #{fashion_cnn_forward.6} parent=0 // pred_fallthru
    _
  // Predicated region
  $region14: #{fashion_cnn_forward.6} parent=0 // pred_check
    _
  $region15: #{fashion_cnn_forward.6} parent=0 // pred_check_branch
    %16 = sbr.rel (0) target = $region17
  $region16: #{fashion_cnn_forward.6} parent=0 // pred_region
    _
  $region17: #{fashion_cnn_forward.6} parent=0 // pred_fallthru
    _
  %v17 = vld [vmem:[%s0] sm:$0xff]
  %v18 = vld [vmem:[%s0 + $0x8] sm:$0xff]
  %v19 = vld [vmem:[%s0 + $0x10] sm:$0xff]
  %v20 = vld [vmem:[%s0 + $0x18] sm:$0xff]
  %v21 = vld [vmem:[%s0 + $0x20] sm:$0xff]
  %v22 = vld [vmem:[%s0 + $0x28] sm:$0xff]
  %v23 = vld [vmem:[%s0 + $0x30] sm:$0xff]
  %v24 = vld [vmem:[%s0 + $0x38] sm:$0xff]
  %v25 = vld [vmem:[%s0 + $0x40] sm:$0xff]
  %v26 = vld [vmem:[%s0 + $0x48] sm:$0xff]
  %v27 = vld [vmem:[%s0 + $0x50] sm:$0xff]
  %v28 = vld [vmem:[%s0 + $0x58] sm:$0xff]
  %v29 = vld [vmem:[%s0 + $0x60] sm:$0xff]
  %v30 = vld [vmem:[%s0 + $0x68] sm:$0xff]
  %v31 = vld [vmem:[%s0 + $0x70] sm:$0xff]
  %v32 = vld [vmem:[%s0 + $0x78] sm:$0xff]
  %v33 = vld [vmem:[%s1] sm:$0xff]
  %v34 = vld [vmem:[%s1 + $0x8] sm:$0xff]
  %v35 = vld [vmem:[%s1 + $0x10] sm:$0xff]
  %v36 = vld [vmem:[%s1 + $0x18] sm:$0xff]
  %v37 = vld [vmem:[%s1 + $0x20] sm:$0xff]
  %v38 = vld [vmem:[%s1 + $0x28] sm:$0xff]
  %v39 = vld [vmem:[%s1 + $0x30] sm:$0xff]
  %v40 = vld [vmem:[%s1 + $0x38] sm:$0xff]
  %v41 = vld [vmem:[%s1 + $0x40] sm:$0xff]
  %v42 = vld [vmem:[%s1 + $0x48] sm:$0xff]
  %v43 = vld [vmem:[%s1 + $0x50] sm:$0xff]
  %v44 = vld [vmem:[%s1 + $0x58] sm:$0xff]
  %v45 = vld [vmem:[%s1 + $0x60] sm:$0xff]
  %v46 = vld [vmem:[%s1 + $0x68] sm:$0xff]
  %v47 = vld [vmem:[%s1 + $0x70] sm:$0xff]
  %v48 = vld [vmem:[%s1 + $0x78] sm:$0xff]
  %v49 = vmax.f32 %v17, %v33
  %v50 = vmax.f32 %v18, %v34
  %v51 = vmax.f32 %v19, %v35
  %v52 = vmax.f32 %v20, %v36
  %v53 = vmax.f32 %v21, %v37
  %v54 = vmax.f32 %v22, %v38
  %v55 = vmax.f32 %v23, %v39
  %v56 = vmax.f32 %v24, %v40
  %v57 = vmax.f32 %v25, %v41
  %v58 = vmax.f32 %v26, %v42
  %v59 = vmax.f32 %v27, %v43
  %v60 = vmax.f32 %v28, %v44
  %v61 = vmax.f32 %v29, %v45
  %v62 = vmax.f32 %v30, %v46
  %v63 = vmax.f32 %v31, %v47
  %v64 = vmax.f32 %v32, %v48
  %v65 = vld [vmem:[%s2] sm:$0xff]
  %v66 = vld [vmem:[%s2 + $0x8] sm:$0xff]
  %v67 = vld [vmem:[%s2 + $0x10] sm:$0xff]
  %v68 = vld [vmem:[%s2 + $0x18] sm:$0xff]
  %v69 = vld [vmem:[%s2 + $0x20] sm:$0xff]
  %v70 = vld [vmem:[%s2 + $0x28] sm:$0xff]
  %v71 = vld [vmem:[%s2 + $0x30] sm:$0xff]
  %v72 = vld [vmem:[%s2 + $0x38] sm:$0xff]
  %v73 = vld [vmem:[%s2 + $0x40] sm:$0xff]
  %v74 = vld [vmem:[%s2 + $0x48] sm:$0xff]
  %v75 = vld [vmem:[%s2 + $0x50] sm:$0xff]
  %v76 = vld [vmem:[%s2 + $0x58] sm:$0xff]
  %v77 = vld [vmem:[%s2 + $0x60] sm:$0xff]
  %v78 = vld [vmem:[%s2 + $0x68] sm:$0xff]
  %v79 = vld [vmem:[%s2 + $0x70] sm:$0xff]
  %v80 = vld [vmem:[%s2 + $0x78] sm:$0xff]
  %v81 = vld [vmem:[%s3] sm:$0xff]
  %v82 = vld [vmem:[%s3 + $0x8] sm:$0xff]
  %v83 = vld [vmem:[%s3 + $0x10] sm:$0xff]
  %v84 = vld [vmem:[%s3 + $0x18] sm:$0xff]
  %v85 = vld [vmem:[%s3 + $0x20] sm:$0xff]
  %v86 = vld [vmem:[%s3 + $0x28] sm:$0xff]
  %v87 = vld [vmem:[%s3 + $0x30] sm:$0xff]
  %v88 = vld [vmem:[%s3 + $0x38] sm:$0xff]
  %v89 = vld [vmem:[%s3 + $0x40] sm:$0xff]
  %v90 = vld [vmem:[%s3 + $0x48] sm:$0xff]
  %v91 = vld [vmem:[%s3 + $0x50] sm:$0xff]
  %v92 = vld [vmem:[%s3 + $0x58] sm:$0xff]
  %v93 = vld [vmem:[%s3 + $0x60] sm:$0xff]
  %v94 = vld [vmem:[%s3 + $0x68] sm:$0xff]
  %v95 = vld [vmem:[%s3 + $0x70] sm:$0xff]
  %v96 = vld [vmem:[%s3 + $0x78] sm:$0xff]
  %v97 = vmax.f32 %v65, %v81
  %v98 = vmax.f32 %v66, %v82
  %v99 = vmax.f32 %v67, %v83
  %v100 = vmax.f32 %v68, %v84
  %v101 = vmax.f32 %v69, %v85
  %v102 = vmax.f32 %v70, %v86
  %v103 = vmax.f32 %v71, %v87
  %v104 = vmax.f32 %v72, %v88
  %v105 = vmax.f32 %v73, %v89
  %v106 = vmax.f32 %v74, %v90
  %v107 = vmax.f32 %v75, %v91
  %v108 = vmax.f32 %v76, %v92
  %v109 = vmax.f32 %v77, %v93
  %v110 = vmax.f32 %v78, %v94
  %v111 = vmax.f32 %v79, %v95
  %v112 = vmax.f32 %v80, %v96
  %v113 = vmax.f32 %v49, %v97
  %v114 = vmax.f32 %v50, %v98
  %v115 = vmax.f32 %v51, %v99
  %v116 = vmax.f32 %v52, %v100
  %v117 = vmax.f32 %v53, %v101
  %v118 = vmax.f32 %v54, %v102
  %v119 = vmax.f32 %v55, %v103
  %v120 = vmax.f32 %v56, %v104
  %v121 = vmax.f32 %v57, %v105
  %v122 = vmax.f32 %v58, %v106
  %v123 = vmax.f32 %v59, %v107
  %v124 = vmax.f32 %v60, %v108
  %v125 = vmax.f32 %v61, %v109
  %v126 = vmax.f32 %v62, %v110
  %v127 = vmax.f32 %v63, %v111
  %v128 = vmax.f32 %v64, %v112
  %129 = vst [vmem:[%s4] sm:$0xff] %v113
  %130 = vst [vmem:[%s4 + $0x8] sm:$0xff] %v114
  %131 = vst [vmem:[%s4 + $0x10] sm:$0xff] %v115
  %132 = vst [vmem:[%s4 + $0x18] sm:$0xff] %v116
  %133 = vst [vmem:[%s4 + $0x20] sm:$0xff] %v117
  %134 = vst [vmem:[%s4 + $0x28] sm:$0xff] %v118
  %135 = vst [vmem:[%s4 + $0x30] sm:$0xff] %v119
  %136 = vst [vmem:[%s4 + $0x38] sm:$0xff] %v120
  %137 = vst [vmem:[%s4 + $0x40] sm:$0xff] %v121
  %138 = vst [vmem:[%s4 + $0x48] sm:$0xff] %v122
  %139 = vst [vmem:[%s4 + $0x50] sm:$0xff] %v123
  %140 = vst [vmem:[%s4 + $0x58] sm:$0xff] %v124
  %141 = vst [vmem:[%s4 + $0x60] sm:$0xff] %v125
  %142 = vst [vmem:[%s4 + $0x68] sm:$0xff] %v126
  %143 = vst [vmem:[%s4 + $0x70] sm:$0xff] %v127
  %144 = vst [vmem:[%s4 + $0x78] sm:$0xff] %v128
  // Predicated region
  $region18: #{fashion_cnn_forward.6} parent=0 // pred_check
    _
  $region19: #{fashion_cnn_forward.6} parent=0 // pred_check_branch
    %146 = sbr.rel (0) target = $region21
  $region20: #{fashion_cnn_forward.6} parent=0 // pred_region
    _
  $region21: #{fashion_cnn_forward.6} parent=0 // pred_fallthru
    _
  // Predicated region
  $region22: #{fashion_cnn_forward.6} parent=0 // pred_check
    _
  $region23: #{fashion_cnn_forward.6} parent=0 // pred_check_branch
    %148 = sbr.rel (0) target = $region25
  $region24: #{fashion_cnn_forward.6} parent=0 // pred_region
    _
  $region25: #{fashion_cnn_forward.6} parent=0 // pred_fallthru
    _

// kernel: fashion_cnn_forward.7
$region0: #{fashion_cnn_forward.7}
  #allocation0 [shape = 'u32[]', space=smem, size = 0x4, offset = 0x4, fixed_abs, tag = 'smem constant byte address 0x4 - core index']
  #allocation1 [shape = 'u32[144,128]{1,0:T(1,128)}', space=vmem, size = 0x12000, scoped, tag = 'internal scratch']
  %s0 = inlined_call_operand.vmem [shape: bf16[512,288], index: 0, kind: input, shape index: {}]
  %s1 = inlined_call_operand.vmem [shape: bf16[288,128], index: 1, kind: input, shape index: {}]
  %s2 = inlined_call_operand.vmem [shape: f32[1,128], index: 2, kind: input, shape index: {}]
  %s3 = inlined_call_operand.vmem [shape: f32[512,128], index: 3, kind: output, shape index: {}]
  %s4 = sld [smem:[#allocation0]]
  $region45: #{fashion_cnn_forward.7} parent=0
    _
  %s6 = ssub.s32 1, %s4
  %s7 = scalar_select 0, %s6, %s4
  loop: start=0, step=1, limit=4
  $region2: #{fashion_cnn_forward.7} parent=0 // loop_pre_header
    _
  $region3: #{fashion_cnn_forward.7} parent=0 // loop_header
    %s9 = sphi 0, %s13
    %p10 = scmp.ge.s32.totalorder %s9, 4
    %s19 = sphi 0, %s21
    %s22 = sphi 0, %s19
    %s23 = sphi 0, %s22
    %s39 = sphi 0, %s23
    %s43 = sphi 0, %s43
    %s45 = sphi 0, %s43
    %s46 = sphi 0, %s45
    %s60 = sphi 0, %s46
    %s64 = sphi 0, %s64
    %s66 = sphi 0, %s64
    %s67 = sphi 0, %s66
    %s81 = sphi 0, %s67
    %s87 = sphi 0, %s89
    %s90 = sphi 0, %s87
    %s91 = sphi 0, %s90
    %s107 = sphi 0, %s91
  $region4: #{fashion_cnn_forward.7} parent=0 // loop_header_branch
    %12 = sbr.rel (%p10) target = $region8
  $region5: #{fashion_cnn_forward.7} parent=0 // loop_body
    %s14 = ssub.s32 %s9, 1
    %s15 = ssub.s32 %s9, 2
    %s16 = sadd.s32 %s9, 1
    %s17 = ssub.s32 %s9, %s16
    %p18 = scmp.eq.s32.totalorder %s17, 0
    %s20 = sadd.s32 %s19, 1
    %s21 = scalar_select %p18, %s19, %s20
    %p24 = pneg %p18
    %p25 = scmp.eq.s32.totalorder %s9, 1
    %p26 = por %p24, %p25
    %p27 = scmp.ne.s32.totalorder %s19, %s22
    %p28 = scmp.eq.s32.totalorder %s9, 0
    %p29 = por %p27, %p28
    %p30 = scmp.ne.s32.totalorder %s19, %s22
    %p31 = scmp.eq.s32.totalorder %s14, 1
    %p32 = por %p30, %p31
    %p33 = scmp.ne.s32.totalorder %s22, %s23
    %p34 = scmp.eq.s32.totalorder %s14, 0
    %p35 = por %p33, %p34
    %p36 = scmp.ne.s32.totalorder %s22, %s23
    %p37 = scmp.eq.s32.totalorder %s15, 1
    %p38 = por %p36, %p37
    %p40 = scmp.ne.s32.totalorder %s23, %s39
    %p41 = scmp.eq.s32.totalorder %s15, 0
    %p42 = por %p40, %p41
    %s44 = sadd.s32 %s43, 1
    %p47 = scmp.eq.s32.totalorder %s9, 1
    %p48 = scmp.ne.s32.totalorder %s43, %s45
    %p49 = scmp.eq.s32.totalorder %s9, 0
    %p50 = por %p48, %p49
    %p51 = scmp.ne.s32.totalorder %s43, %s45
    %p52 = scmp.eq.s32.totalorder %s14, 1
    %p53 = por %p51, %p52
    %p54 = scmp.ne.s32.totalorder %s45, %s46
    %p55 = scmp.eq.s32.totalorder %s14, 0
    %p56 = por %p54, %p55
    %p57 = scmp.ne.s32.totalorder %s45, %s46
    %p58 = scmp.eq.s32.totalorder %s15, 1
    %p59 = por %p57, %p58
    %p61 = scmp.ne.s32.totalorder %s46, %s60
    %p62 = scmp.eq.s32.totalorder %s15, 0
    %p63 = por %p61, %p62
    %s65 = sadd.s32 %s64, 1
    %p68 = scmp.eq.s32.totalorder %s9, 1
    %p69 = scmp.ne.s32.totalorder %s64, %s66
    %p70 = scmp.eq.s32.totalorder %s9, 0
    %p71 = por %p69, %p70
    %p72 = scmp.ne.s32.totalorder %s64, %s66
    %p73 = scmp.eq.s32.totalorder %s14, 1
    %p74 = por %p72, %p73
    %p75 = scmp.ne.s32.totalorder %s66, %s67
    %p76 = scmp.eq.s32.totalorder %s14, 0
    %p77 = por %p75, %p76
    %p78 = scmp.ne.s32.totalorder %s66, %s67
    %p79 = scmp.eq.s32.totalorder %s15, 1
    %p80 = por %p78, %p79
    %p82 = scmp.ne.s32.totalorder %s67, %s81
    %p83 = scmp.eq.s32.totalorder %s15, 0
    %p84 = por %p82, %p83
    %s85 = ssub.s32 %s9, %s16
    %p86 = scmp.eq.s32.totalorder %s85, 0
    %s88 = sadd.s32 %s87, 1
    %s89 = scalar_select %p86, %s87, %s88
    %p92 = pneg %p86
    %p93 = scmp.eq.s32.totalorder %s9, 1
    %p94 = por %p92, %p93
    %p95 = scmp.ne.s32.totalorder %s87, %s90
    %p96 = scmp.eq.s32.totalorder %s9, 0
    %p97 = por %p95, %p96
    %p98 = scmp.ne.s32.totalorder %s87, %s90
    %p99 = scmp.eq.s32.totalorder %s14, 1
    %p100 = por %p98, %p99
    %p101 = scmp.ne.s32.totalorder %s90, %s91
    %p102 = scmp.eq.s32.totalorder %s14, 0
    %p103 = por %p101, %p102
    %p104 = scmp.ne.s32.totalorder %s90, %s91
    %p105 = scmp.eq.s32.totalorder %s15, 1
    %p106 = por %p104, %p105
    %p108 = scmp.ne.s32.totalorder %s91, %s107
    %p109 = scmp.eq.s32.totalorder %s15, 0
    %p110 = por %p108, %p109
    %p111 = scmp.le.s32.totalorder 1, %s9
    %p112 = scmp.lt.s32.totalorder %s9, 3
    %p113 = pnand %p111, %p112
    %p114 = pneg %p113
    // Predicated region
    $region9: #{fashion_cnn_forward.7} parent=5 // pred_check
      _
    $region10: #{fashion_cnn_forward.7} parent=5 // pred_check_branch
      %116 = sbr.rel (%p113) target = $region12
    $region11: #{fashion_cnn_forward.7} parent=5 // pred_region
      %s117 = ssub.s32 %s9, 1
      // Predicated region
      $region13: #{fashion_cnn_forward.7} parent=11 // pred_check
        %p118 = pneg %p56
      $region14: #{fashion_cnn_forward.7} parent=11 // pred_check_branch
        %120 = sbr.rel (%p118) target = $region16
      $region15: #{fashion_cnn_forward.7} parent=11 // pred_region
        _
      $region16: #{fashion_cnn_forward.7} parent=11 // pred_fallthru
        _
      // Predicated region
      $region17: #{fashion_cnn_forward.7} parent=11 // pred_check
        %p121 = pneg %p77
      $region18: #{fashion_cnn_forward.7} parent=11 // pred_check_branch
        %123 = sbr.rel (%p121) target = $region20
      $region19: #{fashion_cnn_forward.7} parent=11 // pred_region
        _
      $region20: #{fashion_cnn_forward.7} parent=11 // pred_fallthru
        _
    $region12: #{fashion_cnn_forward.7} parent=5 // pred_fallthru
      _
    %p124 = scmp.lt.s32.totalorder %s9, 2
    // Predicated region
    $region21: #{fashion_cnn_forward.7} parent=5 // pred_check
      %p125 = pneg %p124
    $region22: #{fashion_cnn_forward.7} parent=5 // pred_check_branch
      %127 = sbr.rel (%p125) target = $region24
    $region23: #{fashion_cnn_forward.7} parent=5 // pred_region
      // Predicated region
      $region25: #{fashion_cnn_forward.7} parent=23 // pred_check
        %p128 = pneg %p29
      $region26: #{fashion_cnn_forward.7} parent=23 // pred_check_branch
        %130 = sbr.rel (%p128) target = $region28
      $region27: #{fashion_cnn_forward.7} parent=23 // pred_region
        %s131 = smul.u32 32, %s9
        %p132 = scmp.lt.s32.totalorder %s131, 63
        %s133 = scalar_select %p132, %s131, 63
        %s134 = smul.addr %s133, 3
        %s135 = smul.addr %s134, 4
        %s136 = scalar_lea.vmem %s0, %s135
        %s137 = smul.u32 32, %s9
      $region28: #{fashion_cnn_forward.7} parent=23 // pred_fallthru
        _
    $region24: #{fashion_cnn_forward.7} parent=5 // pred_fallthru
      _
    %p138 = scmp.le.s32.totalorder 1, %s9
    %p139 = scmp.lt.s32.totalorder %s9, 3
    %p140 = pnand %p138, %p139
    %p141 = pneg %p140
    // Predicated region
    $region29: #{fashion_cnn_forward.7} parent=5 // pred_check
      _
    $region30: #{fashion_cnn_forward.7} parent=5 // pred_check_branch
      %143 = sbr.rel (%p140) target = $region32
    $region31: #{fashion_cnn_forward.7} parent=5 // pred_region
      %s144 = ssub.s32 %s9, 1
      %s145 = smul.u32 32, %s14
      %p146 = scmp.lt.s32.totalorder %s145, 63
      %s147 = scalar_select %p146, %s145, 63
      %s148 = smul.addr %s147, 3
      %s149 = smul.addr %s148, 4
      %s150 = scalar_lea.vmem %s0, %s149
      %p151 = pneg %p35
      %p152 = pneg %p32
      %p153 = pneg %p56
      %p154 = pneg %p53
      %p155 = pneg %p77
      %p156 = pneg %p74
      %p157 = pneg %p103
      %p158 = pneg %p100
      %s159 = smul.u32 32, %s14
      %p160 = scmp.lt.s32.totalorder %s159, 63
      %s161 = scalar_select %p160, %s159, 63
      %s162 = smul.addr %s161, 8
      %s163 = scalar_lea.vmem %s3, %s162
      %s164 = smul.u32 32, %s14
      %p165 = scmp.lt.s32.totalorder %s164, 63
      %s166 = scalar_select %p165, %s164, 63
      %s167 = smul.addr %s166, 3
      %s168 = smul.addr %s167, 4
      %s169 = scalar_lea.vmem %s0, %s168
      %s170 = smul.u32 32, %s14
      %s171 = smul.u32 32, %s14
      %p172 = scmp.lt.s32.totalorder %s171, 63
      %s173 = scalar_select %p172, %s171, 63
      %s174 = smul.addr %s173, 8
      %s175 = scalar_lea.vmem %s3, %s174
      %s176 = smul.u32 32, %s14
      %v178 = vld [vmem:[%s169] sm:$0xff]
      %v179 = vld [vmem:[%s169 + $0x8] sm:$0xf]
      %v180 = vld [vmem:[%s169 + $0xc] sm:$0xff]
      %v181 = vld [vmem:[%s169 + $0x14] sm:$0xf]
      %v182 = vld [vmem:[%s169 + $0x18] sm:$0xff]
      %v183 = vld [vmem:[%s169 + $0x20] sm:$0xf]
      %v184 = vld [vmem:[%s169 + $0x24] sm:$0xff]
      %v185 = vld [vmem:[%s169 + $0x2c] sm:$0xf]
      %v186 = vld [vmem:[%s169 + $0x30] sm:$0xff]
      %v187 = vld [vmem:[%s169 + $0x38] sm:$0xf]
      %v188 = vld [vmem:[%s169 + $0x3c] sm:$0xff]
      %v189 = vld [vmem:[%s169 + $0x44] sm:$0xf]
      %v190 = vld [vmem:[%s169 + $0x48] sm:$0xff]
      %v191 = vld [vmem:[%s169 + $0x50] sm:$0xf]
      %v192 = vld [vmem:[%s169 + $0x54] sm:$0xff]
      %v193 = vld [vmem:[%s169 + $0x5c] sm:$0xf]
      %v194 = vld [vmem:[%s169 + $0x60] sm:$0xff]
      %v195 = vld [vmem:[%s169 + $0x68] sm:$0xf]
      %v196 = vld [vmem:[%s169 + $0x6c] sm:$0xff]
      %v197 = vld [vmem:[%s169 + $0x74] sm:$0xf]
      %v198 = vld [vmem:[%s169 + $0x78] sm:$0xff]
      %v199 = vld [vmem:[%s169 + $0x80] sm:$0xf]
      %v200 = vld [vmem:[%s169 + $0x84] sm:$0xff]
      %v201 = vld [vmem:[%s169 + $0x8c] sm:$0xf]
      %v202 = vld [vmem:[%s169 + $0x90] sm:$0xff]
      %v203 = vld [vmem:[%s169 + $0x98] sm:$0xf]
      %v204 = vld [vmem:[%s169 + $0x9c] sm:$0xff]
      %v205 = vld [vmem:[%s169 + $0xa4] sm:$0xf]
      %v206 = vld [vmem:[%s169 + $0xa8] sm:$0xff]
      %v207 = vld [vmem:[%s169 + $0xb0] sm:$0xf]
      %v208 = vld [vmem:[%s169 + $0xb4] sm:$0xff]
      %v209 = vld [vmem:[%s169 + $0xbc] sm:$0xf]
      %v210 = vld [vmem:[%s169 + $0xc0] sm:$0xff]
      %v211 = vld [vmem:[%s169 + $0xc8] sm:$0xf]
      %v212 = vld [vmem:[%s169 + $0xcc] sm:$0xff]
      %v213 = vld [vmem:[%s169 + $0xd4] sm:$0xf]
      %v214 = vld [vmem:[%s169 + $0xd8] sm:$0xff]
      %v215 = vld [vmem:[%s169 + $0xe0] sm:$0xf]
      %v216 = vld [vmem:[%s169 + $0xe4] sm:$0xff]
      %v217 = vld [vmem:[%s169 + $0xec] sm:$0xf]
      %v218 = vld [vmem:[%s169 + $0xf0] sm:$0xff]
      %v219 = vld [vmem:[%s169 + $0xf8] sm:$0xf]
      %v220 = vld [vmem:[%s169 + $0xfc] sm:$0xff]
      %v221 = vld [vmem:[%s169 + $0x104] sm:$0xf]
      %v222 = vld [vmem:[%s169 + $0x108] sm:$0xff]
      %v223 = vld [vmem:[%s169 + $0x110] sm:$0xf]
      %v224 = vld [vmem:[%s169 + $0x114] sm:$0xff]
      %v225 = vld [vmem:[%s169 + $0x11c] sm:$0xf]
      %v226 = vld [vmem:[%s169 + $0x120] sm:$0xff]
      %v227 = vld [vmem:[%s169 + $0x128] sm:$0xf]
      %v228 = vld [vmem:[%s169 + $0x12c] sm:$0xff]
      %v229 = vld [vmem:[%s169 + $0x134] sm:$0xf]
      %v230 = vld [vmem:[%s169 + $0x138] sm:$0xff]
      %v231 = vld [vmem:[%s169 + $0x140] sm:$0xf]
      %v232 = vld [vmem:[%s169 + $0x144] sm:$0xff]
      %v233 = vld [vmem:[%s169 + $0x14c] sm:$0xf]
      %v234 = vld [vmem:[%s169 + $0x150] sm:$0xff]
      %v235 = vld [vmem:[%s169 + $0x158] sm:$0xf]
      %v236 = vld [vmem:[%s169 + $0x15c] sm:$0xff]
      %v237 = vld [vmem:[%s169 + $0x164] sm:$0xf]
      %v238 = vld [vmem:[%s169 + $0x168] sm:$0xff]
      %v239 = vld [vmem:[%s169 + $0x170] sm:$0xf]
      %v240 = vld [vmem:[%s169 + $0x174] sm:$0xff]
      %v241 = vld [vmem:[%s169 + $0x17c] sm:$0xf]
      %v242 = vld [vmem:[%s1] sm:$0xf]
      %v243 = vld [vmem:[%s1 + $0x4] sm:$0xf]
      %v244 = vld [vmem:[%s1 + $0x8] sm:$0xf]
      %v245 = vld [vmem:[%s1 + $0xc] sm:$0xf]
      %v246 = vld [vmem:[%s1 + $0x10] sm:$0xf]
      %v247 = vld [vmem:[%s1 + $0x14] sm:$0xf]
      %v248 = vld [vmem:[%s1 + $0x18] sm:$0xf]
      %v249 = vld [vmem:[%s1 + $0x1c] sm:$0xf]
      %v250 = vld [vmem:[%s1 + $0x20] sm:$0xf]
      %v251 = vld [vmem:[%s1 + $0x24] sm:$0xf]
      %v252 = vld [vmem:[%s1 + $0x28] sm:$0xf]
      %v253 = vld [vmem:[%s1 + $0x2c] sm:$0xf]
      %v254 = vld [vmem:[%s1 + $0x30] sm:$0xf]
      %v255 = vld [vmem:[%s1 + $0x34] sm:$0xf]
      %v256 = vld [vmem:[%s1 + $0x38] sm:$0xf]
      %v257 = vld [vmem:[%s1 + $0x3c] sm:$0xf]
      %v258 = vld [vmem:[%s1 + $0x40] sm:$0xf]
      %v259 = vld [vmem:[%s1 + $0x44] sm:$0xf]
      %v260 = vld [vmem:[%s1 + $0x48] sm:$0xf]
      %v261 = vld [vmem:[%s1 + $0x4c] sm:$0xf]
      %v262 = vld [vmem:[%s1 + $0x50] sm:$0xf]
      %v263 = vld [vmem:[%s1 + $0x54] sm:$0xf]
      %v264 = vld [vmem:[%s1 + $0x58] sm:$0xf]
      %v265 = vld [vmem:[%s1 + $0x5c] sm:$0xf]
      %v266 = vld [vmem:[%s1 + $0x60] sm:$0xf]
      %v267 = vld [vmem:[%s1 + $0x64] sm:$0xf]
      %v268 = vld [vmem:[%s1 + $0x68] sm:$0xf]
      %v269 = vld [vmem:[%s1 + $0x6c] sm:$0xf]
      %v270 = vld [vmem:[%s1 + $0x70] sm:$0xf]
      %v271 = vld [vmem:[%s1 + $0x74] sm:$0xf]
      %v272 = vld [vmem:[%s1 + $0x78] sm:$0xf]
      %v273 = vld [vmem:[%s1 + $0x7c] sm:$0xf]
      %v274 = vld [vmem:[%s1 + $0x80] sm:$0xf]
      %v275 = vld [vmem:[%s1 + $0x84] sm:$0xf]
      %v276 = vld [vmem:[%s1 + $0x88] sm:$0xf]
      %v277 = vld [vmem:[%s1 + $0x8c] sm:$0xf]
      %v278 = vld [vmem:[%s2] sm:$0x1]
      %v280 = vlaneseq
      %v281 = vshrl.u32 %v280, 7
      %v282 = vsub.s32 0, %v281
      %v283 = vrot.slane %v278, %v282
      %v349 = vunpack.c.l.b16 %v178
      %v350 = vunpack.c.h.b16 %v178
      %v351 = vunpack.c.l.b16 %v179
      %v352 = vunpack.c.l.b16 %v180
      %v353 = vunpack.c.h.b16 %v180
      %v354 = vunpack.c.l.b16 %v181
      %v355 = vunpack.c.l.b16 %v182
      %v356 = vunpack.c.h.b16 %v182
      %v357 = vunpack.c.l.b16 %v183
      %v358 = vunpack.c.l.b16 %v184
      %v359 = vunpack.c.h.b16 %v184
      %v360 = vunpack.c.l.b16 %v185
      %v361 = vunpack.c.l.b16 %v186
      %v362 = vunpack.c.h.b16 %v186
      %v363 = vunpack.c.l.b16 %v187
      %v364 = vunpack.c.l.b16 %v188
      %v365 = vunpack.c.h.b16 %v188
      %v366 = vunpack.c.l.b16 %v189
      %v367 = vunpack.c.l.b16 %v190
      %v368 = vunpack.c.h.b16 %v190
      %v369 = vunpack.c.l.b16 %v191
      %v370 = vunpack.c.l.b16 %v192
      %v371 = vunpack.c.h.b16 %v192
      %v372 = vunpack.c.l.b16 %v193
      %v373 = vunpack.c.l.b16 %v194
      %v374 = vunpack.c.h.b16 %v194
      %v375 = vunpack.c.l.b16 %v195
      %v376 = vunpack.c.l.b16 %v196
      %v377 = vunpack.c.h.b16 %v196
      %v378 = vunpack.c.l.b16 %v197
      %v379 = vunpack.c.l.b16 %v198
      %v380 = vunpack.c.h.b16 %v198
      %v381 = vunpack.c.l.b16 %v199
      %v382 = vunpack.c.l.b16 %v200
      %v383 = vunpack.c.h.b16 %v200
      %v384 = vunpack.c.l.b16 %v201
      %v385 = vunpack.c.l.b16 %v202
      %v386 = vunpack.c.h.b16 %v202
      %v387 = vunpack.c.l.b16 %v203
      %v388 = vunpack.c.l.b16 %v204
      %v389 = vunpack.c.h.b16 %v204
      %v390 = vunpack.c.l.b16 %v205
      %v391 = vunpack.c.l.b16 %v206
      %v392 = vunpack.c.h.b16 %v206
      %v393 = vunpack.c.l.b16 %v207
      %v394 = vunpack.c.l.b16 %v208
      %v395 = vunpack.c.h.b16 %v208
      %v396 = vunpack.c.l.b16 %v209
      %v397 = vunpack.c.l.b16 %v210
      %v398 = vunpack.c.h.b16 %v210
      %v399 = vunpack.c.l.b16 %v211
      %v400 = vunpack.c.l.b16 %v212
      %v401 = vunpack.c.h.b16 %v212
      %v402 = vunpack.c.l.b16 %v213
      %v403 = vunpack.c.l.b16 %v214
      %v404 = vunpack.c.h.b16 %v214
      %v405 = vunpack.c.l.b16 %v215
      %v406 = vunpack.c.l.b16 %v216
      %v407 = vunpack.c.h.b16 %v216
      %v408 = vunpack.c.l.b16 %v217
      %v409 = vunpack.c.l.b16 %v218
      %v410 = vunpack.c.h.b16 %v218
      %v411 = vunpack.c.l.b16 %v219
      %v412 = vunpack.c.l.b16 %v220
      %v413 = vunpack.c.h.b16 %v220
      %v414 = vunpack.c.l.b16 %v221
      %v415 = vunpack.c.l.b16 %v222
      %v416 = vunpack.c.h.b16 %v222
      %v417 = vunpack.c.l.b16 %v223
      %v418 = vunpack.c.l.b16 %v224
      %v419 = vunpack.c.h.b16 %v224
      %v420 = vunpack.c.l.b16 %v225
      %v421 = vunpack.c.l.b16 %v226
      %v422 = vunpack.c.h.b16 %v226
      %v423 = vunpack.c.l.b16 %v227
      %v424 = vunpack.c.l.b16 %v228
      %v425 = vunpack.c.h.b16 %v228
      %v426 = vunpack.c.l.b16 %v229
      %v427 = vunpack.c.l.b16 %v230
      %v428 = vunpack.c.h.b16 %v230
      %v429 = vunpack.c.l.b16 %v231
      %v430 = vunpack.c.l.b16 %v232
      %v431 = vunpack.c.h.b16 %v232
      %v432 = vunpack.c.l.b16 %v233
      %v433 = vunpack.c.l.b16 %v234
      %v434 = vunpack.c.h.b16 %v234
      %v435 = vunpack.c.l.b16 %v235
      %v436 = vunpack.c.l.b16 %v236
      %v437 = vunpack.c.h.b16 %v236
      %v438 = vunpack.c.l.b16 %v237
      %v439 = vunpack.c.l.b16 %v238
      %v440 = vunpack.c.h.b16 %v238
      %v441 = vunpack.c.l.b16 %v239
      %v442 = vunpack.c.l.b16 %v240
      %v443 = vunpack.c.h.b16 %v240
      %v444 = vunpack.c.l.b16 %v241
      %v445 = vpack.c.b16 %v352, %v349
      %v446 = vpack.c.b16 %v353, %v350
      %v447 = vpack.c.b16 %v354, %v351
      %v448 = vpack.c.b16 %v358, %v355
      %v449 = vpack.c.b16 %v359, %v356
      %v450 = vpack.c.b16 %v360, %v357
      %v451 = vpack.c.b16 %v364, %v361
      %v452 = vpack.c.b16 %v365, %v362
      %v453 = vpack.c.b16 %v366, %v363
      %v454 = vpack.c.b16 %v370, %v367
      %v455 = vpack.c.b16 %v371, %v368
      %v456 = vpack.c.b16 %v372, %v369
      %v457 = vpack.c.b16 %v376, %v373
      %v458 = vpack.c.b16 %v377, %v374
      %v459 = vpack.c.b16 %v378, %v375
      %v460 = vpack.c.b16 %v382, %v379
      %v461 = vpack.c.b16 %v383, %v380
      %v462 = vpack.c.b16 %v384, %v381
      %v463 = vpack.c.b16 %v388, %v385
      %v464 = vpack.c.b16 %v389, %v386
      %v465 = vpack.c.b16 %v390, %v387
      %v466 = vpack.c.b16 %v394, %v391
      %v467 = vpack.c.b16 %v395, %v392
      %v468 = vpack.c.b16 %v396, %v393
      %v469 = vpack.c.b16 %v400, %v397
      %v470 = vpack.c.b16 %v401, %v398
      %v471 = vpack.c.b16 %v402, %v399
      %v472 = vpack.c.b16 %v406, %v403
      %v473 = vpack.c.b16 %v407, %v404
      %v474 = vpack.c.b16 %v408, %v405
      %v475 = vpack.c.b16 %v412, %v409
      %v476 = vpack.c.b16 %v413, %v410
      %v477 = vpack.c.b16 %v414, %v411
      %v478 = vpack.c.b16 %v418, %v415
      %v479 = vpack.c.b16 %v419, %v416
      %v480 = vpack.c.b16 %v420, %v417
      %v481 = vpack.c.b16 %v424, %v421
      %v482 = vpack.c.b16 %v425, %v422
      %v483 = vpack.c.b16 %v426, %v423
      %v484 = vpack.c.b16 %v430, %v427
      %v485 = vpack.c.b16 %v431, %v428
      %v486 = vpack.c.b16 %v432, %v429
      %v487 = vpack.c.b16 %v436, %v433
      %v488 = vpack.c.b16 %v437, %v434
      %v489 = vpack.c.b16 %v438, %v435
      %v490 = vpack.c.b16 %v442, %v439
      %v491 = vpack.c.b16 %v443, %v440
      %v492 = vpack.c.b16 %v444, %v441
      %v561 = vunpack.c.l.b16 %v242
      %v562 = vunpack.c.l.b16 %v243
      %v563 = vunpack.c.l.b16 %v244
      %v564 = vunpack.c.l.b16 %v245
      %v565 = vunpack.c.l.b16 %v246
      %v566 = vunpack.c.l.b16 %v247
      %v567 = vunpack.c.l.b16 %v248
      %v568 = vunpack.c.l.b16 %v249
      %v569 = vunpack.c.l.b16 %v250
      %v570 = vunpack.c.l.b16 %v251
      %v571 = vunpack.c.l.b16 %v252
      %v572 = vunpack.c.l.b16 %v253
      %v573 = vunpack.c.l.b16 %v254
      %v574 = vunpack.c.l.b16 %v255
      %v575 = vunpack.c.l.b16 %v256
      %v576 = vunpack.c.l.b16 %v257
      %v577 = vunpack.c.l.b16 %v258
      %v578 = vunpack.c.l.b16 %v259
      %v579 = vunpack.c.l.b16 %v260
      %v580 = vunpack.c.l.b16 %v261
      %v581 = vunpack.c.l.b16 %v262
      %v582 = vunpack.c.l.b16 %v263
      %v583 = vunpack.c.l.b16 %v264
      %v584 = vunpack.c.l.b16 %v265
      %v585 = vunpack.c.l.b16 %v266
      %v586 = vunpack.c.l.b16 %v267
      %v587 = vunpack.c.l.b16 %v268
      %v588 = vunpack.c.l.b16 %v269
      %v589 = vunpack.c.l.b16 %v270
      %v590 = vunpack.c.l.b16 %v271
      %v591 = vunpack.c.l.b16 %v272
      %v592 = vunpack.c.l.b16 %v273
      %v593 = vunpack.c.l.b16 %v274
      %v594 = vunpack.c.l.b16 %v275
      %v595 = vunpack.c.l.b16 %v276
      %v596 = vunpack.c.l.b16 %v277
      %v597 = vpack.c.b16 %v562, %v561
      %v598 = vpack.c.b16 %v564, %v563
      %v599 = vpack.c.b16 %v566, %v565
      %v600 = vpack.c.b16 %v568, %v567
      %v601 = vpack.c.b16 %v570, %v569
      %v602 = vpack.c.b16 %v572, %v571
      %v603 = vpack.c.b16 %v574, %v573
      %v604 = vpack.c.b16 %v576, %v575
      %v605 = vpack.c.b16 %v578, %v577
      %v606 = vpack.c.b16 %v580, %v579
      %v607 = vpack.c.b16 %v582, %v581
      %v608 = vpack.c.b16 %v584, %v583
      %v609 = vpack.c.b16 %v586, %v585
      %v610 = vpack.c.b16 %v588, %v587
      %v611 = vpack.c.b16 %v590, %v589
      %v612 = vpack.c.b16 %v592, %v591
      %v613 = vpack.c.b16 %v594, %v593
      %v614 = vpack.c.b16 %v596, %v595
      %vm633 = vcmask 261120
      %v635 = vsel %vm633, %v447, 0
      %v638 = vsel %vm633, %v450, 0
      %v641 = vsel %vm633, %v453, 0
      %v644 = vsel %vm633, %v456, 0
      %v647 = vsel %vm633, %v459, 0
      %v650 = vsel %vm633, %v462, 0
      %v653 = vsel %vm633, %v465, 0
      %v656 = vsel %vm633, %v468, 0
      %v659 = vsel %vm633, %v471, 0
      %v662 = vsel %vm633, %v474, 0
      %v665 = vsel %vm633, %v477, 0
      %v668 = vsel %vm633, %v480, 0
      %v671 = vsel %vm633, %v483, 0
      %v674 = vsel %vm633, %v486, 0
      %v677 = vsel %vm633, %v489, 0
      %v680 = vsel %vm633, %v492, 0
      %682 = vmatprep.subr.bf16.mxu0 0
      %683 = vmatpush1.bf16.msra.mxu0 %v597
      %684 = vmatprep.subr.bf16.mxu0 0
      %685 = vmatpush1.bf16.msra.mxu0 %v598
      %686 = vmatprep.subr.bf16.mxu0 0
      %687 = vmatpush1.bf16.msra.mxu0 %v599
      %688 = vmatprep.subr.bf16.mxu0 0
      %689 = vmatpush1.bf16.msra.mxu0 %v600
      %690 = vmatprep.subr.bf16.mxu0 0
      %691 = vmatpush1.bf16.msra.mxu0 %v601
      %692 = vmatprep.subr.bf16.mxu0 0
      %693 = vmatpush1.bf16.msra.mxu0 %v602
      %694 = vmatprep.subr.bf16.mxu0 0
      %695 = vmatpush1.bf16.msra.mxu0 %v603
      %696 = vmatprep.subr.bf16.mxu0 0
      %697 = vmatpush1.bf16.msra.mxu0 %v604
      %698 = vmatprep.subr.bf16.mxu0 0
      %699 = vmatpush1.bf16.msra.mxu0 %v605
      %700 = vmatprep.subr.bf16.mxu0 0
      %701 = vmatpush1.bf16.msra.mxu0 %v606
      %702 = vmatprep.subr.bf16.mxu0 0
      %703 = vmatpush1.bf16.msra.mxu0 %v607
      %704 = vmatprep.subr.bf16.mxu0 0
      %705 = vmatpush1.bf16.msra.mxu0 %v608
      %706 = vmatprep.subr.bf16.mxu0 0
      %707 = vmatpush1.bf16.msra.mxu0 %v609
      %708 = vmatprep.subr.bf16.mxu0 0
      %709 = vmatpush1.bf16.msra.mxu0 %v610
      %710 = vmatprep.subr.bf16.mxu0 0
      %711 = vmatpush1.bf16.msra.mxu0 %v611
      %712 = vmatprep.subr.bf16.mxu0 0
      %713 = vmatpush1.bf16.msra.mxu0 %v612
      %714 = vmatprep.mubr.bf16.mxu0 %v446
      %715 = vmatmul.mubr.bf16.gmra.mrb[0].mxu0 %v445
      %v716 = vpop.f32.mrb[0].mxu0
      %v717 = vadd.f32 %v283, %v716
      %v718 = vpop.f32.mrb[0].mxu0
      %v719 = vpop.f32.mrb[0].mxu0
      %v720 = vadd.f32 %v283, %v719
      %v721 = vpop.f32.mrb[0].mxu0
      %722 = vmatprep.mubr.bf16.mxu0 %v449
      %723 = vmatmul.mubr.bf16.gmra.mrb[0].mxu0 %v448
      %v724 = vpop.f32.mrb[0].mxu0
      %v725 = vadd.f32 %v283, %v724
      %v726 = vpop.f32.mrb[0].mxu0
      %v727 = vpop.f32.mrb[0].mxu0
      %v728 = vadd.f32 %v283, %v727
      %v729 = vpop.f32.mrb[0].mxu0
      %730 = vmatprep.mubr.bf16.mxu0 %v452
      %731 = vmatmul.mubr.bf16.gmra.mrb[0].mxu0 %v451
      %v732 = vpop.f32.mrb[0].mxu0
      %v733 = vadd.f32 %v283, %v732
      %v734 = vpop.f32.mrb[0].mxu0
      %v735 = vpop.f32.mrb[0].mxu0
      %v736 = vadd.f32 %v283, %v735
      %v737 = vpop.f32.mrb[0].mxu0
      %738 = vmatprep.mubr.bf16.mxu0 %v455
      %739 = vmatmul.mubr.bf16.gmra.mrb[0].mxu0 %v454
      %v740 = vpop.f32.mrb[0].mxu0
      %v741 = vadd.f32 %v283, %v740
      %v742 = vpop.f32.mrb[0].mxu0
      %v743 = vpop.f32.mrb[0].mxu0
      %v744 = vadd.f32 %v283, %v743
      %v745 = vpop.f32.mrb[0].mxu0
      %746 = vmatprep.mubr.bf16.mxu0 %v458
      %747 = vmatmul.mubr.bf16.gmra.mrb[0].mxu0 %v457
      %v748 = vpop.f32.mrb[0].mxu0
      %v749 = vadd.f32 %v283, %v748
      %v750 = vpop.f32.mrb[0].mxu0
      %v751 = vpop.f32.mrb[0].mxu0
      %v752 = vadd.f32 %v283, %v751
      %v753 = vpop.f32.mrb[0].mxu0
      %754 = vmatprep.mubr.bf16.mxu0 %v461
      %755 = vmatmul.mubr.bf16.gmra.mrb[0].mxu0 %v460
      %v756 = vpop.f32.mrb[0].mxu0
      %v757 = vadd.f32 %v283, %v756
      %v758 = vpop.f32.mrb[0].mxu0
      %v759 = vpop.f32.mrb[0].mxu0
      %v760 = vadd.f32 %v283, %v759
      %v761 = vpop.f32.mrb[0].mxu0
      %762 = vmatprep.mubr.bf16.mxu0 %v464
      %763 = vmatmul.mubr.bf16.gmra.mrb[0].mxu0 %v463
      %v764 = vpop.f32.mrb[0].mxu0
      %v765 = vadd.f32 %v283, %v764
      %v766 = vpop.f32.mrb[0].mxu0
      %v767 = vpop.f32.mrb[0].mxu0
      %v768 = vadd.f32 %v283, %v767
      %v769 = vpop.f32.mrb[0].mxu0
      %770 = vmatprep.mubr.bf16.mxu0 %v467
      %771 = vmatmul.mubr.bf16.gmra.mrb[0].mxu0 %v466
      %v772 = vpop.f32.mrb[0].mxu0
      %v773 = vadd.f32 %v283, %v772
      %v774 = vpop.f32.mrb[0].mxu0
      %v775 = vpop.f32.mrb[0].mxu0
      %v776 = vadd.f32 %v283, %v775
      %v777 = vpop.f32.mrb[0].mxu0
      %778 = vmatprep.mubr.bf16.mxu0 %v470
      %779 = vmatmul.mubr.bf16.gmra.mrb[0].mxu0 %v469
      %v780 = vpop.f32.mrb[0].mxu0
      %v781 = vadd.f32 %v283, %v780
      %v782 = vpop.f32.mrb[0].mxu0
      %v783 = vpop.f32.mrb[0].mxu0
      %v784 = vadd.f32 %v283, %v783
      %v785 = vpop.f32.mrb[0].mxu0
      %786 = vmatprep.mubr.bf16.mxu0 %v473
      %787 = vmatmul.mubr.bf16.gmra.mrb[0].mxu0 %v472
      %v788 = vpop.f32.mrb[0].mxu0
      %v789 = vadd.f32 %v283, %v788
      %v790 = vpop.f32.mrb[0].mxu0
      %v791 = vpop.f32.mrb[0].mxu0
      %v792 = vadd.f32 %v283, %v791
      %v793 = vpop.f32.mrb[0].mxu0
      %794 = vmatprep.mubr.bf16.mxu0 %v476
      %795 = vmatmul.mubr.bf16.gmra.mrb[0].mxu0 %v475
      %v796 = vpop.f32.mrb[0].mxu0
      %v797 = vadd.f32 %v283, %v796
      %v798 = vpop.f32.mrb[0].mxu0
      %v799 = vpop.f32.mrb[0].mxu0
      %v800 = vadd.f32 %v283, %v799
      %v801 = vpop.f32.mrb[0].mxu0
      %802 = vmatprep.mubr.bf16.mxu0 %v479
      %803 = vmatmul.mubr.bf16.gmra.mrb[0].mxu0 %v478
      %v804 = vpop.f32.mrb[0].mxu0
      %v805 = vadd.f32 %v283, %v804
      %v806 = vpop.f32.mrb[0].mxu0
      %v807 = vpop.f32.mrb[0].mxu0
      %v808 = vadd.f32 %v283, %v807
      %v809 = vpop.f32.mrb[0].mxu0
      %810 = vmatprep.mubr.bf16.mxu0 %v482
      %811 = vmatmul.mubr.bf16.gmra.mrb[0].mxu0 %v481
      %v812 = vpop.f32.mrb[0].mxu0
      %v813 = vadd.f32 %v283, %v812
      %v814 = vpop.f32.mrb[0].mxu0
      %v815 = vpop.f32.mrb[0].mxu0
      %v816 = vadd.f32 %v283, %v815
      %v817 = vpop.f32.mrb[0].mxu0
      %818 = vmatprep.mubr.bf16.mxu0 %v485
      %819 = vmatmul.mubr.bf16.gmra.mrb[0].mxu0 %v484
      %v820 = vpop.f32.mrb[0].mxu0
      %v821 = vadd.f32 %v283, %v820
      %v822 = vpop.f32.mrb[0].mxu0
      %v823 = vpop.f32.mrb[0].mxu0
      %v824 = vadd.f32 %v283, %v823
      %v825 = vpop.f32.mrb[0].mxu0
      %826 = vmatprep.mubr.bf16.mxu0 %v488
      %827 = vmatmul.mubr.bf16.gmra.mrb[0].mxu0 %v487
      %v828 = vpop.f32.mrb[0].mxu0
      %v829 = vadd.f32 %v283, %v828
      %v830 = vpop.f32.mrb[0].mxu0
      %v831 = vpop.f32.mrb[0].mxu0
      %v832 = vadd.f32 %v283, %v831
      %v833 = vpop.f32.mrb[0].mxu0
      %834 = vmatprep.mubr.bf16.mxu0 %v491
      %835 = vmatmul.mubr.bf16.gmra.mrb[0].mxu0 %v490
      %v836 = vpop.f32.mrb[0].mxu0
      %v837 = vadd.f32 %v283, %v836
      %v838 = vpop.f32.mrb[0].mxu0
      %v839 = vpop.f32.mrb[0].mxu0
      %v840 = vadd.f32 %v283, %v839
      %v841 = vpop.f32.mrb[0].mxu0
      %842 = vdwg.mxu0
      %843 = vmatprep.subr.bf16.mxu0 0
      %844 = vmatpush1.bf16.msra.mxu0 %v613
      %845 = vmatprep.subr.bf16.mxu0 0
      %846 = vmatpush1.bf16.msra.mxu0 %v614
      %847 = vmatprep.subr.bf16.mxu0 0
      %848 = vmatpush1.bf16.msra.mxu0 0
      %849 = vmatprep.subr.bf16.mxu0 0
      %850 = vmatpush1.bf16.msra.mxu0 0
      %851 = vmatprep.subr.bf16.mxu0 0
      %852 = vmatpush1.bf16.msra.mxu0 0
      %853 = vmatprep.subr.bf16.mxu0 0
      %854 = vmatpush1.bf16.msra.mxu0 0
      %855 = vmatprep.subr.bf16.mxu0 0
      %856 = vmatpush1.bf16.msra.mxu0 0
      %857 = vmatprep.subr.bf16.mxu0 0
      %858 = vmatpush1.bf16.msra.mxu0 0
      %859 = vmatprep.subr.bf16.mxu0 0
      %860 = vmatpush1.bf16.msra.mxu0 0
      %861 = vmatprep.subr.bf16.mxu0 0
      %862 = vmatpush1.bf16.msra.mxu0 0
      %863 = vmatprep.subr.bf16.mxu0 0
      %864 = vmatpush1.bf16.msra.mxu0 0
      %865 = vmatprep.subr.bf16.mxu0 0
      %866 = vmatpush1.bf16.msra.mxu0 0
      %867 = vmatprep.subr.bf16.mxu0 0
      %868 = vmatpush1.bf16.msra.mxu0 0
      %869 = vmatprep.subr.bf16.mxu0 0
      %870 = vmatpush1.bf16.msra.mxu0 0
      %871 = vmatprep.subr.bf16.mxu0 0
      %872 = vmatpush1.bf16.msra.mxu0 0
      %873 = vmatprep.subr.bf16.mxu0 0
      %874 = vmatpush1.bf16.msra.mxu0 0
      %875 = vmatprep.mubr.bf16.mxu0 0
      %876 = vmatmul.mubr.bf16.gmra.mrb[0].mxu0 %v635
      %v877 = vpop.f32.mrb[0].mxu0
      %v878 = vadd.f32 %v717, %v877
      %v879 = vpop.f32.mrb[0].mxu0
      %v880 = vpop.f32.mrb[0].mxu0
      %v881 = vadd.f32 %v720, %v880
      %v882 = vpop.f32.mrb[0].mxu0
      %883 = vmatprep.mubr.bf16.mxu0 0
      %884 = vmatmul.mubr.bf16.gmra.mrb[0].mxu0 %v638
      %v885 = vpop.f32.mrb[0].mxu0
      %v886 = vadd.f32 %v725, %v885
      %v887 = vpop.f32.mrb[0].mxu0
      %v888 = vpop.f32.mrb[0].mxu0
      %v889 = vadd.f32 %v728, %v888
      %v890 = vpop.f32.mrb[0].mxu0
      %891 = vmatprep.mubr.bf16.mxu0 0
      %892 = vmatmul.mubr.bf16.gmra.mrb[0].mxu0 %v641
      %v893 = vpop.f32.mrb[0].mxu0
      %v894 = vadd.f32 %v733, %v893
      %v895 = vpop.f32.mrb[0].mxu0
      %v896 = vpop.f32.mrb[0].mxu0
      %v897 = vadd.f32 %v736, %v896
      %v898 = vpop.f32.mrb[0].mxu0
      %899 = vmatprep.mubr.bf16.mxu0 0
      %900 = vmatmul.mubr.bf16.gmra.mrb[0].mxu0 %v644
      %v901 = vpop.f32.mrb[0].mxu0
      %v902 = vadd.f32 %v741, %v901
      %v903 = vpop.f32.mrb[0].mxu0
      %v904 = vpop.f32.mrb[0].mxu0
      %v905 = vadd.f32 %v744, %v904
      %v906 = vpop.f32.mrb[0].mxu0
      %907 = vmatprep.mubr.bf16.mxu0 0
      %908 = vmatmul.mubr.bf16.gmra.mrb[0].mxu0 %v647
      %v909 = vpop.f32.mrb[0].mxu0
      %v910 = vadd.f32 %v749, %v909
      %v911 = vpop.f32.mrb[0].mxu0
      %v912 = vpop.f32.mrb[0].mxu0
      %v913 = vadd.f32 %v752, %v912
      %v914 = vpop.f32.mrb[0].mxu0
      %915 = vmatprep.mubr.bf16.mxu0 0
      %916 = vmatmul.mubr.bf16.gmra.mrb[0].mxu0 %v650
      %v917 = vpop.f32.mrb[0].mxu0
      %v918 = vadd.f32 %v757, %v917
      %v919 = vpop.f32.mrb[0].mxu0
      %v920 = vpop.f32.mrb[0].mxu0
      %v921 = vadd.f32 %v760, %v920
      %v922 = vpop.f32.mrb[0].mxu0
      %923 = vmatprep.mubr.bf16.mxu0 0
      %924 = vmatmul.mubr.bf16.gmra.mrb[0].mxu0 %v653
      %v925 = vpop.f32.mrb[0].mxu0
      %v926 = vadd.f32 %v765, %v925
      %v927 = vpop.f32.mrb[0].mxu0
      %v928 = vpop.f32.mrb[0].mxu0
      %v929 = vadd.f32 %v768, %v928
      %v930 = vpop.f32.mrb[0].mxu0
      %931 = vmatprep.mubr.bf16.mxu0 0
      %932 = vmatmul.mubr.bf16.gmra.mrb[0].mxu0 %v656
      %v933 = vpop.f32.mrb[0].mxu0
      %v934 = vadd.f32 %v773, %v933
      %v935 = vpop.f32.mrb[0].mxu0
      %v936 = vpop.f32.mrb[0].mxu0
      %v937 = vadd.f32 %v776, %v936
      %v938 = vpop.f32.mrb[0].mxu0
      %939 = vmatprep.mubr.bf16.mxu0 0
      %940 = vmatmul.mubr.bf16.gmra.mrb[0].mxu0 %v659
      %v941 = vpop.f32.mrb[0].mxu0
      %v942 = vadd.f32 %v781, %v941
      %v943 = vpop.f32.mrb[0].mxu0
      %v944 = vpop.f32.mrb[0].mxu0
      %v945 = vadd.f32 %v784, %v944
      %v946 = vpop.f32.mrb[0].mxu0
      %947 = vmatprep.mubr.bf16.mxu0 0
      %948 = vmatmul.mubr.bf16.gmra.mrb[0].mxu0 %v662
      %v949 = vpop.f32.mrb[0].mxu0
      %v950 = vadd.f32 %v789, %v949
      %v951 = vpop.f32.mrb[0].mxu0
      %v952 = vpop.f32.mrb[0].mxu0
      %v953 = vadd.f32 %v792, %v952
      %v954 = vpop.f32.mrb[0].mxu0
      %955 = vmatprep.mubr.bf16.mxu0 0
      %956 = vmatmul.mubr.bf16.gmra.mrb[0].mxu0 %v665
      %v957 = vpop.f32.mrb[0].mxu0
      %v958 = vadd.f32 %v797, %v957
      %v959 = vpop.f32.mrb[0].mxu0
      %v960 = vpop.f32.mrb[0].mxu0
      %v961 = vadd.f32 %v800, %v960
      %v962 = vpop.f32.mrb[0].mxu0
      %963 = vmatprep.mubr.bf16.mxu0 0
      %964 = vmatmul.mubr.bf16.gmra.mrb[0].mxu0 %v668
      %v965 = vpop.f32.mrb[0].mxu0
      %v966 = vadd.f32 %v805, %v965
      %v967 = vpop.f32.mrb[0].mxu0
      %v968 = vpop.f32.mrb[0].mxu0
      %v969 = vadd.f32 %v808, %v968
      %v970 = vpop.f32.mrb[0].mxu0
      %971 = vmatprep.mubr.bf16.mxu0 0
      %972 = vmatmul.mubr.bf16.gmra.mrb[0].mxu0 %v671
      %v973 = vpop.f32.mrb[0].mxu0
      %v974 = vadd.f32 %v813, %v973
      %v975 = vpop.f32.mrb[0].mxu0
      %v976 = vpop.f32.mrb[0].mxu0
      %v977 = vadd.f32 %v816, %v976
      %v978 = vpop.f32.mrb[0].mxu0
      %979 = vmatprep.mubr.bf16.mxu0 0
      %980 = vmatmul.mubr.bf16.gmra.mrb[0].mxu0 %v674
      %v981 = vpop.f32.mrb[0].mxu0
      %v982 = vadd.f32 %v821, %v981
      %v983 = vpop.f32.mrb[0].mxu0
      %v984 = vpop.f32.mrb[0].mxu0
      %v985 = vadd.f32 %v824, %v984
      %v986 = vpop.f32.mrb[0].mxu0
      %987 = vmatprep.mubr.bf16.mxu0 0
      %988 = vmatmul.mubr.bf16.gmra.mrb[0].mxu0 %v677
      %v989 = vpop.f32.mrb[0].mxu0
      %v990 = vadd.f32 %v829, %v989
      %v991 = vpop.f32.mrb[0].mxu0
      %v992 = vpop.f32.mrb[0].mxu0
      %v993 = vadd.f32 %v832, %v992
      %v994 = vpop.f32.mrb[0].mxu0
      %995 = vmatprep.mubr.bf16.mxu0 0
      %996 = vmatmul.mubr.bf16.gmra.mrb[0].mxu0 %v680
      %v997 = vpop.f32.mrb[0].mxu0
      %v998 = vadd.f32 %v837, %v997
      %v999 = vpop.f32.mrb[0].mxu0
      %v1000 = vpop.f32.mrb[0].mxu0
      %v1001 = vadd.f32 %v840, %v1000
      %v1002 = vpop.f32.mrb[0].mxu0
      %1003 = vdwg.mxu0
      %v1004 = vmax.f32 %v878, 0.0
      %v1005 = vmax.f32 %v881, 0.0
      %v1006 = vmax.f32 %v886, 0.0
      %v1007 = vmax.f32 %v889, 0.0
      %v1008 = vmax.f32 %v894, 0.0
      %v1009 = vmax.f32 %v897, 0.0
      %v1010 = vmax.f32 %v902, 0.0
      %v1011 = vmax.f32 %v905, 0.0
      %v1012 = vmax.f32 %v910, 0.0
      %v1013 = vmax.f32 %v913, 0.0
      %v1014 = vmax.f32 %v918, 0.0
      %v1015 = vmax.f32 %v921, 0.0
      %v1016 = vmax.f32 %v926, 0.0
      %v1017 = vmax.f32 %v929, 0.0
      %v1018 = vmax.f32 %v934, 0.0
      %v1019 = vmax.f32 %v937, 0.0
      %v1020 = vmax.f32 %v942, 0.0
      %v1021 = vmax.f32 %v945, 0.0
      %v1022 = vmax.f32 %v950, 0.0
      %v1023 = vmax.f32 %v953, 0.0
      %v1024 = vmax.f32 %v958, 0.0
      %v1025 = vmax.f32 %v961, 0.0
      %v1026 = vmax.f32 %v966, 0.0
      %v1027 = vmax.f32 %v969, 0.0
      %v1028 = vmax.f32 %v974, 0.0
      %v1029 = vmax.f32 %v977, 0.0
      %v1030 = vmax.f32 %v982, 0.0
      %v1031 = vmax.f32 %v985, 0.0
      %v1032 = vmax.f32 %v990, 0.0
      %v1033 = vmax.f32 %v993, 0.0
      %v1034 = vmax.f32 %v998, 0.0
      %v1035 = vmax.f32 %v1001, 0.0
      %1036 = vst [vmem:[%s175] sm:$0xff] %v1004
      %1037 = vst [vmem:[%s175 + $0x8] sm:$0xff] %v1005
      %1038 = vst [vmem:[%s175 + $0x10] sm:$0xff] %v1006
      %1039 = vst [vmem:[%s175 + $0x18] sm:$0xff] %v1007
      %1040 = vst [vmem:[%s175 + $0x20] sm:$0xff] %v1008
      %1041 = vst [vmem:[%s175 + $0x28] sm:$0xff] %v1009
      %1042 = vst [vmem:[%s175 + $0x30] sm:$0xff] %v1010
      %1043 = vst [vmem:[%s175 + $0x38] sm:$0xff] %v1011
      %1044 = vst [vmem:[%s175 + $0x40] sm:$0xff] %v1012
      %1045 = vst [vmem:[%s175 + $0x48] sm:$0xff] %v1013
      %1046 = vst [vmem:[%s175 + $0x50] sm:$0xff] %v1014
      %1047 = vst [vmem:[%s175 + $0x58] sm:$0xff] %v1015
      %1048 = vst [vmem:[%s175 + $0x60] sm:$0xff] %v1016
      %1049 = vst [vmem:[%s175 + $0x68] sm:$0xff] %v1017
      %1050 = vst [vmem:[%s175 + $0x70] sm:$0xff] %v1018
      %1051 = vst [vmem:[%s175 + $0x78] sm:$0xff] %v1019
      %1052 = vst [vmem:[%s175 + $0x80] sm:$0xff] %v1020
      %1053 = vst [vmem:[%s175 + $0x88] sm:$0xff] %v1021
      %1054 = vst [vmem:[%s175 + $0x90] sm:$0xff] %v1022
      %1055 = vst [vmem:[%s175 + $0x98] sm:$0xff] %v1023
      %1056 = vst [vmem:[%s175 + $0xa0] sm:$0xff] %v1024
      %1057 = vst [vmem:[%s175 + $0xa8] sm:$0xff] %v1025
      %1058 = vst [vmem:[%s175 + $0xb0] sm:$0xff] %v1026
      %1059 = vst [vmem:[%s175 + $0xb8] sm:$0xff] %v1027
      %1060 = vst [vmem:[%s175 + $0xc0] sm:$0xff] %v1028
      %1061 = vst [vmem:[%s175 + $0xc8] sm:$0xff] %v1029
      %1062 = vst [vmem:[%s175 + $0xd0] sm:$0xff] %v1030
      %1063 = vst [vmem:[%s175 + $0xd8] sm:$0xff] %v1031
      %1064 = vst [vmem:[%s175 + $0xe0] sm:$0xff] %v1032
      %1065 = vst [vmem:[%s175 + $0xe8] sm:$0xff] %v1033
      %1066 = vst [vmem:[%s175 + $0xf0] sm:$0xff] %v1034
      %1067 = vst [vmem:[%s175 + $0xf8] sm:$0xff] %v1035
      %s1068 = smul.u32 32, %s14
      %p1069 = scmp.lt.s32.totalorder %s1068, 63
      %s1070 = scalar_select %p1069, %s1068, 63
      %s1071 = smul.addr %s1070, 8
      %s1072 = scalar_lea.vmem %s3, %s1071
      // Predicated region
      $region33: #{fashion_cnn_forward.7} parent=31 // pred_check
        %p1073 = pneg %p100
      $region34: #{fashion_cnn_forward.7} parent=31 // pred_check_branch
        %1075 = sbr.rel (%p1073) target = $region36
      $region35: #{fashion_cnn_forward.7} parent=31 // pred_region
        %s1076 = smul.u32 32, %s14
      $region36: #{fashion_cnn_forward.7} parent=31 // pred_fallthru
        _
    $region32: #{fashion_cnn_forward.7} parent=5 // pred_fallthru
      _
    %p1077 = scmp.le.s32.totalorder 2, %s9
    // Predicated region
    $region37: #{fashion_cnn_forward.7} parent=5 // pred_check
      %p1078 = pneg %p1077
    $region38: #{fashion_cnn_forward.7} parent=5 // pred_check_branch
      %1080 = sbr.rel (%p1078) target = $region40
    $region39: #{fashion_cnn_forward.7} parent=5 // pred_region
      %s1081 = ssub.s32 %s9, 2
      // Predicated region
      $region41: #{fashion_cnn_forward.7} parent=39 // pred_check
        %p1082 = pneg %p106
      $region42: #{fashion_cnn_forward.7} parent=39 // pred_check_branch
        %1084 = sbr.rel (%p1082) target = $region44
      $region43: #{fashion_cnn_forward.7} parent=39 // pred_region
        %s1085 = smul.u32 32, %s15
        %p1086 = scmp.lt.s32.totalorder %s1085, 63
        %s1087 = scalar_select %p1086, %s1085, 63
        %s1088 = smul.addr %s1087, 8
        %s1089 = scalar_lea.vmem %s3, %s1088
      $region44: #{fashion_cnn_forward.7} parent=39 // pred_fallthru
        _
    $region40: #{fashion_cnn_forward.7} parent=5 // pred_fallthru
      _
  $region6: #{fashion_cnn_forward.7} parent=0 // loop_footer
    %s13 = sadd.s32 1, %s9
  $region7: #{fashion_cnn_forward.7} parent=0 // loop_footer_branch
    %8 = sbr.rel target = $region3
  $region8: #{fashion_cnn_forward.7} parent=0 // loop_exit
    _

// kernel: fashion_cnn_forward.8
$region0: #{fashion_cnn_forward.8}
  #allocation0 [shape = 'u32[]', space=smem, size = 0x4, offset = 0x4, fixed_abs, tag = 'smem constant byte address 0x4 - core index']
  #allocation1 [shape = 'u32[144,128]{1,0:T(1,128)}', space=vmem, size = 0x12000, scoped, tag = 'internal scratch']
  %s0 = inlined_call_operand.vmem [shape: f32[16,512], index: 0, kind: input, shape index: {}]
  %s1 = inlined_call_operand.vmem [shape: f32[16,512], index: 1, kind: input, shape index: {}]
  %s2 = inlined_call_operand.vmem [shape: f32[16,512], index: 2, kind: input, shape index: {}]
  %s3 = inlined_call_operand.vmem [shape: f32[16,512], index: 3, kind: input, shape index: {}]
  %s4 = inlined_call_operand.vmem [shape: f32[16,512], index: 4, kind: output, shape index: {}]
  %s5 = sld [smem:[#allocation0]]
  $region26: #{fashion_cnn_forward.8} parent=0
    _
  %s7 = ssub.s32 1, %s5
  %s8 = scalar_select 0, %s7, %s5
  // Predicated region
  $region2: #{fashion_cnn_forward.8} parent=0 // pred_check
    _
  $region3: #{fashion_cnn_forward.8} parent=0 // pred_check_branch
    %10 = sbr.rel (0) target = $region5
  $region4: #{fashion_cnn_forward.8} parent=0 // pred_region
    _
  $region5: #{fashion_cnn_forward.8} parent=0 // pred_fallthru
    _
  // Predicated region
  $region6: #{fashion_cnn_forward.8} parent=0 // pred_check
    _
  $region7: #{fashion_cnn_forward.8} parent=0 // pred_check_branch
    %12 = sbr.rel (0) target = $region9
  $region8: #{fashion_cnn_forward.8} parent=0 // pred_region
    _
  $region9: #{fashion_cnn_forward.8} parent=0 // pred_fallthru
    _
  // Predicated region
  $region10: #{fashion_cnn_forward.8} parent=0 // pred_check
    _
  $region11: #{fashion_cnn_forward.8} parent=0 // pred_check_branch
    %14 = sbr.rel (0) target = $region13
  $region12: #{fashion_cnn_forward.8} parent=0 // pred_region
    _
  $region13: #{fashion_cnn_forward.8} parent=0 // pred_fallthru
    _
  // Predicated region
  $region14: #{fashion_cnn_forward.8} parent=0 // pred_check
    _
  $region15: #{fashion_cnn_forward.8} parent=0 // pred_check_branch
    %16 = sbr.rel (0) target = $region17
  $region16: #{fashion_cnn_forward.8} parent=0 // pred_region
    _
  $region17: #{fashion_cnn_forward.8} parent=0 // pred_fallthru
    _
  %v17 = vld [vmem:[%s0] sm:$0xff]
  %v18 = vld [vmem:[%s0 + $0x8] sm:$0xff]
  %v19 = vld [vmem:[%s0 + $0x10] sm:$0xff]
  %v20 = vld [vmem:[%s0 + $0x18] sm:$0xff]
  %v21 = vld [vmem:[%s0 + $0x20] sm:$0xff]
  %v22 = vld [vmem:[%s0 + $0x28] sm:$0xff]
  %v23 = vld [vmem:[%s0 + $0x30] sm:$0xff]
  %v24 = vld [vmem:[%s0 + $0x38] sm:$0xff]
  %v25 = vld [vmem:[%s1] sm:$0xff]
  %v26 = vld [vmem:[%s1 + $0x8] sm:$0xff]
  %v27 = vld [vmem:[%s1 + $0x10] sm:$0xff]
  %v28 = vld [vmem:[%s1 + $0x18] sm:$0xff]
  %v29 = vld [vmem:[%s1 + $0x20] sm:$0xff]
  %v30 = vld [vmem:[%s1 + $0x28] sm:$0xff]
  %v31 = vld [vmem:[%s1 + $0x30] sm:$0xff]
  %v32 = vld [vmem:[%s1 + $0x38] sm:$0xff]
  %v33 = vmax.f32 %v17, %v25
  %v34 = vmax.f32 %v18, %v26
  %v35 = vmax.f32 %v19, %v27
  %v36 = vmax.f32 %v20, %v28
  %v37 = vmax.f32 %v21, %v29
  %v38 = vmax.f32 %v22, %v30
  %v39 = vmax.f32 %v23, %v31
  %v40 = vmax.f32 %v24, %v32
  %v41 = vld [vmem:[%s2] sm:$0xff]
  %v42 = vld [vmem:[%s2 + $0x8] sm:$0xff]
  %v43 = vld [vmem:[%s2 + $0x10] sm:$0xff]
  %v44 = vld [vmem:[%s2 + $0x18] sm:$0xff]
  %v45 = vld [vmem:[%s2 + $0x20] sm:$0xff]
  %v46 = vld [vmem:[%s2 + $0x28] sm:$0xff]
  %v47 = vld [vmem:[%s2 + $0x30] sm:$0xff]
  %v48 = vld [vmem:[%s2 + $0x38] sm:$0xff]
  %v49 = vld [vmem:[%s3] sm:$0xff]
  %v50 = vld [vmem:[%s3 + $0x8] sm:$0xff]
  %v51 = vld [vmem:[%s3 + $0x10] sm:$0xff]
  %v52 = vld [vmem:[%s3 + $0x18] sm:$0xff]
  %v53 = vld [vmem:[%s3 + $0x20] sm:$0xff]
  %v54 = vld [vmem:[%s3 + $0x28] sm:$0xff]
  %v55 = vld [vmem:[%s3 + $0x30] sm:$0xff]
  %v56 = vld [vmem:[%s3 + $0x38] sm:$0xff]
  %v57 = vmax.f32 %v41, %v49
  %v58 = vmax.f32 %v42, %v50
  %v59 = vmax.f32 %v43, %v51
  %v60 = vmax.f32 %v44, %v52
  %v61 = vmax.f32 %v45, %v53
  %v62 = vmax.f32 %v46, %v54
  %v63 = vmax.f32 %v47, %v55
  %v64 = vmax.f32 %v48, %v56
  %v65 = vmax.f32 %v33, %v57
  %v66 = vmax.f32 %v34, %v58
  %v67 = vmax.f32 %v35, %v59
  %v68 = vmax.f32 %v36, %v60
  %v69 = vmax.f32 %v37, %v61
  %v70 = vmax.f32 %v38, %v62
  %v71 = vmax.f32 %v39, %v63
  %v72 = vmax.f32 %v40, %v64
  %73 = vst [vmem:[%s4] sm:$0xff] %v65
  %74 = vst [vmem:[%s4 + $0x8] sm:$0xff] %v66
  %75 = vst [vmem:[%s4 + $0x10] sm:$0xff] %v67
  %76 = vst [vmem:[%s4 + $0x18] sm:$0xff] %v68
  %77 = vst [vmem:[%s4 + $0x20] sm:$0xff] %v69
  %78 = vst [vmem:[%s4 + $0x28] sm:$0xff] %v70
  %79 = vst [vmem:[%s4 + $0x30] sm:$0xff] %v71
  %80 = vst [vmem:[%s4 + $0x38] sm:$0xff] %v72
  // Predicated region
  $region18: #{fashion_cnn_forward.8} parent=0 // pred_check
    _
  $region19: #{fashion_cnn_forward.8} parent=0 // pred_check_branch
    %82 = sbr.rel (0) target = $region21
  $region20: #{fashion_cnn_forward.8} parent=0 // pred_region
    _
  $region21: #{fashion_cnn_forward.8} parent=0 // pred_fallthru
    _
  // Predicated region
  $region22: #{fashion_cnn_forward.8} parent=0 // pred_check
    _
  $region23: #{fashion_cnn_forward.8} parent=0 // pred_check_branch
    %84 = sbr.rel (0) target = $region25
  $region24: #{fashion_cnn_forward.8} parent=0 // pred_region
    _
  $region25: #{fashion_cnn_forward.8} parent=0 // pred_fallthru
    _

// kernel: fashion_cnn_forward.9
$region0: #{fashion_cnn_forward.9}
  #allocation0 [shape = 'u32[]', space=smem, size = 0x4, offset = 0x4, fixed_abs, tag = 'smem constant byte address 0x4 - core index']
  #allocation1 [shape = 'u32[144,128]{1,0:T(1,128)}', space=vmem, size = 0x12000, scoped, tag = 'internal scratch']
  #allocation2 [shape = 'f32[8,1024]{1,0:T(8,128)}', space=vmem, size = 0x8000, scoped, tag = 'scratch operand']
  %s0 = inlined_call_operand.vmem [shape: bf16[8,3328], index: 0, kind: input, shape index: {}]
  %s1 = inlined_call_operand.vmem [shape: bf16[3328,1024], index: 1, kind: input, shape index: {}]
  %s2 = inlined_call_operand.vmem [shape: f32[1,1024], index: 2, kind: input, shape index: {}]
  %s3 = inlined_call_operand.vmem [shape: bf16[1024,128], index: 3, kind: input, shape index: {}]
  %s4 = inlined_call_operand.vmem [shape: f32[1,128], index: 4, kind: input, shape index: {}]
  %s5 = inlined_call_operand.vmem [shape: f32[8,128], index: 5, kind: output, shape index: {}]
  %s6 = sld [smem:[#allocation0]]
  $region61: #{fashion_cnn_forward.9} parent=0
    _
  %s8 = ssub.s32 1, %s6
  %s9 = scalar_select 0, %s8, %s6
  loop: start=0, step=1, limit=15
  $region2: #{fashion_cnn_forward.9} parent=0 // loop_pre_header
    _
  $region3: #{fashion_cnn_forward.9} parent=0 // loop_header
    %s11 = sphi 0, %s15
    %p12 = scmp.ge.s32.totalorder %s11, 15
    %s18 = sphi 0, %s30
    %s19 = sphi 0, %s26
    %s20 = sphi 0, %s18
    %s21 = sphi 0, %s19
    %s22 = sphi 0, %s20
    %s23 = sphi 0, %s21
    %s35 = sphi 0, %s37
    %s38 = sphi 0, %s35
    %s39 = sphi 0, %s38
    %s55 = sphi 0, %s39
    %s61 = sphi 0, %s63
    %s64 = sphi 0, %s61
    %s65 = sphi 0, %s64
    %s81 = sphi 0, %s65
    %s85 = sphi 0, %s85
    %s87 = sphi 0, %s85
    %s88 = sphi 0, %s87
    %s102 = sphi 0, %s88
    %s106 = sphi 0, %s106
    %s108 = sphi 0, %s106
    %s109 = sphi 0, %s108
    %s123 = sphi 0, %s109
    %s127 = sphi 0, %s127
    %s129 = sphi 0, %s127
    %s130 = sphi 0, %s129
    %s144 = sphi 0, %s130
    %s150 = sphi 0, %s152
    %s153 = sphi 0, %s150
    %s154 = sphi 0, %s153
    %s170 = sphi 0, %s154
  $region4: #{fashion_cnn_forward.9} parent=0 // loop_header_branch
    %14 = sbr.rel (%p12) target = $region8
  $region5: #{fashion_cnn_forward.9} parent=0 // loop_body
    %s16 = ssub.s32 %s11, 1
    %s17 = ssub.s32 %s11, 2
    %s24 = sadd.s32 1, %s19
    %p25 = scmp.ge.s32.totalorder %s24, 13
    %s26 = scalar_select %p25, 0, %s24
    %s27 = sadd.s32 1, %s18
    %s28 = scalar_select %p25, %s27, %s18
    %p29 = scmp.ge.s32.totalorder %s28, 1
    %s30 = scalar_select %p29, 0, %s28
    %s31 = ssub.s32 %s18, %s30
    %s32 = ssub.s32 %s19, %s26
    %s33 = sor.u32 %s31, %s32
    %p34 = scmp.eq.s32.totalorder %s33, 0
    %s36 = sadd.s32 %s35, 1
    %s37 = scalar_select %p34, %s35, %s36
    %p40 = pneg %p34
    %p41 = scmp.eq.s32.totalorder %s11, 12
    %p42 = por %p40, %p41
    %p43 = scmp.ne.s32.totalorder %s35, %s38
    %p44 = scmp.eq.s32.totalorder %s11, 0
    %p45 = por %p43, %p44
    %p46 = scmp.ne.s32.totalorder %s35, %s38
    %p47 = scmp.eq.s32.totalorder %s16, 12
    %p48 = por %p46, %p47
    %p49 = scmp.ne.s32.totalorder %s38, %s39
    %p50 = scmp.eq.s32.totalorder %s16, 0
    %p51 = por %p49, %p50
    %p52 = scmp.ne.s32.totalorder %s38, %s39
    %p53 = scmp.eq.s32.totalorder %s17, 12
    %p54 = por %p52, %p53
    %p56 = scmp.ne.s32.totalorder %s39, %s55
    %p57 = scmp.eq.s32.totalorder %s17, 0
    %p58 = por %p56, %p57
    %s59 = ssub.s32 %s19, %s26
    %p60 = scmp.eq.s32.totalorder %s59, 0
    %s62 = sadd.s32 %s61, 1
    %s63 = scalar_select %p60, %s61, %s62
    %p66 = pneg %p60
    %p67 = scmp.eq.s32.totalorder %s11, 12
    %p68 = por %p66, %p67
    %p69 = scmp.ne.s32.totalorder %s61, %s64
    %p70 = scmp.eq.s32.totalorder %s11, 0
    %p71 = por %p69, %p70
    %p72 = scmp.ne.s32.totalorder %s61, %s64
    %p73 = scmp.eq.s32.totalorder %s16, 12
    %p74 = por %p72, %p73
    %p75 = scmp.ne.s32.totalorder %s64, %s65
    %p76 = scmp.eq.s32.totalorder %s16, 0
    %p77 = por %p75, %p76
    %p78 = scmp.ne.s32.totalorder %s64, %s65
    %p79 = scmp.eq.s32.totalorder %s17, 12
    %p80 = por %p78, %p79
    %p82 = scmp.ne.s32.totalorder %s65, %s81
    %p83 = scmp.eq.s32.totalorder %s17, 0
    %p84 = por %p82, %p83
    %s86 = sadd.s32 %s85, 1
    %p89 = scmp.eq.s32.totalorder %s11, 12
    %p90 = scmp.ne.s32.totalorder %s85, %s87
    %p91 = scmp.eq.s32.totalorder %s11, 0
    %p92 = por %p90, %p91
    %p93 = scmp.ne.s32.totalorder %s85, %s87
    %p94 = scmp.eq.s32.totalorder %s16, 12
    %p95 = por %p93, %p94
    %p96 = scmp.ne.s32.totalorder %s87, %s88
    %p97 = scmp.eq.s32.totalorder %s16, 0
    %p98 = por %p96, %p97
    %p99 = scmp.ne.s32.totalorder %s87, %s88
    %p100 = scmp.eq.s32.totalorder %s17, 12
    %p101 = por %p99, %p100
    %p103 = scmp.ne.s32.totalorder %s88, %s102
    %p104 = scmp.eq.s32.totalorder %s17, 0
    %p105 = por %p103, %p104
    %s107 = sadd.s32 %s106, 1
    %p110 = scmp.eq.s32.totalorder %s11, 12
    %p111 = scmp.ne.s32.totalorder %s106, %s108
    %p112 = scmp.eq.s32.totalorder %s11, 0
    %p113 = por %p111, %p112
    %p114 = scmp.ne.s32.totalorder %s106, %s108
    %p115 = scmp.eq.s32.totalorder %s16, 12
    %p116 = por %p114, %p115
    %p117 = scmp.ne.s32.totalorder %s108, %s109
    %p118 = scmp.eq.s32.totalorder %s16, 0
    %p119 = por %p117, %p118
    %p120 = scmp.ne.s32.totalorder %s108, %s109
    %p121 = scmp.eq.s32.totalorder %s17, 12
    %p122 = por %p120, %p121
    %p124 = scmp.ne.s32.totalorder %s109, %s123
    %p125 = scmp.eq.s32.totalorder %s17, 0
    %p126 = por %p124, %p125
    %s128 = sadd.s32 %s127, 1
    %p131 = scmp.eq.s32.totalorder %s11, 12
    %p132 = scmp.ne.s32.totalorder %s127, %s129
    %p133 = scmp.eq.s32.totalorder %s11, 0
    %p134 = por %p132, %p133
    %p135 = scmp.ne.s32.totalorder %s127, %s129
    %p136 = scmp.eq.s32.totalorder %s16, 12
    %p137 = por %p135, %p136
    %p138 = scmp.ne.s32.totalorder %s129, %s130
    %p139 = scmp.eq.s32.totalorder %s16, 0
    %p140 = por %p138, %p139
    %p141 = scmp.ne.s32.totalorder %s129, %s130
    %p142 = scmp.eq.s32.totalorder %s17, 12
    %p143 = por %p141, %p142
    %p145 = scmp.ne.s32.totalorder %s130, %s144
    %p146 = scmp.eq.s32.totalorder %s17, 0
    %p147 = por %p145, %p146
    %s148 = ssub.s32 %s18, %s30
    %p149 = scmp.eq.s32.totalorder %s148, 0
    %s151 = sadd.s32 %s150, 1
    %s152 = scalar_select %p149, %s150, %s151
    %p155 = pneg %p149
    %p156 = scmp.eq.s32.totalorder %s11, 12
    %p157 = por %p155, %p156
    %p158 = scmp.ne.s32.totalorder %s150, %s153
    %p159 = scmp.eq.s32.totalorder %s11, 0
    %p160 = por %p158, %p159
    %p161 = scmp.ne.s32.totalorder %s150, %s153
    %p162 = scmp.eq.s32.totalorder %s16, 12
    %p163 = por %p161, %p162
    %p164 = scmp.ne.s32.totalorder %s153, %s154
    %p165 = scmp.eq.s32.totalorder %s16, 0
    %p166 = por %p164, %p165
    %p167 = scmp.ne.s32.totalorder %s153, %s154
    %p168 = scmp.eq.s32.totalorder %s17, 12
    %p169 = por %p167, %p168
    %p171 = scmp.ne.s32.totalorder %s154, %s170
    %p172 = scmp.eq.s32.totalorder %s17, 0
    %p173 = por %p171, %p172
    %p174 = scmp.le.s32.totalorder 1, %s11
    %p175 = scmp.lt.s32.totalorder %s11, 14
    %p176 = pnand %p174, %p175
    %p177 = pneg %p176
    // Predicated region
    $region9: #{fashion_cnn_forward.9} parent=5 // pred_check
      _
    $region10: #{fashion_cnn_forward.9} parent=5 // pred_check_branch
      %179 = sbr.rel (%p176) target = $region12
    $region11: #{fashion_cnn_forward.9} parent=5 // pred_region
      %s180 = ssub.s32 %s11, 1
      // Predicated region
      $region13: #{fashion_cnn_forward.9} parent=11 // pred_check
        %p181 = pneg %p98
      $region14: #{fashion_cnn_forward.9} parent=11 // pred_check_branch
        %183 = sbr.rel (%p181) target = $region16
      $region15: #{fashion_cnn_forward.9} parent=11 // pred_region
        _
      $region16: #{fashion_cnn_forward.9} parent=11 // pred_fallthru
        _
      // Predicated region
      $region17: #{fashion_cnn_forward.9} parent=11 // pred_check
        %p184 = pneg %p119
      $region18: #{fashion_cnn_forward.9} parent=11 // pred_check_branch
        %186 = sbr.rel (%p184) target = $region20
      $region19: #{fashion_cnn_forward.9} parent=11 // pred_region
        _
      $region20: #{fashion_cnn_forward.9} parent=11 // pred_fallthru
        _
      // Predicated region
      $region21: #{fashion_cnn_forward.9} parent=11 // pred_check
        %p187 = pneg %p140
      $region22: #{fashion_cnn_forward.9} parent=11 // pred_check_branch
        %189 = sbr.rel (%p187) target = $region24
      $region23: #{fashion_cnn_forward.9} parent=11 // pred_region
        _
      $region24: #{fashion_cnn_forward.9} parent=11 // pred_fallthru
        _
    $region12: #{fashion_cnn_forward.9} parent=5 // pred_fallthru
      _
    %p190 = scmp.lt.s32.totalorder %s11, 13
    // Predicated region
    $region25: #{fashion_cnn_forward.9} parent=5 // pred_check
      %p191 = pneg %p190
    $region26: #{fashion_cnn_forward.9} parent=5 // pred_check_branch
      %193 = sbr.rel (%p191) target = $region28
    $region27: #{fashion_cnn_forward.9} parent=5 // pred_region
      // Predicated region
      $region29: #{fashion_cnn_forward.9} parent=27 // pred_check
        %p194 = pneg %p45
      $region30: #{fashion_cnn_forward.9} parent=27 // pred_check_branch
        %196 = sbr.rel (%p194) target = $region32
      $region31: #{fashion_cnn_forward.9} parent=27 // pred_region
        %s197 = smul.u32 2, %s19
        %p198 = scmp.lt.s32.totalorder %s18, 0
        %s199 = scalar_select %p198, %s18, 0
        %p200 = scmp.lt.s32.totalorder %s197, 25
        %s201 = scalar_select %p200, %s197, 25
        %s202 = smul.addr %s199, 26
        %s203 = sadd.s32 %s201, %s202
        %s204 = smul.addr %s203, 4
        %s205 = scalar_lea.vmem %s0, %s204
        %s206 = smul.u32 2, %s19
      $region32: #{fashion_cnn_forward.9} parent=27 // pred_fallthru
        _
      // Predicated region
      $region33: #{fashion_cnn_forward.9} parent=27 // pred_check
        %p207 = pneg %p71
      $region34: #{fashion_cnn_forward.9} parent=27 // pred_check_branch
        %209 = sbr.rel (%p207) target = $region36
      $region35: #{fashion_cnn_forward.9} parent=27 // pred_region
        %s210 = smul.u32 32, %s19
        %p211 = scmp.lt.s32.totalorder %s210, 415
        %s212 = scalar_select %p211, %s210, 415
        %s213 = smul.addr %s212, 8
        %s214 = smul.addr %s213, 4
        %s215 = scalar_lea.vmem %s1, %s214
        %s216 = smul.u32 32, %s19
      $region36: #{fashion_cnn_forward.9} parent=27 // pred_fallthru
        _
    $region28: #{fashion_cnn_forward.9} parent=5 // pred_fallthru
      _
    %p217 = scmp.le.s32.totalorder 1, %s11
    %p218 = scmp.lt.s32.totalorder %s11, 14
    %p219 = pnand %p217, %p218
    %p220 = pneg %p219
    // Predicated region
    $region37: #{fashion_cnn_forward.9} parent=5 // pred_check
      _
    $region38: #{fashion_cnn_forward.9} parent=5 // pred_check_branch
      %222 = sbr.rel (%p219) target = $region40
    $region39: #{fashion_cnn_forward.9} parent=5 // pred_region
      %s223 = ssub.s32 %s11, 1
      %s224 = smul.u32 2, %s21
      %p225 = scmp.lt.s32.totalorder %s20, 0
      %s226 = scalar_select %p225, %s20, 0
      %p227 = scmp.lt.s32.totalorder %s224, 25
      %s228 = scalar_select %p227, %s224, 25
      %s229 = smul.addr %s226, 26
      %s230 = sadd.s32 %s228, %s229
      %s231 = smul.addr %s230, 4
      %s232 = scalar_lea.vmem %s0, %s231
      %p233 = pneg %p51
      %p234 = pneg %p48
      %s235 = smul.u32 32, %s21
      %p236 = scmp.lt.s32.totalorder %s235, 415
      %s237 = scalar_select %p236, %s235, 415
      %s238 = smul.addr %s237, 8
      %s239 = smul.addr %s238, 4
      %s240 = scalar_lea.vmem %s1, %s239
      %p241 = pneg %p77
      %p242 = pneg %p74
      %p243 = pneg %p98
      %p244 = pneg %p95
      %p245 = pneg %p119
      %p246 = pneg %p116
      %p247 = pneg %p140
      %p248 = pneg %p137
      %p249 = pneg %p166
      %p250 = pneg %p163
      %p251 = scmp.lt.s32.totalorder %s20, 0
      %s252 = scalar_select %p251, %s20, 0
      %s253 = smul.addr %s252, 8
      %s254 = scalar_lea.vmem %s5, %s253
      %s255 = smul.u32 2, %s21
      %p256 = scmp.lt.s32.totalorder %s20, 0
      %s257 = scalar_select %p256, %s20, 0
      %p258 = scmp.lt.s32.totalorder %s255, 25
      %s259 = scalar_select %p258, %s255, 25
      %s260 = smul.addr %s257, 26
      %s261 = sadd.s32 %s259, %s260
      %s262 = smul.addr %s261, 4
      %s263 = scalar_lea.vmem %s0, %s262
      %s264 = smul.u32 2, %s21
      %s265 = smul.u32 32, %s21
      %p266 = scmp.lt.s32.totalorder %s265, 415
      %s267 = scalar_select %p266, %s265, 415
      %s268 = smul.addr %s267, 8
      %s269 = smul.addr %s268, 4
      %s270 = scalar_lea.vmem %s1, %s269
      %s271 = smul.u32 32, %s21
      %p272 = scmp.lt.s32.totalorder %s20, 0
      %s273 = scalar_select %p272, %s20, 0
      %s274 = smul.addr %s273, 8
      %s275 = scalar_lea.vmem %s5, %s274
      %p277 = scmp.eq.s32.totalorder %s21, 0
      // Predicated region
      $region41: #{fashion_cnn_forward.9} parent=39 // pred_check
        %p278 = pneg %p277
      $region42: #{fashion_cnn_forward.9} parent=39 // pred_check_branch
        %280 = sbr.rel (%p278) target = $region44
      $region43: #{fashion_cnn_forward.9} parent=39 // pred_region
        %281 = vst [vmem:[#allocation2] sm:$0xff] 0.0
        %282 = vst [vmem:[#allocation2 + $0x8] sm:$0xff] 0.0
        %283 = vst [vmem:[#allocation2 + $0x10] sm:$0xff] 0.0
        %284 = vst [vmem:[#allocation2 + $0x18] sm:$0xff] 0.0
        %285 = vst [vmem:[#allocation2 + $0x20] sm:$0xff] 0.0
        %286 = vst [vmem:[#allocation2 + $0x28] sm:$0xff] 0.0
        %287 = vst [vmem:[#allocation2 + $0x30] sm:$0xff] 0.0
        %288 = vst [vmem:[#allocation2 + $0x38] sm:$0xff] 0.0
      $region44: #{fashion_cnn_forward.9} parent=39 // pred_fallthru
        _
      %v289 = vld [vmem:[#allocation2] sm:$0xff]
      %v290 = vld [vmem:[#allocation2 + $0x8] sm:$0xff]
      %v291 = vld [vmem:[#allocation2 + $0x10] sm:$0xff]
      %v292 = vld [vmem:[#allocation2 + $0x18] sm:$0xff]
      %v293 = vld [vmem:[#allocation2 + $0x20] sm:$0xff]
      %v294 = vld [vmem:[#allocation2 + $0x28] sm:$0xff]
      %v295 = vld [vmem:[#allocation2 + $0x30] sm:$0xff]
      %v296 = vld [vmem:[#allocation2 + $0x38] sm:$0xff]
      %v297 = vld [vmem:[%s263] sm:$0xff]
      %v298 = vld [vmem:[%s270] sm:$0xff]
      %v299 = vld [vmem:[%s270 + $0x8] sm:$0xff]
      %v300 = vld [vmem:[%s270 + $0x10] sm:$0xff]
      %v301 = vld [vmem:[%s270 + $0x18] sm:$0xff]
      %v302 = vld [vmem:[%s270 + $0x20] sm:$0xff]
      %v303 = vld [vmem:[%s270 + $0x28] sm:$0xff]
      %v304 = vld [vmem:[%s270 + $0x30] sm:$0xff]
      %v305 = vld [vmem:[%s270 + $0x38] sm:$0xff]
      %v306 = vld [vmem:[%s270 + $0x40] sm:$0xff]
      %v307 = vld [vmem:[%s270 + $0x48] sm:$0xff]
      %v308 = vld [vmem:[%s270 + $0x50] sm:$0xff]
      %v309 = vld [vmem:[%s270 + $0x58] sm:$0xff]
      %v310 = vld [vmem:[%s270 + $0x60] sm:$0xff]
      %v311 = vld [vmem:[%s270 + $0x68] sm:$0xff]
      %v312 = vld [vmem:[%s270 + $0x70] sm:$0xff]
      %v313 = vld [vmem:[%s270 + $0x78] sm:$0xff]
      %v314 = vld [vmem:[%s270 + $0x80] sm:$0xff]
      %v315 = vld [vmem:[%s270 + $0x88] sm:$0xff]
      %v316 = vld [vmem:[%s270 + $0x90] sm:$0xff]
      %v317 = vld [vmem:[%s270 + $0x98] sm:$0xff]
      %v318 = vld [vmem:[%s270 + $0xa0] sm:$0xff]
      %v319 = vld [vmem:[%s270 + $0xa8] sm:$0xff]
      %v320 = vld [vmem:[%s270 + $0xb0] sm:$0xff]
      %v321 = vld [vmem:[%s270 + $0xb8] sm:$0xff]
      %v322 = vld [vmem:[%s270 + $0xc0] sm:$0xff]
      %v323 = vld [vmem:[%s270 + $0xc8] sm:$0xff]
      %v324 = vld [vmem:[%s270 + $0xd0] sm:$0xff]
      %v325 = vld [vmem:[%s270 + $0xd8] sm:$0xff]
      %v326 = vld [vmem:[%s270 + $0xe0] sm:$0xff]
      %v327 = vld [vmem:[%s270 + $0xe8] sm:$0xff]
      %v328 = vld [vmem:[%s270 + $0xf0] sm:$0xff]
      %v329 = vld [vmem:[%s270 + $0xf8] sm:$0xff]
      %v330 = vld [vmem:[%s270 + $0x100] sm:$0xff]
      %v331 = vld [vmem:[%s270 + $0x108] sm:$0xff]
      %v332 = vld [vmem:[%s270 + $0x110] sm:$0xff]
      %v333 = vld [vmem:[%s270 + $0x118] sm:$0xff]
      %v334 = vld [vmem:[%s270 + $0x120] sm:$0xff]
      %v335 = vld [vmem:[%s270 + $0x128] sm:$0xff]
      %v336 = vld [vmem:[%s270 + $0x130] sm:$0xff]
      %v337 = vld [vmem:[%s270 + $0x138] sm:$0xff]
      %v338 = vld [vmem:[%s270 + $0x140] sm:$0xff]
      %v339 = vld [vmem:[%s270 + $0x148] sm:$0xff]
      %v340 = vld [vmem:[%s270 + $0x150] sm:$0xff]
      %v341 = vld [vmem:[%s270 + $0x158] sm:$0xff]
      %v342 = vld [vmem:[%s270 + $0x160] sm:$0xff]
      %v343 = vld [vmem:[%s270 + $0x168] sm:$0xff]
      %v344 = vld [vmem:[%s270 + $0x170] sm:$0xff]
      %v345 = vld [vmem:[%s270 + $0x178] sm:$0xff]
      %v346 = vld [vmem:[%s270 + $0x180] sm:$0xff]
      %v347 = vld [vmem:[%s270 + $0x188] sm:$0xff]
      %v348 = vld [vmem:[%s270 + $0x190] sm:$0xff]
      %v349 = vld [vmem:[%s270 + $0x198] sm:$0xff]
      %v350 = vld [vmem:[%s270 + $0x1a0] sm:$0xff]
      %v351 = vld [vmem:[%s270 + $0x1a8] sm:$0xff]
      %v352 = vld [vmem:[%s270 + $0x1b0] sm:$0xff]
      %v353 = vld [vmem:[%s270 + $0x1b8] sm:$0xff]
      %v354 = vld [vmem:[%s270 + $0x1c0] sm:$0xff]
      %v355 = vld [vmem:[%s270 + $0x1c8] sm:$0xff]
      %v356 = vld [vmem:[%s270 + $0x1d0] sm:$0xff]
      %v357 = vld [vmem:[%s270 + $0x1d8] sm:$0xff]
      %v358 = vld [vmem:[%s270 + $0x1e0] sm:$0xff]
      %v359 = vld [vmem:[%s270 + $0x1e8] sm:$0xff]
      %v360 = vld [vmem:[%s270 + $0x1f0] sm:$0xff]
      %v361 = vld [vmem:[%s270 + $0x1f8] sm:$0xff]
      %v362 = vld [vmem:[%s270 + $0x200] sm:$0xff]
      %v363 = vld [vmem:[%s270 + $0x208] sm:$0xff]
      %v364 = vld [vmem:[%s270 + $0x210] sm:$0xff]
      %v365 = vld [vmem:[%s270 + $0x218] sm:$0xff]
      %v366 = vld [vmem:[%s270 + $0x220] sm:$0xff]
      %v367 = vld [vmem:[%s270 + $0x228] sm:$0xff]
      %v368 = vld [vmem:[%s270 + $0x230] sm:$0xff]
      %v369 = vld [vmem:[%s270 + $0x238] sm:$0xff]
      %v370 = vld [vmem:[%s270 + $0x240] sm:$0xff]
      %v371 = vld [vmem:[%s270 + $0x248] sm:$0xff]
      %v372 = vld [vmem:[%s270 + $0x250] sm:$0xff]
      %v373 = vld [vmem:[%s270 + $0x258] sm:$0xff]
      %v374 = vld [vmem:[%s270 + $0x260] sm:$0xff]
      %v375 = vld [vmem:[%s270 + $0x268] sm:$0xff]
      %v376 = vld [vmem:[%s270 + $0x270] sm:$0xff]
      %v377 = vld [vmem:[%s270 + $0x278] sm:$0xff]
      %v378 = vld [vmem:[%s270 + $0x280] sm:$0xff]
      %v379 = vld [vmem:[%s270 + $0x288] sm:$0xff]
      %v380 = vld [vmem:[%s270 + $0x290] sm:$0xff]
      %v381 = vld [vmem:[%s270 + $0x298] sm:$0xff]
      %v382 = vld [vmem:[%s270 + $0x2a0] sm:$0xff]
      %v383 = vld [vmem:[%s270 + $0x2a8] sm:$0xff]
      %v384 = vld [vmem:[%s270 + $0x2b0] sm:$0xff]
      %v385 = vld [vmem:[%s270 + $0x2b8] sm:$0xff]
      %v386 = vld [vmem:[%s270 + $0x2c0] sm:$0xff]
      %v387 = vld [vmem:[%s270 + $0x2c8] sm:$0xff]
      %v388 = vld [vmem:[%s270 + $0x2d0] sm:$0xff]
      %v389 = vld [vmem:[%s270 + $0x2d8] sm:$0xff]
      %v390 = vld [vmem:[%s270 + $0x2e0] sm:$0xff]
      %v391 = vld [vmem:[%s270 + $0x2e8] sm:$0xff]
      %v392 = vld [vmem:[%s270 + $0x2f0] sm:$0xff]
      %v393 = vld [vmem:[%s270 + $0x2f8] sm:$0xff]
      %v394 = vld [vmem:[%s270 + $0x300] sm:$0xff]
      %v395 = vld [vmem:[%s270 + $0x308] sm:$0xff]
      %v396 = vld [vmem:[%s270 + $0x310] sm:$0xff]
      %v397 = vld [vmem:[%s270 + $0x318] sm:$0xff]
      %v398 = vld [vmem:[%s270 + $0x320] sm:$0xff]
      %v399 = vld [vmem:[%s270 + $0x328] sm:$0xff]
      %v400 = vld [vmem:[%s270 + $0x330] sm:$0xff]
      %v401 = vld [vmem:[%s270 + $0x338] sm:$0xff]
      %v402 = vld [vmem:[%s270 + $0x340] sm:$0xff]
      %v403 = vld [vmem:[%s270 + $0x348] sm:$0xff]
      %v404 = vld [vmem:[%s270 + $0x350] sm:$0xff]
      %v405 = vld [vmem:[%s270 + $0x358] sm:$0xff]
      %v406 = vld [vmem:[%s270 + $0x360] sm:$0xff]
      %v407 = vld [vmem:[%s270 + $0x368] sm:$0xff]
      %v408 = vld [vmem:[%s270 + $0x370] sm:$0xff]
      %v409 = vld [vmem:[%s270 + $0x378] sm:$0xff]
      %v410 = vld [vmem:[%s270 + $0x380] sm:$0xff]
      %v411 = vld [vmem:[%s270 + $0x388] sm:$0xff]
      %v412 = vld [vmem:[%s270 + $0x390] sm:$0xff]
      %v413 = vld [vmem:[%s270 + $0x398] sm:$0xff]
      %v414 = vld [vmem:[%s270 + $0x3a0] sm:$0xff]
      %v415 = vld [vmem:[%s270 + $0x3a8] sm:$0xff]
      %v416 = vld [vmem:[%s270 + $0x3b0] sm:$0xff]
      %v417 = vld [vmem:[%s270 + $0x3b8] sm:$0xff]
      %v418 = vld [vmem:[%s270 + $0x3c0] sm:$0xff]
      %v419 = vld [vmem:[%s270 + $0x3c8] sm:$0xff]
      %v420 = vld [vmem:[%s270 + $0x3d0] sm:$0xff]
      %v421 = vld [vmem:[%s270 + $0x3d8] sm:$0xff]
      %v422 = vld [vmem:[%s270 + $0x3e0] sm:$0xff]
      %v423 = vld [vmem:[%s270 + $0x3e8] sm:$0xff]
      %v424 = vld [vmem:[%s270 + $0x3f0] sm:$0xff]
      %v425 = vld [vmem:[%s270 + $0x3f8] sm:$0xff]
      %v427 = vunpack.c.l.b16 %v297
      %v428 = vunpack.c.h.b16 %v297
      %v429 = vpack.c.b16 %v427, %v427
      %v430 = vpack.c.b16 %v428, %v428
      %v561 = vunpack.c.l.b16 %v298
      %v562 = vunpack.c.h.b16 %v298
      %v563 = vunpack.c.l.b16 %v299
      %v564 = vunpack.c.h.b16 %v299
      %v565 = vunpack.c.l.b16 %v300
      %v566 = vunpack.c.h.b16 %v300
      %v567 = vunpack.c.l.b16 %v301
      %v568 = vunpack.c.h.b16 %v301
      %v569 = vunpack.c.l.b16 %v302
      %v570 = vunpack.c.h.b16 %v302
      %v571 = vunpack.c.l.b16 %v303
      %v572 = vunpack.c.h.b16 %v303
      %v573 = vunpack.c.l.b16 %v304
      %v574 = vunpack.c.h.b16 %v304
      %v575 = vunpack.c.l.b16 %v305
      %v576 = vunpack.c.h.b16 %v305
      %v577 = vunpack.c.l.b16 %v306
      %v578 = vunpack.c.h.b16 %v306
      %v579 = vunpack.c.l.b16 %v307
      %v580 = vunpack.c.h.b16 %v307
      %v581 = vunpack.c.l.b16 %v308
      %v582 = vunpack.c.h.b16 %v308
      %v583 = vunpack.c.l.b16 %v309
      %v584 = vunpack.c.h.b16 %v309
      %v585 = vunpack.c.l.b16 %v310
      %v586 = vunpack.c.h.b16 %v310
      %v587 = vunpack.c.l.b16 %v311
      %v588 = vunpack.c.h.b16 %v311
      %v589 = vunpack.c.l.b16 %v312
      %v590 = vunpack.c.h.b16 %v312
      %v591 = vunpack.c.l.b16 %v313
      %v592 = vunpack.c.h.b16 %v313
      %v593 = vunpack.c.l.b16 %v314
      %v594 = vunpack.c.h.b16 %v314
      %v595 = vunpack.c.l.b16 %v315
      %v596 = vunpack.c.h.b16 %v315
      %v597 = vunpack.c.l.b16 %v316
      %v598 = vunpack.c.h.b16 %v316
      %v599 = vunpack.c.l.b16 %v317
      %v600 = vunpack.c.h.b16 %v317
      %v601 = vunpack.c.l.b16 %v318
      %v602 = vunpack.c.h.b16 %v318
      %v603 = vunpack.c.l.b16 %v319
      %v604 = vunpack.c.h.b16 %v319
      %v605 = vunpack.c.l.b16 %v320
      %v606 = vunpack.c.h.b16 %v320
      %v607 = vunpack.c.l.b16 %v321
      %v608 = vunpack.c.h.b16 %v321
      %v609 = vunpack.c.l.b16 %v322
      %v610 = vunpack.c.h.b16 %v322
      %v611 = vunpack.c.l.b16 %v323
      %v612 = vunpack.c.h.b16 %v323
      %v613 = vunpack.c.l.b16 %v324
      %v614 = vunpack.c.h.b16 %v324
      %v615 = vunpack.c.l.b16 %v325
      %v616 = vunpack.c.h.b16 %v325
      %v617 = vunpack.c.l.b16 %v326
      %v618 = vunpack.c.h.b16 %v326
      %v619 = vunpack.c.l.b16 %v327
      %v620 = vunpack.c.h.b16 %v327
      %v621 = vunpack.c.l.b16 %v328
      %v622 = vunpack.c.h.b16 %v328
      %v623 = vunpack.c.l.b16 %v329
      %v624 = vunpack.c.h.b16 %v329
      %v625 = vunpack.c.l.b16 %v330
      %v626 = vunpack.c.h.b16 %v330
      %v627 = vunpack.c.l.b16 %v331
      %v628 = vunpack.c.h.b16 %v331
      %v629 = vunpack.c.l.b16 %v332
      %v630 = vunpack.c.h.b16 %v332
      %v631 = vunpack.c.l.b16 %v333
      %v632 = vunpack.c.h.b16 %v333
      %v633 = vunpack.c.l.b16 %v334
      %v634 = vunpack.c.h.b16 %v334
      %v635 = vunpack.c.l.b16 %v335
      %v636 = vunpack.c.h.b16 %v335
      %v637 = vunpack.c.l.b16 %v336
      %v638 = vunpack.c.h.b16 %v336
      %v639 = vunpack.c.l.b16 %v337
      %v640 = vunpack.c.h.b16 %v337
      %v641 = vunpack.c.l.b16 %v338
      %v642 = vunpack.c.h.b16 %v338
      %v643 = vunpack.c.l.b16 %v339
      %v644 = vunpack.c.h.b16 %v339
      %v645 = vunpack.c.l.b16 %v340
      %v646 = vunpack.c.h.b16 %v340
      %v647 = vunpack.c.l.b16 %v341
      %v648 = vunpack.c.h.b16 %v341
      %v649 = vunpack.c.l.b16 %v342
      %v650 = vunpack.c.h.b16 %v342
      %v651 = vunpack.c.l.b16 %v343
      %v652 = vunpack.c.h.b16 %v343
      %v653 = vunpack.c.l.b16 %v344
      %v654 = vunpack.c.h.b16 %v344
      %v655 = vunpack.c.l.b16 %v345
      %v656 = vunpack.c.h.b16 %v345
      %v657 = vunpack.c.l.b16 %v346
      %v658 = vunpack.c.h.b16 %v346
      %v659 = vunpack.c.l.b16 %v347
      %v660 = vunpack.c.h.b16 %v347
      %v661 = vunpack.c.l.b16 %v348
      %v662 = vunpack.c.h.b16 %v348
      %v663 = vunpack.c.l.b16 %v349
      %v664 = vunpack.c.h.b16 %v349
      %v665 = vunpack.c.l.b16 %v350
      %v666 = vunpack.c.h.b16 %v350
      %v667 = vunpack.c.l.b16 %v351
      %v668 = vunpack.c.h.b16 %v351
      %v669 = vunpack.c.l.b16 %v352
      %v670 = vunpack.c.h.b16 %v352
      %v671 = vunpack.c.l.b16 %v353
      %v672 = vunpack.c.h.b16 %v353
      %v673 = vunpack.c.l.b16 %v354
      %v674 = vunpack.c.h.b16 %v354
      %v675 = vunpack.c.l.b16 %v355
      %v676 = vunpack.c.h.b16 %v355
      %v677 = vunpack.c.l.b16 %v356
      %v678 = vunpack.c.h.b16 %v356
      %v679 = vunpack.c.l.b16 %v357
      %v680 = vunpack.c.h.b16 %v357
      %v681 = vunpack.c.l.b16 %v358
      %v682 = vunpack.c.h.b16 %v358
      %v683 = vunpack.c.l.b16 %v359
      %v684 = vunpack.c.h.b16 %v359
      %v685 = vunpack.c.l.b16 %v360
      %v686 = vunpack.c.h.b16 %v360
      %v687 = vunpack.c.l.b16 %v361
      %v688 = vunpack.c.h.b16 %v361
      %v689 = vunpack.c.l.b16 %v362
      %v690 = vunpack.c.h.b16 %v362
      %v691 = vunpack.c.l.b16 %v363
      %v692 = vunpack.c.h.b16 %v363
      %v693 = vunpack.c.l.b16 %v364
      %v694 = vunpack.c.h.b16 %v364
      %v695 = vunpack.c.l.b16 %v365
      %v696 = vunpack.c.h.b16 %v365
      %v697 = vunpack.c.l.b16 %v366
      %v698 = vunpack.c.h.b16 %v366
      %v699 = vunpack.c.l.b16 %v367
      %v700 = vunpack.c.h.b16 %v367
      %v701 = vunpack.c.l.b16 %v368
      %v702 = vunpack.c.h.b16 %v368
      %v703 = vunpack.c.l.b16 %v369
      %v704 = vunpack.c.h.b16 %v369
      %v705 = vunpack.c.l.b16 %v370
      %v706 = vunpack.c.h.b16 %v370
      %v707 = vunpack.c.l.b16 %v371
      %v708 = vunpack.c.h.b16 %v371
      %v709 = vunpack.c.l.b16 %v372
      %v710 = vunpack.c.h.b16 %v372
      %v711 = vunpack.c.l.b16 %v373
      %v712 = vunpack.c.h.b16 %v373
      %v713 = vunpack.c.l.b16 %v374
      %v714 = vunpack.c.h.b16 %v374
      %v715 = vunpack.c.l.b16 %v375
      %v716 = vunpack.c.h.b16 %v375
      %v717 = vunpack.c.l.b16 %v376
      %v718 = vunpack.c.h.b16 %v376
      %v719 = vunpack.c.l.b16 %v377
      %v720 = vunpack.c.h.b16 %v377
      %v721 = vunpack.c.l.b16 %v378
      %v722 = vunpack.c.h.b16 %v378
      %v723 = vunpack.c.l.b16 %v379
      %v724 = vunpack.c.h.b16 %v379
      %v725 = vunpack.c.l.b16 %v380
      %v726 = vunpack.c.h.b16 %v380
      %v727 = vunpack.c.l.b16 %v381
      %v728 = vunpack.c.h.b16 %v381
      %v729 = vunpack.c.l.b16 %v382
      %v730 = vunpack.c.h.b16 %v382
      %v731 = vunpack.c.l.b16 %v383
      %v732 = vunpack.c.h.b16 %v383
      %v733 = vunpack.c.l.b16 %v384
      %v734 = vunpack.c.h.b16 %v384
      %v735 = vunpack.c.l.b16 %v385
      %v736 = vunpack.c.h.b16 %v385
      %v737 = vunpack.c.l.b16 %v386
      %v738 = vunpack.c.h.b16 %v386
      %v739 = vunpack.c.l.b16 %v387
      %v740 = vunpack.c.h.b16 %v387
      %v741 = vunpack.c.l.b16 %v388
      %v742 = vunpack.c.h.b16 %v388
      %v743 = vunpack.c.l.b16 %v389
      %v744 = vunpack.c.h.b16 %v389
      %v745 = vunpack.c.l.b16 %v390
      %v746 = vunpack.c.h.b16 %v390
      %v747 = vunpack.c.l.b16 %v391
      %v748 = vunpack.c.h.b16 %v391
      %v749 = vunpack.c.l.b16 %v392
      %v750 = vunpack.c.h.b16 %v392
      %v751 = vunpack.c.l.b16 %v393
      %v752 = vunpack.c.h.b16 %v393
      %v753 = vunpack.c.l.b16 %v394
      %v754 = vunpack.c.h.b16 %v394
      %v755 = vunpack.c.l.b16 %v395
      %v756 = vunpack.c.h.b16 %v395
      %v757 = vunpack.c.l.b16 %v396
      %v758 = vunpack.c.h.b16 %v396
      %v759 = vunpack.c.l.b16 %v397
      %v760 = vunpack.c.h.b16 %v397
      %v761 = vunpack.c.l.b16 %v398
      %v762 = vunpack.c.h.b16 %v398
      %v763 = vunpack.c.l.b16 %v399
      %v764 = vunpack.c.h.b16 %v399
      %v765 = vunpack.c.l.b16 %v400
      %v766 = vunpack.c.h.b16 %v400
      %v767 = vunpack.c.l.b16 %v401
      %v768 = vunpack.c.h.b16 %v401
      %v769 = vunpack.c.l.b16 %v402
      %v770 = vunpack.c.h.b16 %v402
      %v771 = vunpack.c.l.b16 %v403
      %v772 = vunpack.c.h.b16 %v403
      %v773 = vunpack.c.l.b16 %v404
      %v774 = vunpack.c.h.b16 %v404
      %v775 = vunpack.c.l.b16 %v405
      %v776 = vunpack.c.h.b16 %v405
      %v777 = vunpack.c.l.b16 %v406
      %v778 = vunpack.c.h.b16 %v406
      %v779 = vunpack.c.l.b16 %v407
      %v780 = vunpack.c.h.b16 %v407
      %v781 = vunpack.c.l.b16 %v408
      %v782 = vunpack.c.h.b16 %v408
      %v783 = vunpack.c.l.b16 %v409
      %v784 = vunpack.c.h.b16 %v409
      %v785 = vunpack.c.l.b16 %v410
      %v786 = vunpack.c.h.b16 %v410
      %v787 = vunpack.c.l.b16 %v411
      %v788 = vunpack.c.h.b16 %v411
      %v789 = vunpack.c.l.b16 %v412
      %v790 = vunpack.c.h.b16 %v412
      %v791 = vunpack.c.l.b16 %v413
      %v792 = vunpack.c.h.b16 %v413
      %v793 = vunpack.c.l.b16 %v414
      %v794 = vunpack.c.h.b16 %v414
      %v795 = vunpack.c.l.b16 %v415
      %v796 = vunpack.c.h.b16 %v415
      %v797 = vunpack.c.l.b16 %v416
      %v798 = vunpack.c.h.b16 %v416
      %v799 = vunpack.c.l.b16 %v417
      %v800 = vunpack.c.h.b16 %v417
      %v801 = vunpack.c.l.b16 %v418
      %v802 = vunpack.c.h.b16 %v418
      %v803 = vunpack.c.l.b16 %v419
      %v804 = vunpack.c.h.b16 %v419
      %v805 = vunpack.c.l.b16 %v420
      %v806 = vunpack.c.h.b16 %v420
      %v807 = vunpack.c.l.b16 %v421
      %v808 = vunpack.c.h.b16 %v421
      %v809 = vunpack.c.l.b16 %v422
      %v810 = vunpack.c.h.b16 %v422
      %v811 = vunpack.c.l.b16 %v423
      %v812 = vunpack.c.h.b16 %v423
      %v813 = vunpack.c.l.b16 %v424
      %v814 = vunpack.c.h.b16 %v424
      %v815 = vunpack.c.l.b16 %v425
      %v816 = vunpack.c.h.b16 %v425
      %v817 = vpack.c.b16 %v569, %v561
      %v818 = vpack.c.b16 %v570, %v562
      %v819 = vpack.c.b16 %v571, %v563
      %v820 = vpack.c.b16 %v572, %v564
      %v821 = vpack.c.b16 %v573, %v565
      %v822 = vpack.c.b16 %v574, %v566
      %v823 = vpack.c.b16 %v575, %v567
      %v824 = vpack.c.b16 %v576, %v568
      %v825 = vpack.c.b16 %v585, %v577
      %v826 = vpack.c.b16 %v586, %v578
      %v827 = vpack.c.b16 %v587, %v579
      %v828 = vpack.c.b16 %v588, %v580
      %v829 = vpack.c.b16 %v589, %v581
      %v830 = vpack.c.b16 %v590, %v582
      %v831 = vpack.c.b16 %v591, %v583
      %v832 = vpack.c.b16 %v592, %v584
      %v833 = vpack.c.b16 %v601, %v593
      %v834 = vpack.c.b16 %v602, %v594
      %v835 = vpack.c.b16 %v603, %v595
      %v836 = vpack.c.b16 %v604, %v596
      %v837 = vpack.c.b16 %v605, %v597
      %v838 = vpack.c.b16 %v606, %v598
      %v839 = vpack.c.b16 %v607, %v599
      %v840 = vpack.c.b16 %v608, %v600
      %v841 = vpack.c.b16 %v617, %v609
      %v842 = vpack.c.b16 %v618, %v610
      %v843 = vpack.c.b16 %v619, %v611
      %v844 = vpack.c.b16 %v620, %v612
      %v845 = vpack.c.b16 %v621, %v613
      %v846 = vpack.c.b16 %v622, %v614
      %v847 = vpack.c.b16 %v623, %v615
      %v848 = vpack.c.b16 %v624, %v616
      %v849 = vpack.c.b16 %v633, %v625
      %v850 = vpack.c.b16 %v634, %v626
      %v851 = vpack.c.b16 %v635, %v627
      %v852 = vpack.c.b16 %v636, %v628
      %v853 = vpack.c.b16 %v637, %v629
      %v854 = vpack.c.b16 %v638, %v630
      %v855 = vpack.c.b16 %v639, %v631
      %v856 = vpack.c.b16 %v640, %v632
      %v857 = vpack.c.b16 %v649, %v641
      %v858 = vpack.c.b16 %v650, %v642
      %v859 = vpack.c.b16 %v651, %v643
      %v860 = vpack.c.b16 %v652, %v644
      %v861 = vpack.c.b16 %v653, %v645
      %v862 = vpack.c.b16 %v654, %v646
      %v863 = vpack.c.b16 %v655, %v647
      %v864 = vpack.c.b16 %v656, %v648
      %v865 = vpack.c.b16 %v665, %v657
      %v866 = vpack.c.b16 %v666, %v658
      %v867 = vpack.c.b16 %v667, %v659
      %v868 = vpack.c.b16 %v668, %v660
      %v869 = vpack.c.b16 %v669, %v661
      %v870 = vpack.c.b16 %v670, %v662
      %v871 = vpack.c.b16 %v671, %v663
      %v872 = vpack.c.b16 %v672, %v664
      %v873 = vpack.c.b16 %v681, %v673
      %v874 = vpack.c.b16 %v682, %v674
      %v875 = vpack.c.b16 %v683, %v675
      %v876 = vpack.c.b16 %v684, %v676
      %v877 = vpack.c.b16 %v685, %v677
      %v878 = vpack.c.b16 %v686, %v678
      %v879 = vpack.c.b16 %v687, %v679
      %v880 = vpack.c.b16 %v688, %v680
      %v881 = vpack.c.b16 %v697, %v689
      %v882 = vpack.c.b16 %v698, %v690
      %v883 = vpack.c.b16 %v699, %v691
      %v884 = vpack.c.b16 %v700, %v692
      %v885 = vpack.c.b16 %v701, %v693
      %v886 = vpack.c.b16 %v702, %v694
      %v887 = vpack.c.b16 %v703, %v695
      %v888 = vpack.c.b16 %v704, %v696
      %v889 = vpack.c.b16 %v713, %v705
      %v890 = vpack.c.b16 %v714, %v706
      %v891 = vpack.c.b16 %v715, %v707
      %v892 = vpack.c.b16 %v716, %v708
      %v893 = vpack.c.b16 %v717, %v709
      %v894 = vpack.c.b16 %v718, %v710
      %v895 = vpack.c.b16 %v719, %v711
      %v896 = vpack.c.b16 %v720, %v712
      %v897 = vpack.c.b16 %v729, %v721
      %v898 = vpack.c.b16 %v730, %v722
      %v899 = vpack.c.b16 %v731, %v723
      %v900 = vpack.c.b16 %v732, %v724
      %v901 = vpack.c.b16 %v733, %v725
      %v902 = vpack.c.b16 %v734, %v726
      %v903 = vpack.c.b16 %v735, %v727
      %v904 = vpack.c.b16 %v736, %v728
      %v905 = vpack.c.b16 %v745, %v737
      %v906 = vpack.c.b16 %v746, %v738
      %v907 = vpack.c.b16 %v747, %v739
      %v908 = vpack.c.b16 %v748, %v740
      %v909 = vpack.c.b16 %v749, %v741
      %v910 = vpack.c.b16 %v750, %v742
      %v911 = vpack.c.b16 %v751, %v743
      %v912 = vpack.c.b16 %v752, %v744
      %v913 = vpack.c.b16 %v761, %v753
      %v914 = vpack.c.b16 %v762, %v754
      %v915 = vpack.c.b16 %v763, %v755
      %v916 = vpack.c.b16 %v764, %v756
      %v917 = vpack.c.b16 %v765, %v757
      %v918 = vpack.c.b16 %v766, %v758
      %v919 = vpack.c.b16 %v767, %v759
      %v920 = vpack.c.b16 %v768, %v760
      %v921 = vpack.c.b16 %v777, %v769
      %v922 = vpack.c.b16 %v778, %v770
      %v923 = vpack.c.b16 %v779, %v771
      %v924 = vpack.c.b16 %v780, %v772
      %v925 = vpack.c.b16 %v781, %v773
      %v926 = vpack.c.b16 %v782, %v774
      %v927 = vpack.c.b16 %v783, %v775
      %v928 = vpack.c.b16 %v784, %v776
      %v929 = vpack.c.b16 %v793, %v785
      %v930 = vpack.c.b16 %v794, %v786
      %v931 = vpack.c.b16 %v795, %v787
      %v932 = vpack.c.b16 %v796, %v788
      %v933 = vpack.c.b16 %v797, %v789
      %v934 = vpack.c.b16 %v798, %v790
      %v935 = vpack.c.b16 %v799, %v791
      %v936 = vpack.c.b16 %v800, %v792
      %v937 = vpack.c.b16 %v809, %v801
      %v938 = vpack.c.b16 %v810, %v802
      %v939 = vpack.c.b16 %v811, %v803
      %v940 = vpack.c.b16 %v812, %v804
      %v941 = vpack.c.b16 %v813, %v805
      %v942 = vpack.c.b16 %v814, %v806
      %v943 = vpack.c.b16 %v815, %v807
      %v944 = vpack.c.b16 %v816, %v808
      %1073 = vmatprep.subr.bf16.mxu0 %v818
      %1074 = vmatpush1.bf16.msra.mxu0 %v817
      %1075 = vmatprep.subr.bf16.mxu0 %v826
      %1076 = vmatpush1.bf16.msra.mxu0 %v825
      %1077 = vmatprep.subr.bf16.mxu0 %v834
      %1078 = vmatpush1.bf16.msra.mxu0 %v833
      %1079 = vmatprep.subr.bf16.mxu0 %v842
      %1080 = vmatpush1.bf16.msra.mxu0 %v841
      %1081 = vmatprep.subr.bf16.mxu0 %v850
      %1082 = vmatpush1.bf16.msra.mxu0 %v849
      %1083 = vmatprep.subr.bf16.mxu0 %v858
      %1084 = vmatpush1.bf16.msra.mxu0 %v857
      %1085 = vmatprep.subr.bf16.mxu0 %v866
      %1086 = vmatpush1.bf16.msra.mxu0 %v865
      %1087 = vmatprep.subr.bf16.mxu0 %v874
      %1088 = vmatpush1.bf16.msra.mxu0 %v873
      %1089 = vmatprep.subr.bf16.mxu0 %v882
      %1090 = vmatpush1.bf16.msra.mxu0 %v881
      %1091 = vmatprep.subr.bf16.mxu0 %v890
      %1092 = vmatpush1.bf16.msra.mxu0 %v889
      %1093 = vmatprep.subr.bf16.mxu0 %v898
      %1094 = vmatpush1.bf16.msra.mxu0 %v897
      %1095 = vmatprep.subr.bf16.mxu0 %v906
      %1096 = vmatpush1.bf16.msra.mxu0 %v905
      %1097 = vmatprep.subr.bf16.mxu0 %v914
      %1098 = vmatpush1.bf16.msra.mxu0 %v913
      %1099 = vmatprep.subr.bf16.mxu0 %v922
      %1100 = vmatpush1.bf16.msra.mxu0 %v921
      %1101 = vmatprep.subr.bf16.mxu0 %v930
      %1102 = vmatpush1.bf16.msra.mxu0 %v929
      %1103 = vmatprep.subr.bf16.mxu0 %v938
      %1104 = vmatpush1.bf16.msra.mxu0 %v937
      %1105 = vmatprep.mubr.bf16.mxu0 %v430
      %1106 = vmatmul.mubr.bf16.gmra.mrb[0].mxu0 %v429
      %v1107 = vpop.f32.mrb[0].mxu0
      %v1108 = vadd.f32 0.0, %v1107
      %v1109 = vpop.f32.mrb[0].mxu0
      %v1110 = vadd.f32 0.0, %v1109
      %v1111 = vpop.f32.mrb[0].mxu0
      %v1112 = vpop.f32.mrb[0].mxu0
      %1113 = vdwg.mxu0
      %1114 = vmatprep.subr.bf16.mxu0 %v820
      %1115 = vmatpush1.bf16.msra.mxu0 %v819
      %1116 = vmatprep.subr.bf16.mxu0 %v828
      %1117 = vmatpush1.bf16.msra.mxu0 %v827
      %1118 = vmatprep.subr.bf16.mxu0 %v836
      %1119 = vmatpush1.bf16.msra.mxu0 %v835
      %1120 = vmatprep.subr.bf16.mxu0 %v844
      %1121 = vmatpush1.bf16.msra.mxu0 %v843
      %1122 = vmatprep.subr.bf16.mxu0 %v852
      %1123 = vmatpush1.bf16.msra.mxu0 %v851
      %1124 = vmatprep.subr.bf16.mxu0 %v860
      %1125 = vmatpush1.bf16.msra.mxu0 %v859
      %1126 = vmatprep.subr.bf16.mxu0 %v868
      %1127 = vmatpush1.bf16.msra.mxu0 %v867
      %1128 = vmatprep.subr.bf16.mxu0 %v876
      %1129 = vmatpush1.bf16.msra.mxu0 %v875
      %1130 = vmatprep.subr.bf16.mxu0 %v884
      %1131 = vmatpush1.bf16.msra.mxu0 %v883
      %1132 = vmatprep.subr.bf16.mxu0 %v892
      %1133 = vmatpush1.bf16.msra.mxu0 %v891
      %1134 = vmatprep.subr.bf16.mxu0 %v900
      %1135 = vmatpush1.bf16.msra.mxu0 %v899
      %1136 = vmatprep.subr.bf16.mxu0 %v908
      %1137 = vmatpush1.bf16.msra.mxu0 %v907
      %1138 = vmatprep.subr.bf16.mxu0 %v916
      %1139 = vmatpush1.bf16.msra.mxu0 %v915
      %1140 = vmatprep.subr.bf16.mxu0 %v924
      %1141 = vmatpush1.bf16.msra.mxu0 %v923
      %1142 = vmatprep.subr.bf16.mxu0 %v932
      %1143 = vmatpush1.bf16.msra.mxu0 %v931
      %1144 = vmatprep.subr.bf16.mxu0 %v940
      %1145 = vmatpush1.bf16.msra.mxu0 %v939
      %1146 = vmatprep.mubr.bf16.mxu0 %v430
      %1147 = vmatmul.mubr.bf16.gmra.mrb[0].mxu0 %v429
      %v1148 = vpop.f32.mrb[0].mxu0
      %v1149 = vadd.f32 0.0, %v1148
      %v1150 = vpop.f32.mrb[0].mxu0
      %v1151 = vadd.f32 0.0, %v1150
      %v1152 = vpop.f32.mrb[0].mxu0
      %v1153 = vpop.f32.mrb[0].mxu0
      %1154 = vdwg.mxu0
      %1155 = vmatprep.subr.bf16.mxu0 %v822
      %1156 = vmatpush1.bf16.msra.mxu0 %v821
      %1157 = vmatprep.subr.bf16.mxu0 %v830
      %1158 = vmatpush1.bf16.msra.mxu0 %v829
      %1159 = vmatprep.subr.bf16.mxu0 %v838
      %1160 = vmatpush1.bf16.msra.mxu0 %v837
      %1161 = vmatprep.subr.bf16.mxu0 %v846
      %1162 = vmatpush1.bf16.msra.mxu0 %v845
      %1163 = vmatprep.subr.bf16.mxu0 %v854
      %1164 = vmatpush1.bf16.msra.mxu0 %v853
      %1165 = vmatprep.subr.bf16.mxu0 %v862
      %1166 = vmatpush1.bf16.msra.mxu0 %v861
      %1167 = vmatprep.subr.bf16.mxu0 %v870
      %1168 = vmatpush1.bf16.msra.mxu0 %v869
      %1169 = vmatprep.subr.bf16.mxu0 %v878
      %1170 = vmatpush1.bf16.msra.mxu0 %v877
      %1171 = vmatprep.subr.bf16.mxu0 %v886
      %1172 = vmatpush1.bf16.msra.mxu0 %v885
      %1173 = vmatprep.subr.bf16.mxu0 %v894
      %1174 = vmatpush1.bf16.msra.mxu0 %v893
      %1175 = vmatprep.subr.bf16.mxu0 %v902
      %1176 = vmatpush1.bf16.msra.mxu0 %v901
      %1177 = vmatprep.subr.bf16.mxu0 %v910
      %1178 = vmatpush1.bf16.msra.mxu0 %v909
      %1179 = vmatprep.subr.bf16.mxu0 %v918
      %1180 = vmatpush1.bf16.msra.mxu0 %v917
      %1181 = vmatprep.subr.bf16.mxu0 %v926
      %1182 = vmatpush1.bf16.msra.mxu0 %v925
      %1183 = vmatprep.subr.bf16.mxu0 %v934
      %1184 = vmatpush1.bf16.msra.mxu0 %v933
      %1185 = vmatprep.subr.bf16.mxu0 %v942
      %1186 = vmatpush1.bf16.msra.mxu0 %v941
      %1187 = vmatprep.mubr.bf16.mxu0 %v430
      %1188 = vmatmul.mubr.bf16.gmra.mrb[0].mxu0 %v429
      %v1189 = vpop.f32.mrb[0].mxu0
      %v1190 = vadd.f32 0.0, %v1189
      %v1191 = vpop.f32.mrb[0].mxu0
      %v1192 = vadd.f32 0.0, %v1191
      %v1193 = vpop.f32.mrb[0].mxu0
      %v1194 = vpop.f32.mrb[0].mxu0
      %1195 = vdwg.mxu0
      %1196 = vmatprep.subr.bf16.mxu0 %v824
      %1197 = vmatpush1.bf16.msra.mxu0 %v823
      %1198 = vmatprep.subr.bf16.mxu0 %v832
      %1199 = vmatpush1.bf16.msra.mxu0 %v831
      %1200 = vmatprep.subr.bf16.mxu0 %v840
      %1201 = vmatpush1.bf16.msra.mxu0 %v839
      %1202 = vmatprep.subr.bf16.mxu0 %v848
      %1203 = vmatpush1.bf16.msra.mxu0 %v847
      %1204 = vmatprep.subr.bf16.mxu0 %v856
      %1205 = vmatpush1.bf16.msra.mxu0 %v855
      %1206 = vmatprep.subr.bf16.mxu0 %v864
      %1207 = vmatpush1.bf16.msra.mxu0 %v863
      %1208 = vmatprep.subr.bf16.mxu0 %v872
      %1209 = vmatpush1.bf16.msra.mxu0 %v871
      %1210 = vmatprep.subr.bf16.mxu0 %v880
      %1211 = vmatpush1.bf16.msra.mxu0 %v879
      %1212 = vmatprep.subr.bf16.mxu0 %v888
      %1213 = vmatpush1.bf16.msra.mxu0 %v887
      %1214 = vmatprep.subr.bf16.mxu0 %v896
      %1215 = vmatpush1.bf16.msra.mxu0 %v895
      %1216 = vmatprep.subr.bf16.mxu0 %v904
      %1217 = vmatpush1.bf16.msra.mxu0 %v903
      %1218 = vmatprep.subr.bf16.mxu0 %v912
      %1219 = vmatpush1.bf16.msra.mxu0 %v911
      %1220 = vmatprep.subr.bf16.mxu0 %v920
      %1221 = vmatpush1.bf16.msra.mxu0 %v919
      %1222 = vmatprep.subr.bf16.mxu0 %v928
      %1223 = vmatpush1.bf16.msra.mxu0 %v927
      %1224 = vmatprep.subr.bf16.mxu0 %v936
      %1225 = vmatpush1.bf16.msra.mxu0 %v935
      %1226 = vmatprep.subr.bf16.mxu0 %v944
      %1227 = vmatpush1.bf16.msra.mxu0 %v943
      %1228 = vmatprep.mubr.bf16.mxu0 %v430
      %1229 = vmatmul.mubr.bf16.gmra.mrb[0].mxu0 %v429
      %v1230 = vpop.f32.mrb[0].mxu0
      %v1231 = vadd.f32 0.0, %v1230
      %v1232 = vpop.f32.mrb[0].mxu0
      %v1233 = vadd.f32 0.0, %v1232
      %v1234 = vpop.f32.mrb[0].mxu0
      %v1235 = vpop.f32.mrb[0].mxu0
      %1236 = vdwg.mxu0
      %v1237 = vadd.f32 %v289, %v1108
      %v1238 = vadd.f32 %v290, %v1110
      %v1239 = vadd.f32 %v291, %v1149
      %v1240 = vadd.f32 %v292, %v1151
      %v1241 = vadd.f32 %v293, %v1190
      %v1242 = vadd.f32 %v294, %v1192
      %v1243 = vadd.f32 %v295, %v1231
      %v1244 = vadd.f32 %v296, %v1233
      %1245 = vst [vmem:[#allocation2] sm:$0xff] %v1237
      %1246 = vst [vmem:[#allocation2 + $0x8] sm:$0xff] %v1238
      %1247 = vst [vmem:[#allocation2 + $0x10] sm:$0xff] %v1239
      %1248 = vst [vmem:[#allocation2 + $0x18] sm:$0xff] %v1240
      %1249 = vst [vmem:[#allocation2 + $0x20] sm:$0xff] %v1241
      %1250 = vst [vmem:[#allocation2 + $0x28] sm:$0xff] %v1242
      %1251 = vst [vmem:[#allocation2 + $0x30] sm:$0xff] %v1243
      %1252 = vst [vmem:[#allocation2 + $0x38] sm:$0xff] %v1244
      %p1253 = scmp.eq.s32.totalorder %s21, 12
      // Predicated region
      $region45: #{fashion_cnn_forward.9} parent=39 // pred_check
        %p1254 = pneg %p1253
      $region46: #{fashion_cnn_forward.9} parent=39 // pred_check_branch
        %1256 = sbr.rel (%p1254) target = $region48
      $region47: #{fashion_cnn_forward.9} parent=39 // pred_region
        %v1257 = vld [vmem:[#allocation2] sm:$0xff]
        %v1258 = vld [vmem:[#allocation2 + $0x8] sm:$0xff]
        %v1259 = vld [vmem:[#allocation2 + $0x10] sm:$0xff]
        %v1260 = vld [vmem:[#allocation2 + $0x18] sm:$0xff]
        %v1261 = vld [vmem:[#allocation2 + $0x20] sm:$0xff]
        %v1262 = vld [vmem:[#allocation2 + $0x28] sm:$0xff]
        %v1263 = vld [vmem:[#allocation2 + $0x30] sm:$0xff]
        %v1264 = vld [vmem:[#allocation2 + $0x38] sm:$0xff]
        %v1265 = vld [vmem:[%s2] sm:$0xff]
        %v1267 = vlaneseq
        %v1268 = vshrl.u32 %v1267, 7
        %v1269 = vsub.s32 0, %v1268
        %v1270 = vrot.slane %v1265, %v1269
        %v1271 = vlaneseq
        %v1272 = vshrl.u32 %v1271, 7
        %v1273 = vsub.s32 1, %v1272
        %v1274 = vrot.slane %v1265, %v1273
        %v1275 = vlaneseq
        %v1276 = vshrl.u32 %v1275, 7
        %v1277 = vsub.s32 2, %v1276
        %v1278 = vrot.slane %v1265, %v1277
        %v1279 = vlaneseq
        %v1280 = vshrl.u32 %v1279, 7
        %v1281 = vsub.s32 3, %v1280
        %v1282 = vrot.slane %v1265, %v1281
        %v1283 = vlaneseq
        %v1284 = vshrl.u32 %v1283, 7
        %v1285 = vsub.s32 4, %v1284
        %v1286 = vrot.slane %v1265, %v1285
        %v1287 = vlaneseq
        %v1288 = vshrl.u32 %v1287, 7
        %v1289 = vsub.s32 5, %v1288
        %v1290 = vrot.slane %v1265, %v1289
        %v1291 = vlaneseq
        %v1292 = vshrl.u32 %v1291, 7
        %v1293 = vsub.s32 6, %v1292
        %v1294 = vrot.slane %v1265, %v1293
        %v1295 = vlaneseq
        %v1296 = vshrl.u32 %v1295, 7
        %v1297 = vsub.s32 7, %v1296
        %v1298 = vrot.slane %v1265, %v1297
        %v1307 = vadd.f32 %v1257, %v1270
        %v1308 = vadd.f32 %v1258, %v1274
        %v1309 = vadd.f32 %v1259, %v1278
        %v1310 = vadd.f32 %v1260, %v1282
        %v1311 = vadd.f32 %v1261, %v1286
        %v1312 = vadd.f32 %v1262, %v1290
        %v1313 = vadd.f32 %v1263, %v1294
        %v1314 = vadd.f32 %v1264, %v1298
        %v1315 = vpack.c.bf16 %v1307, %v1307
        %v1316 = vpack.c.bf16 %v1308, %v1308
        %v1317 = vpack.c.bf16 %v1309, %v1309
        %v1318 = vpack.c.bf16 %v1310, %v1310
        %v1319 = vpack.c.bf16 %v1311, %v1311
        %v1320 = vpack.c.bf16 %v1312, %v1312
        %v1321 = vpack.c.bf16 %v1313, %v1313
        %v1322 = vpack.c.bf16 %v1314, %v1314
        %v1323 = vld [vmem:[%s3] sm:$0xf]
        %v1324 = vld [vmem:[%s3 + $0x4] sm:$0xf]
        %v1325 = vld [vmem:[%s3 + $0x8] sm:$0xf]
        %v1326 = vld [vmem:[%s3 + $0xc] sm:$0xf]
        %v1327 = vld [vmem:[%s3 + $0x10] sm:$0xf]
        %v1328 = vld [vmem:[%s3 + $0x14] sm:$0xf]
        %v1329 = vld [vmem:[%s3 + $0x18] sm:$0xf]
        %v1330 = vld [vmem:[%s3 + $0x1c] sm:$0xf]
        %v1331 = vld [vmem:[%s3 + $0x20] sm:$0xf]
        %v1332 = vld [vmem:[%s3 + $0x24] sm:$0xf]
        %v1333 = vld [vmem:[%s3 + $0x28] sm:$0xf]
        %v1334 = vld [vmem:[%s3 + $0x2c] sm:$0xf]
        %v1335 = vld [vmem:[%s3 + $0x30] sm:$0xf]
        %v1336 = vld [vmem:[%s3 + $0x34] sm:$0xf]
        %v1337 = vld [vmem:[%s3 + $0x38] sm:$0xf]
        %v1338 = vld [vmem:[%s3 + $0x3c] sm:$0xf]
        %v1339 = vld [vmem:[%s3 + $0x40] sm:$0xf]
        %v1340 = vld [vmem:[%s3 + $0x44] sm:$0xf]
        %v1341 = vld [vmem:[%s3 + $0x48] sm:$0xf]
        %v1342 = vld [vmem:[%s3 + $0x4c] sm:$0xf]
        %v1343 = vld [vmem:[%s3 + $0x50] sm:$0xf]
        %v1344 = vld [vmem:[%s3 + $0x54] sm:$0xf]
        %v1345 = vld [vmem:[%s3 + $0x58] sm:$0xf]
        %v1346 = vld [vmem:[%s3 + $0x5c] sm:$0xf]
        %v1347 = vld [vmem:[%s3 + $0x60] sm:$0xf]
        %v1348 = vld [vmem:[%s3 + $0x64] sm:$0xf]
        %v1349 = vld [vmem:[%s3 + $0x68] sm:$0xf]
        %v1350 = vld [vmem:[%s3 + $0x6c] sm:$0xf]
        %v1351 = vld [vmem:[%s3 + $0x70] sm:$0xf]
        %v1352 = vld [vmem:[%s3 + $0x74] sm:$0xf]
        %v1353 = vld [vmem:[%s3 + $0x78] sm:$0xf]
        %v1354 = vld [vmem:[%s3 + $0x7c] sm:$0xf]
        %v1355 = vld [vmem:[%s3 + $0x80] sm:$0xf]
        %v1356 = vld [vmem:[%s3 + $0x84] sm:$0xf]
        %v1357 = vld [vmem:[%s3 + $0x88] sm:$0xf]
        %v1358 = vld [vmem:[%s3 + $0x8c] sm:$0xf]
        %v1359 = vld [vmem:[%s3 + $0x90] sm:$0xf]
        %v1360 = vld [vmem:[%s3 + $0x94] sm:$0xf]
        %v1361 = vld [vmem:[%s3 + $0x98] sm:$0xf]
        %v1362 = vld [vmem:[%s3 + $0x9c] sm:$0xf]
        %v1363 = vld [vmem:[%s3 + $0xa0] sm:$0xf]
        %v1364 = vld [vmem:[%s3 + $0xa4] sm:$0xf]
        %v1365 = vld [vmem:[%s3 + $0xa8] sm:$0xf]
        %v1366 = vld [vmem:[%s3 + $0xac] sm:$0xf]
        %v1367 = vld [vmem:[%s3 + $0xb0] sm:$0xf]
        %v1368 = vld [vmem:[%s3 + $0xb4] sm:$0xf]
        %v1369 = vld [vmem:[%s3 + $0xb8] sm:$0xf]
        %v1370 = vld [vmem:[%s3 + $0xbc] sm:$0xf]
        %v1371 = vld [vmem:[%s3 + $0xc0] sm:$0xf]
        %v1372 = vld [vmem:[%s3 + $0xc4] sm:$0xf]
        %v1373 = vld [vmem:[%s3 + $0xc8] sm:$0xf]
        %v1374 = vld [vmem:[%s3 + $0xcc] sm:$0xf]
        %v1375 = vld [vmem:[%s3 + $0xd0] sm:$0xf]
        %v1376 = vld [vmem:[%s3 + $0xd4] sm:$0xf]
        %v1377 = vld [vmem:[%s3 + $0xd8] sm:$0xf]
        %v1378 = vld [vmem:[%s3 + $0xdc] sm:$0xf]
        %v1379 = vld [vmem:[%s3 + $0xe0] sm:$0xf]
        %v1380 = vld [vmem:[%s3 + $0xe4] sm:$0xf]
        %v1381 = vld [vmem:[%s3 + $0xe8] sm:$0xf]
        %v1382 = vld [vmem:[%s3 + $0xec] sm:$0xf]
        %v1383 = vld [vmem:[%s3 + $0xf0] sm:$0xf]
        %v1384 = vld [vmem:[%s3 + $0xf4] sm:$0xf]
        %v1385 = vld [vmem:[%s3 + $0xf8] sm:$0xf]
        %v1386 = vld [vmem:[%s3 + $0xfc] sm:$0xf]
        %v1387 = vld [vmem:[%s3 + $0x100] sm:$0xf]
        %v1388 = vld [vmem:[%s3 + $0x104] sm:$0xf]
        %v1389 = vld [vmem:[%s3 + $0x108] sm:$0xf]
        %v1390 = vld [vmem:[%s3 + $0x10c] sm:$0xf]
        %v1391 = vld [vmem:[%s3 + $0x110] sm:$0xf]
        %v1392 = vld [vmem:[%s3 + $0x114] sm:$0xf]
        %v1393 = vld [vmem:[%s3 + $0x118] sm:$0xf]
        %v1394 = vld [vmem:[%s3 + $0x11c] sm:$0xf]
        %v1395 = vld [vmem:[%s3 + $0x120] sm:$0xf]
        %v1396 = vld [vmem:[%s3 + $0x124] sm:$0xf]
        %v1397 = vld [vmem:[%s3 + $0x128] sm:$0xf]
        %v1398 = vld [vmem:[%s3 + $0x12c] sm:$0xf]
        %v1399 = vld [vmem:[%s3 + $0x130] sm:$0xf]
        %v1400 = vld [vmem:[%s3 + $0x134] sm:$0xf]
        %v1401 = vld [vmem:[%s3 + $0x138] sm:$0xf]
        %v1402 = vld [vmem:[%s3 + $0x13c] sm:$0xf]
        %v1403 = vld [vmem:[%s3 + $0x140] sm:$0xf]
        %v1404 = vld [vmem:[%s3 + $0x144] sm:$0xf]
        %v1405 = vld [vmem:[%s3 + $0x148] sm:$0xf]
        %v1406 = vld [vmem:[%s3 + $0x14c] sm:$0xf]
        %v1407 = vld [vmem:[%s3 + $0x150] sm:$0xf]
        %v1408 = vld [vmem:[%s3 + $0x154] sm:$0xf]
        %v1409 = vld [vmem:[%s3 + $0x158] sm:$0xf]
        %v1410 = vld [vmem:[%s3 + $0x15c] sm:$0xf]
        %v1411 = vld [vmem:[%s3 + $0x160] sm:$0xf]
        %v1412 = vld [vmem:[%s3 + $0x164] sm:$0xf]
        %v1413 = vld [vmem:[%s3 + $0x168] sm:$0xf]
        %v1414 = vld [vmem:[%s3 + $0x16c] sm:$0xf]
        %v1415 = vld [vmem:[%s3 + $0x170] sm:$0xf]
        %v1416 = vld [vmem:[%s3 + $0x174] sm:$0xf]
        %v1417 = vld [vmem:[%s3 + $0x178] sm:$0xf]
        %v1418 = vld [vmem:[%s3 + $0x17c] sm:$0xf]
        %v1419 = vld [vmem:[%s3 + $0x180] sm:$0xf]
        %v1420 = vld [vmem:[%s3 + $0x184] sm:$0xf]
        %v1421 = vld [vmem:[%s3 + $0x188] sm:$0xf]
        %v1422 = vld [vmem:[%s3 + $0x18c] sm:$0xf]
        %v1423 = vld [vmem:[%s3 + $0x190] sm:$0xf]
        %v1424 = vld [vmem:[%s3 + $0x194] sm:$0xf]
        %v1425 = vld [vmem:[%s3 + $0x198] sm:$0xf]
        %v1426 = vld [vmem:[%s3 + $0x19c] sm:$0xf]
        %v1427 = vld [vmem:[%s3 + $0x1a0] sm:$0xf]
        %v1428 = vld [vmem:[%s3 + $0x1a4] sm:$0xf]
        %v1429 = vld [vmem:[%s3 + $0x1a8] sm:$0xf]
        %v1430 = vld [vmem:[%s3 + $0x1ac] sm:$0xf]
        %v1431 = vld [vmem:[%s3 + $0x1b0] sm:$0xf]
        %v1432 = vld [vmem:[%s3 + $0x1b4] sm:$0xf]
        %v1433 = vld [vmem:[%s3 + $0x1b8] sm:$0xf]
        %v1434 = vld [vmem:[%s3 + $0x1bc] sm:$0xf]
        %v1435 = vld [vmem:[%s3 + $0x1c0] sm:$0xf]
        %v1436 = vld [vmem:[%s3 + $0x1c4] sm:$0xf]
        %v1437 = vld [vmem:[%s3 + $0x1c8] sm:$0xf]
        %v1438 = vld [vmem:[%s3 + $0x1cc] sm:$0xf]
        %v1439 = vld [vmem:[%s3 + $0x1d0] sm:$0xf]
        %v1440 = vld [vmem:[%s3 + $0x1d4] sm:$0xf]
        %v1441 = vld [vmem:[%s3 + $0x1d8] sm:$0xf]
        %v1442 = vld [vmem:[%s3 + $0x1dc] sm:$0xf]
        %v1443 = vld [vmem:[%s3 + $0x1e0] sm:$0xf]
        %v1444 = vld [vmem:[%s3 + $0x1e4] sm:$0xf]
        %v1445 = vld [vmem:[%s3 + $0x1e8] sm:$0xf]
        %v1446 = vld [vmem:[%s3 + $0x1ec] sm:$0xf]
        %v1447 = vld [vmem:[%s3 + $0x1f0] sm:$0xf]
        %v1448 = vld [vmem:[%s3 + $0x1f4] sm:$0xf]
        %v1449 = vld [vmem:[%s3 + $0x1f8] sm:$0xf]
        %v1450 = vld [vmem:[%s3 + $0x1fc] sm:$0xf]
        %v1451 = vld [vmem:[%s4] sm:$0x1]
        %v1453 = vlaneseq
        %v1454 = vshrl.u32 %v1453, 7
        %v1455 = vsub.s32 0, %v1454
        %v1456 = vrot.slane %v1451, %v1455
        %v1586 = vunpack.c.l.b16 %v1323
        %v1587 = vunpack.c.l.b16 %v1324
        %v1588 = vunpack.c.l.b16 %v1325
        %v1589 = vunpack.c.l.b16 %v1326
        %v1590 = vunpack.c.l.b16 %v1327
        %v1591 = vunpack.c.l.b16 %v1328
        %v1592 = vunpack.c.l.b16 %v1329
        %v1593 = vunpack.c.l.b16 %v1330
        %v1594 = vunpack.c.l.b16 %v1331
        %v1595 = vunpack.c.l.b16 %v1332
        %v1596 = vunpack.c.l.b16 %v1333
        %v1597 = vunpack.c.l.b16 %v1334
        %v1598 = vunpack.c.l.b16 %v1335
        %v1599 = vunpack.c.l.b16 %v1336
        %v1600 = vunpack.c.l.b16 %v1337
        %v1601 = vunpack.c.l.b16 %v1338
        %v1602 = vunpack.c.l.b16 %v1339
        %v1603 = vunpack.c.l.b16 %v1340
        %v1604 = vunpack.c.l.b16 %v1341
        %v1605 = vunpack.c.l.b16 %v1342
        %v1606 = vunpack.c.l.b16 %v1343
        %v1607 = vunpack.c.l.b16 %v1344
        %v1608 = vunpack.c.l.b16 %v1345
        %v1609 = vunpack.c.l.b16 %v1346
        %v1610 = vunpack.c.l.b16 %v1347
        %v1611 = vunpack.c.l.b16 %v1348
        %v1612 = vunpack.c.l.b16 %v1349
        %v1613 = vunpack.c.l.b16 %v1350
        %v1614 = vunpack.c.l.b16 %v1351
        %v1615 = vunpack.c.l.b16 %v1352
        %v1616 = vunpack.c.l.b16 %v1353
        %v1617 = vunpack.c.l.b16 %v1354
        %v1618 = vunpack.c.l.b16 %v1355
        %v1619 = vunpack.c.l.b16 %v1356
        %v1620 = vunpack.c.l.b16 %v1357
        %v1621 = vunpack.c.l.b16 %v1358
        %v1622 = vunpack.c.l.b16 %v1359
        %v1623 = vunpack.c.l.b16 %v1360
        %v1624 = vunpack.c.l.b16 %v1361
        %v1625 = vunpack.c.l.b16 %v1362
        %v1626 = vunpack.c.l.b16 %v1363
        %v1627 = vunpack.c.l.b16 %v1364
        %v1628 = vunpack.c.l.b16 %v1365
        %v1629 = vunpack.c.l.b16 %v1366
        %v1630 = vunpack.c.l.b16 %v1367
        %v1631 = vunpack.c.l.b16 %v1368
        %v1632 = vunpack.c.l.b16 %v1369
        %v1633 = vunpack.c.l.b16 %v1370
        %v1634 = vunpack.c.l.b16 %v1371
        %v1635 = vunpack.c.l.b16 %v1372
        %v1636 = vunpack.c.l.b16 %v1373
        %v1637 = vunpack.c.l.b16 %v1374
        %v1638 = vunpack.c.l.b16 %v1375
        %v1639 = vunpack.c.l.b16 %v1376
        %v1640 = vunpack.c.l.b16 %v1377
        %v1641 = vunpack.c.l.b16 %v1378
        %v1642 = vunpack.c.l.b16 %v1379
        %v1643 = vunpack.c.l.b16 %v1380
        %v1644 = vunpack.c.l.b16 %v1381
        %v1645 = vunpack.c.l.b16 %v1382
        %v1646 = vunpack.c.l.b16 %v1383
        %v1647 = vunpack.c.l.b16 %v1384
        %v1648 = vunpack.c.l.b16 %v1385
        %v1649 = vunpack.c.l.b16 %v1386
        %v1650 = vunpack.c.l.b16 %v1387
        %v1651 = vunpack.c.l.b16 %v1388
        %v1652 = vunpack.c.l.b16 %v1389
        %v1653 = vunpack.c.l.b16 %v1390
        %v1654 = vunpack.c.l.b16 %v1391
        %v1655 = vunpack.c.l.b16 %v1392
        %v1656 = vunpack.c.l.b16 %v1393
        %v1657 = vunpack.c.l.b16 %v1394
        %v1658 = vunpack.c.l.b16 %v1395
        %v1659 = vunpack.c.l.b16 %v1396
        %v1660 = vunpack.c.l.b16 %v1397
        %v1661 = vunpack.c.l.b16 %v1398
        %v1662 = vunpack.c.l.b16 %v1399
        %v1663 = vunpack.c.l.b16 %v1400
        %v1664 = vunpack.c.l.b16 %v1401
        %v1665 = vunpack.c.l.b16 %v1402
        %v1666 = vunpack.c.l.b16 %v1403
        %v1667 = vunpack.c.l.b16 %v1404
        %v1668 = vunpack.c.l.b16 %v1405
        %v1669 = vunpack.c.l.b16 %v1406
        %v1670 = vunpack.c.l.b16 %v1407
        %v1671 = vunpack.c.l.b16 %v1408
        %v1672 = vunpack.c.l.b16 %v1409
        %v1673 = vunpack.c.l.b16 %v1410
        %v1674 = vunpack.c.l.b16 %v1411
        %v1675 = vunpack.c.l.b16 %v1412
        %v1676 = vunpack.c.l.b16 %v1413
        %v1677 = vunpack.c.l.b16 %v1414
        %v1678 = vunpack.c.l.b16 %v1415
        %v1679 = vunpack.c.l.b16 %v1416
        %v1680 = vunpack.c.l.b16 %v1417
        %v1681 = vunpack.c.l.b16 %v1418
        %v1682 = vunpack.c.l.b16 %v1419
        %v1683 = vunpack.c.l.b16 %v1420
        %v1684 = vunpack.c.l.b16 %v1421
        %v1685 = vunpack.c.l.b16 %v1422
        %v1686 = vunpack.c.l.b16 %v1423
        %v1687 = vunpack.c.l.b16 %v1424
        %v1688 = vunpack.c.l.b16 %v1425
        %v1689 = vunpack.c.l.b16 %v1426
        %v1690 = vunpack.c.l.b16 %v1427
        %v1691 = vunpack.c.l.b16 %v1428
        %v1692 = vunpack.c.l.b16 %v1429
        %v1693 = vunpack.c.l.b16 %v1430
        %v1694 = vunpack.c.l.b16 %v1431
        %v1695 = vunpack.c.l.b16 %v1432
        %v1696 = vunpack.c.l.b16 %v1433
        %v1697 = vunpack.c.l.b16 %v1434
        %v1698 = vunpack.c.l.b16 %v1435
        %v1699 = vunpack.c.l.b16 %v1436
        %v1700 = vunpack.c.l.b16 %v1437
        %v1701 = vunpack.c.l.b16 %v1438
        %v1702 = vunpack.c.l.b16 %v1439
        %v1703 = vunpack.c.l.b16 %v1440
        %v1704 = vunpack.c.l.b16 %v1441
        %v1705 = vunpack.c.l.b16 %v1442
        %v1706 = vunpack.c.l.b16 %v1443
        %v1707 = vunpack.c.l.b16 %v1444
        %v1708 = vunpack.c.l.b16 %v1445
        %v1709 = vunpack.c.l.b16 %v1446
        %v1710 = vunpack.c.l.b16 %v1447
        %v1711 = vunpack.c.l.b16 %v1448
        %v1712 = vunpack.c.l.b16 %v1449
        %v1713 = vunpack.c.l.b16 %v1450
        %v1714 = vpack.c.b16 %v1587, %v1586
        %v1715 = vpack.c.b16 %v1589, %v1588
        %v1716 = vpack.c.b16 %v1591, %v1590
        %v1717 = vpack.c.b16 %v1593, %v1592
        %v1718 = vpack.c.b16 %v1595, %v1594
        %v1719 = vpack.c.b16 %v1597, %v1596
        %v1720 = vpack.c.b16 %v1599, %v1598
        %v1721 = vpack.c.b16 %v1601, %v1600
        %v1722 = vpack.c.b16 %v1603, %v1602
        %v1723 = vpack.c.b16 %v1605, %v1604
        %v1724 = vpack.c.b16 %v1607, %v1606
        %v1725 = vpack.c.b16 %v1609, %v1608
        %v1726 = vpack.c.b16 %v1611, %v1610
        %v1727 = vpack.c.b16 %v1613, %v1612
        %v1728 = vpack.c.b16 %v1615, %v1614
        %v1729 = vpack.c.b16 %v1617, %v1616
        %v1730 = vpack.c.b16 %v1619, %v1618
        %v1731 = vpack.c.b16 %v1621, %v1620
        %v1732 = vpack.c.b16 %v1623, %v1622
        %v1733 = vpack.c.b16 %v1625, %v1624
        %v1734 = vpack.c.b16 %v1627, %v1626
        %v1735 = vpack.c.b16 %v1629, %v1628
        %v1736 = vpack.c.b16 %v1631, %v1630
        %v1737 = vpack.c.b16 %v1633, %v1632
        %v1738 = vpack.c.b16 %v1635, %v1634
        %v1739 = vpack.c.b16 %v1637, %v1636
        %v1740 = vpack.c.b16 %v1639, %v1638
        %v1741 = vpack.c.b16 %v1641, %v1640
        %v1742 = vpack.c.b16 %v1643, %v1642
        %v1743 = vpack.c.b16 %v1645, %v1644
        %v1744 = vpack.c.b16 %v1647, %v1646
        %v1745 = vpack.c.b16 %v1649, %v1648
        %v1746 = vpack.c.b16 %v1651, %v1650
        %v1747 = vpack.c.b16 %v1653, %v1652
        %v1748 = vpack.c.b16 %v1655, %v1654
        %v1749 = vpack.c.b16 %v1657, %v1656
        %v1750 = vpack.c.b16 %v1659, %v1658
        %v1751 = vpack.c.b16 %v1661, %v1660
        %v1752 = vpack.c.b16 %v1663, %v1662
        %v1753 = vpack.c.b16 %v1665, %v1664
        %v1754 = vpack.c.b16 %v1667, %v1666
        %v1755 = vpack.c.b16 %v1669, %v1668
        %v1756 = vpack.c.b16 %v1671, %v1670
        %v1757 = vpack.c.b16 %v1673, %v1672
        %v1758 = vpack.c.b16 %v1675, %v1674
        %v1759 = vpack.c.b16 %v1677, %v1676
        %v1760 = vpack.c.b16 %v1679, %v1678
        %v1761 = vpack.c.b16 %v1681, %v1680
        %v1762 = vpack.c.b16 %v1683, %v1682
        %v1763 = vpack.c.b16 %v1685, %v1684
        %v1764 = vpack.c.b16 %v1687, %v1686
        %v1765 = vpack.c.b16 %v1689, %v1688
        %v1766 = vpack.c.b16 %v1691, %v1690
        %v1767 = vpack.c.b16 %v1693, %v1692
        %v1768 = vpack.c.b16 %v1695, %v1694
        %v1769 = vpack.c.b16 %v1697, %v1696
        %v1770 = vpack.c.b16 %v1699, %v1698
        %v1771 = vpack.c.b16 %v1701, %v1700
        %v1772 = vpack.c.b16 %v1703, %v1702
        %v1773 = vpack.c.b16 %v1705, %v1704
        %v1774 = vpack.c.b16 %v1707, %v1706
        %v1775 = vpack.c.b16 %v1709, %v1708
        %v1776 = vpack.c.b16 %v1711, %v1710
        %v1777 = vpack.c.b16 %v1713, %v1712
        %1842 = vmatprep.subr.bf16.mxu0 0
        %1843 = vmatpush1.bf16.msra.mxu0 %v1714
        %1844 = vmatprep.subr.bf16.mxu0 0
        %1845 = vmatpush1.bf16.msra.mxu0 %v1715
        %1846 = vmatprep.subr.bf16.mxu0 0
        %1847 = vmatpush1.bf16.msra.mxu0 %v1716
        %1848 = vmatprep.subr.bf16.mxu0 0
        %1849 = vmatpush1.bf16.msra.mxu0 %v1717
        %1850 = vmatprep.subr.bf16.mxu0 0
        %1851 = vmatpush1.bf16.msra.mxu0 %v1718
        %1852 = vmatprep.subr.bf16.mxu0 0
        %1853 = vmatpush1.bf16.msra.mxu0 %v1719
        %1854 = vmatprep.subr.bf16.mxu0 0
        %1855 = vmatpush1.bf16.msra.mxu0 %v1720
        %1856 = vmatprep.subr.bf16.mxu0 0
        %1857 = vmatpush1.bf16.msra.mxu0 %v1721
        %1858 = vmatprep.subr.bf16.mxu0 0
        %1859 = vmatpush1.bf16.msra.mxu0 %v1722
        %1860 = vmatprep.subr.bf16.mxu0 0
        %1861 = vmatpush1.bf16.msra.mxu0 %v1723
        %1862 = vmatprep.subr.bf16.mxu0 0
        %1863 = vmatpush1.bf16.msra.mxu0 %v1724
        %1864 = vmatprep.subr.bf16.mxu0 0
        %1865 = vmatpush1.bf16.msra.mxu0 %v1725
        %1866 = vmatprep.subr.bf16.mxu0 0
        %1867 = vmatpush1.bf16.msra.mxu0 %v1726
        %1868 = vmatprep.subr.bf16.mxu0 0
        %1869 = vmatpush1.bf16.msra.mxu0 %v1727
        %1870 = vmatprep.subr.bf16.mxu0 0
        %1871 = vmatpush1.bf16.msra.mxu0 %v1728
        %1872 = vmatprep.subr.bf16.mxu0 0
        %1873 = vmatpush1.bf16.msra.mxu0 %v1729
        %1874 = vmatprep.mubr.bf16.mxu0 %v1316
        %1875 = vmatmul.mubr.bf16.gmra.mrb[0].mxu0 %v1315
        %v1876 = vpop.f32.mrb[0].mxu0
        %v1877 = vadd.f32 %v1456, %v1876
        %v1878 = vpop.f32.mrb[0].mxu0
        %v1879 = vpop.f32.mrb[0].mxu0
        %v1880 = vpop.f32.mrb[0].mxu0
        %1881 = vdwg.mxu0
        %1882 = vmatprep.subr.bf16.mxu0 0
        %1883 = vmatpush1.bf16.msra.mxu0 %v1730
        %1884 = vmatprep.subr.bf16.mxu0 0
        %1885 = vmatpush1.bf16.msra.mxu0 %v1731
        %1886 = vmatprep.subr.bf16.mxu0 0
        %1887 = vmatpush1.bf16.msra.mxu0 %v1732
        %1888 = vmatprep.subr.bf16.mxu0 0
        %1889 = vmatpush1.bf16.msra.mxu0 %v1733
        %1890 = vmatprep.subr.bf16.mxu0 0
        %1891 = vmatpush1.bf16.msra.mxu0 %v1734
        %1892 = vmatprep.subr.bf16.mxu0 0
        %1893 = vmatpush1.bf16.msra.mxu0 %v1735
        %1894 = vmatprep.subr.bf16.mxu0 0
        %1895 = vmatpush1.bf16.msra.mxu0 %v1736
        %1896 = vmatprep.subr.bf16.mxu0 0
        %1897 = vmatpush1.bf16.msra.mxu0 %v1737
        %1898 = vmatprep.subr.bf16.mxu0 0
        %1899 = vmatpush1.bf16.msra.mxu0 %v1738
        %1900 = vmatprep.subr.bf16.mxu0 0
        %1901 = vmatpush1.bf16.msra.mxu0 %v1739
        %1902 = vmatprep.subr.bf16.mxu0 0
        %1903 = vmatpush1.bf16.msra.mxu0 %v1740
        %1904 = vmatprep.subr.bf16.mxu0 0
        %1905 = vmatpush1.bf16.msra.mxu0 %v1741
        %1906 = vmatprep.subr.bf16.mxu0 0
        %1907 = vmatpush1.bf16.msra.mxu0 %v1742
        %1908 = vmatprep.subr.bf16.mxu0 0
        %1909 = vmatpush1.bf16.msra.mxu0 %v1743
        %1910 = vmatprep.subr.bf16.mxu0 0
        %1911 = vmatpush1.bf16.msra.mxu0 %v1744
        %1912 = vmatprep.subr.bf16.mxu0 0
        %1913 = vmatpush1.bf16.msra.mxu0 %v1745
        %1914 = vmatprep.mubr.bf16.mxu0 %v1318
        %1915 = vmatmul.mubr.bf16.gmra.mrb[0].mxu0 %v1317
        %v1916 = vpop.f32.mrb[0].mxu0
        %v1917 = vadd.f32 %v1877, %v1916
        %v1918 = vpop.f32.mrb[0].mxu0
        %v1919 = vpop.f32.mrb[0].mxu0
        %v1920 = vpop.f32.mrb[0].mxu0
        %1921 = vdwg.mxu0
        %1922 = vmatprep.subr.bf16.mxu0 0
        %1923 = vmatpush1.bf16.msra.mxu0 %v1746
        %1924 = vmatprep.subr.bf16.mxu0 0
        %1925 = vmatpush1.bf16.msra.mxu0 %v1747
        %1926 = vmatprep.subr.bf16.mxu0 0
        %1927 = vmatpush1.bf16.msra.mxu0 %v1748
        %1928 = vmatprep.subr.bf16.mxu0 0
        %1929 = vmatpush1.bf16.msra.mxu0 %v1749
        %1930 = vmatprep.subr.bf16.mxu0 0
        %1931 = vmatpush1.bf16.msra.mxu0 %v1750
        %1932 = vmatprep.subr.bf16.mxu0 0
        %1933 = vmatpush1.bf16.msra.mxu0 %v1751
        %1934 = vmatprep.subr.bf16.mxu0 0
        %1935 = vmatpush1.bf16.msra.mxu0 %v1752
        %1936 = vmatprep.subr.bf16.mxu0 0
        %1937 = vmatpush1.bf16.msra.mxu0 %v1753
        %1938 = vmatprep.subr.bf16.mxu0 0
        %1939 = vmatpush1.bf16.msra.mxu0 %v1754
        %1940 = vmatprep.subr.bf16.mxu0 0
        %1941 = vmatpush1.bf16.msra.mxu0 %v1755
        %1942 = vmatprep.subr.bf16.mxu0 0
        %1943 = vmatpush1.bf16.msra.mxu0 %v1756
        %1944 = vmatprep.subr.bf16.mxu0 0
        %1945 = vmatpush1.bf16.msra.mxu0 %v1757
        %1946 = vmatprep.subr.bf16.mxu0 0
        %1947 = vmatpush1.bf16.msra.mxu0 %v1758
        %1948 = vmatprep.subr.bf16.mxu0 0
        %1949 = vmatpush1.bf16.msra.mxu0 %v1759
        %1950 = vmatprep.subr.bf16.mxu0 0
        %1951 = vmatpush1.bf16.msra.mxu0 %v1760
        %1952 = vmatprep.subr.bf16.mxu0 0
        %1953 = vmatpush1.bf16.msra.mxu0 %v1761
        %1954 = vmatprep.mubr.bf16.mxu0 %v1320
        %1955 = vmatmul.mubr.bf16.gmra.mrb[0].mxu0 %v1319
        %v1956 = vpop.f32.mrb[0].mxu0
        %v1957 = vadd.f32 %v1917, %v1956
        %v1958 = vpop.f32.mrb[0].mxu0
        %v1959 = vpop.f32.mrb[0].mxu0
        %v1960 = vpop.f32.mrb[0].mxu0
        %1961 = vdwg.mxu0
        %1962 = vmatprep.subr.bf16.mxu0 0
        %1963 = vmatpush1.bf16.msra.mxu0 %v1762
        %1964 = vmatprep.subr.bf16.mxu0 0
        %1965 = vmatpush1.bf16.msra.mxu0 %v1763
        %1966 = vmatprep.subr.bf16.mxu0 0
        %1967 = vmatpush1.bf16.msra.mxu0 %v1764
        %1968 = vmatprep.subr.bf16.mxu0 0
        %1969 = vmatpush1.bf16.msra.mxu0 %v1765
        %1970 = vmatprep.subr.bf16.mxu0 0
        %1971 = vmatpush1.bf16.msra.mxu0 %v1766
        %1972 = vmatprep.subr.bf16.mxu0 0
        %1973 = vmatpush1.bf16.msra.mxu0 %v1767
        %1974 = vmatprep.subr.bf16.mxu0 0
        %1975 = vmatpush1.bf16.msra.mxu0 %v1768
        %1976 = vmatprep.subr.bf16.mxu0 0
        %1977 = vmatpush1.bf16.msra.mxu0 %v1769
        %1978 = vmatprep.subr.bf16.mxu0 0
        %1979 = vmatpush1.bf16.msra.mxu0 %v1770
        %1980 = vmatprep.subr.bf16.mxu0 0
        %1981 = vmatpush1.bf16.msra.mxu0 %v1771
        %1982 = vmatprep.subr.bf16.mxu0 0
        %1983 = vmatpush1.bf16.msra.mxu0 %v1772
        %1984 = vmatprep.subr.bf16.mxu0 0
        %1985 = vmatpush1.bf16.msra.mxu0 %v1773
        %1986 = vmatprep.subr.bf16.mxu0 0
        %1987 = vmatpush1.bf16.msra.mxu0 %v1774
        %1988 = vmatprep.subr.bf16.mxu0 0
        %1989 = vmatpush1.bf16.msra.mxu0 %v1775
        %1990 = vmatprep.subr.bf16.mxu0 0
        %1991 = vmatpush1.bf16.msra.mxu0 %v1776
        %1992 = vmatprep.subr.bf16.mxu0 0
        %1993 = vmatpush1.bf16.msra.mxu0 %v1777
        %1994 = vmatprep.mubr.bf16.mxu0 %v1322
        %1995 = vmatmul.mubr.bf16.gmra.mrb[0].mxu0 %v1321
        %v1996 = vpop.f32.mrb[0].mxu0
        %v1997 = vadd.f32 %v1957, %v1996
        %v1998 = vpop.f32.mrb[0].mxu0
        %v1999 = vpop.f32.mrb[0].mxu0
        %v2000 = vpop.f32.mrb[0].mxu0
        %2001 = vdwg.mxu0
        %2002 = vst [vmem:[%s275] sm:$0xff] %v1997
      $region48: #{fashion_cnn_forward.9} parent=39 // pred_fallthru
        _
      %p2003 = scmp.lt.s32.totalorder %s20, 0
      %s2004 = scalar_select %p2003, %s20, 0
      %s2005 = smul.addr %s2004, 8
      %s2006 = scalar_lea.vmem %s5, %s2005
      // Predicated region
      $region49: #{fashion_cnn_forward.9} parent=39 // pred_check
        %p2007 = pneg %p163
      $region50: #{fashion_cnn_forward.9} parent=39 // pred_check_branch
        %2009 = sbr.rel (%p2007) target = $region52
      $region51: #{fashion_cnn_forward.9} parent=39 // pred_region
        _
      $region52: #{fashion_cnn_forward.9} parent=39 // pred_fallthru
        _
      // Predicated region
      $region53: #{fashion_cnn_forward.9} parent=39 // pred_check
        %p2010 = pneg %p163
      $region54: #{fashion_cnn_forward.9} parent=39 // pred_check_branch
        %2012 = sbr.rel (%p2010) target = $region56
      $region55: #{fashion_cnn_forward.9} parent=39 // pred_region
        %p2013 = scmp.lt.s32.totalorder %s20, 0
        %s2014 = scalar_select %p2013, %s20, 0
        %s2015 = smul.addr %s2014, 8
        %s2016 = scalar_lea.vmem %s5, %s2015
      $region56: #{fashion_cnn_forward.9} parent=39 // pred_fallthru
        _
    $region40: #{fashion_cnn_forward.9} parent=5 // pred_fallthru
      _
    %p2017 = scmp.le.s32.totalorder 2, %s11
    // Predicated region
    $region57: #{fashion_cnn_forward.9} parent=5 // pred_check
      %p2018 = pneg %p2017
    $region58: #{fashion_cnn_forward.9} parent=5 // pred_check_branch
      %2020 = sbr.rel (%p2018) target = $region60
    $region59: #{fashion_cnn_forward.9} parent=5 // pred_region
      %s2021 = ssub.s32 %s11, 2
    $region60: #{fashion_cnn_forward.9} parent=5 // pred_fallthru
      _
  $region6: #{fashion_cnn_forward.9} parent=0 // loop_footer
    %s15 = sadd.s32 1, %s11
  $region7: #{fashion_cnn_forward.9} parent=0 // loop_footer_branch
    %10 = sbr.rel target = $region3
  $region8: #{fashion_cnn_forward.9} parent=0 // loop_exit
    _

</llo_original>
